<compile_context>
chip_gen: v7x
topology: tpu7x:2x2x1
jax: 0.10.0
libtpu: 0.0.40
codegen_flags: <defaults>
</compile_context>

<pallas_src>
import functools

import jax
import jax.numpy as jnp
from jax import lax
from jax.experimental import pallas as pl
from jax.experimental.pallas import tpu as pltpu

EPS = 1e-5  # nn.LayerNorm default eps


# ----------------------------- in-kernel helpers -----------------------------

def _layer_norm(x, gamma, beta):
    mu = jnp.mean(x, axis=-1, keepdims=True)
    var = jnp.mean((x - mu) ** 2, axis=-1, keepdims=True)
    return (x - mu) * lax.rsqrt(var + EPS) * gamma + beta


def _gelu_exact(x):
    # matches torch.nn.GELU() (erf form)
    return 0.5 * x * (1.0 + lax.erf(x * (2.0 ** -0.5)))


# ----------------------------- fused forward kernel -----------------------------

def _fused_forward_kernel(patches_ref, w_emb_ref, b_emb_ref, pos_ref,
                          g1_ref, b1_ref, wqkv_ref, wo_ref, bo_ref,
                          g2_ref, b2_ref, wff1_ref, bff1_ref, wff2_ref, bff2_ref,
                          gh_ref, bh_ref, wh_ref, biash_ref,
                          out_ref, tok_ref, *, heads, dim_head):
    l = pl.program_id(1)
    n_layers = pl.num_programs(1)
    Bt, N, D = tok_ref.shape
    Pd = patches_ref.shape[2]
    scale = dim_head ** -0.5

    # ---- step l == 0: patch embedding (Linear + ReLU) + positional embedding ----
    @pl.when(l == 0)
    def _():
        pt = patches_ref[...].reshape(Bt * N, Pd).astype(jnp.bfloat16)
        t = jnp.dot(pt, w_emb_ref[...],
                    preferred_element_type=jnp.float32) + b_emb_ref[...]
        t = jnp.maximum(t, 0.0).reshape(Bt, N, D)
        tok_ref[...] = t + pos_ref[...]

    x = tok_ref[...]                                          # (Bt, N, D) f32 tokens

    # ---- multi-head self-attention (pre-LayerNorm) ----
    xn = _layer_norm(x, g1_ref[0], b1_ref[0])                 # (Bt, N, D) f32
    wqkv_t = wqkv_ref[0]                                      # (3*inner, D) bf16
    wo3 = wo_ref[0]                                           # (heads, dh, D) bf16

    attn_rows = []
    for b in range(Bt):                                       # static unroll, small Bt
        xb = xn[b].astype(jnp.bfloat16)                       # (N, D)
        # qkv directly in head-major layout: (3*inner, N) = W_qkv_t @ x_b^T
        qkv_t = lax.dot_general(wqkv_t, xb, (((1,), (1,)), ((), ())),
                                preferred_element_type=jnp.float32)
        qkv_t = qkv_t.reshape(3 * heads, dim_head, N)         # (3H, dh, N)
        q_t = qkv_t[:heads]                                   # (H, dh, N) f32
        k_t = qkv_t[heads:2 * heads].astype(jnp.bfloat16)     # (H, dh, N)
        v_t = qkv_t[2 * heads:].astype(jnp.bfloat16)          # (H, dh, N)
        # q needs token-major rows; per-head 2-D XLU transposes, re-batched over heads
        q = jnp.concatenate([q_t[h].T[None] for h in range(heads)],
                            axis=0).astype(jnp.bfloat16)      # (H, N, dh)
        # scores: batched over heads, contraction consumed directly (no explicit k.T)
        s = lax.dot_general(q, k_t, (((2,), (1,)), ((0,), (0,))),
                            preferred_element_type=jnp.float32) * scale   # (H, N, N)
        s = s - jnp.max(s, axis=-1, keepdims=True)
        e = jnp.exp(s)
        p = e * pl.reciprocal(jnp.sum(e, axis=-1, keepdims=True), approx=True)
        # context: batched over heads
        ctx = lax.dot_general(p.astype(jnp.bfloat16), v_t,
                              (((2,), (2,)), ((0,), (0,))),
                              preferred_element_type=jnp.float32)         # (H, N, dh)
        # output projection folded per head (avoids concat over the lane axis)
        oh = lax.dot_general(ctx.astype(jnp.bfloat16), wo3,
                             (((2,), (1,)), ((0,), (0,))),
                             preferred_element_type=jnp.float32)          # (H, N, D)
        attn_rows.append(jnp.sum(oh, axis=0, keepdims=True))              # (1, N, D)

    attn = jnp.concatenate(attn_rows, axis=0) + bo_ref[0]     # (Bt, N, D)
    x = x + attn                                              # residual

    # ---- feed-forward (GELU), pre-LayerNorm ----
    xn2 = _layer_norm(x, g2_ref[0], b2_ref[0]).reshape(Bt * N, D).astype(jnp.bfloat16)
    h1 = jnp.dot(xn2, wff1_ref[0],
                 preferred_element_type=jnp.float32) + bff1_ref[0]
    h1 = _gelu_exact(h1).astype(jnp.bfloat16)
    y = jnp.dot(h1, wff2_ref[0],
                preferred_element_type=jnp.float32) + bff2_ref[0]
    x = x + y.reshape(Bt, N, D)                               # residual
    tok_ref[...] = x                                          # carry tokens to next layer

    # ---- last layer step: mean-pool over tokens -> LayerNorm -> Linear(D, 1) ----
    @pl.when(l == n_layers - 1)
    def _():
        m = jnp.mean(x, axis=1)                               # (Bt, D)
        mn = _layer_norm(m, gh_ref[...], bh_ref[...])
        out = jnp.dot(mn, wh_ref[...],
                      preferred_element_type=jnp.float32) + biash_ref[...]
        out_ref[...] = out.reshape(Bt, 1, 1)


# ----------------------------- wrapper / pallas_call -----------------------------

def _pick_batch_tile(batch):
    # biggest tile <= 8 that still leaves >= 2 grid steps on the parallel batch axis
    for cand in (8, 4, 2):
        if batch % cand == 0 and batch // cand >= 2:
            return cand
    return 1


def local_local_transformer3d(img, params, *, patch_size, heads, dim_head,
                              batch_tile=None):
    patches = to_patches(img, patch_size)                     # (B, N, Pd) f32
    B, N, Pd = patches.shape
    D = params["pos"].shape[-1]
    depth = params["w_qkv_t"].shape[0]
    inner = heads * dim_head
    mlp_dim = params["w_ff1"].shape[-1]

    Bt = batch_tile if batch_tile is not None else _pick_batch_tile(B)
    assert B % Bt == 0, (B, Bt)

    def _const2(b, l):
        return (0, 0)

    def _perlayer3(b, l):
        return (l, 0, 0)

    def _perlayer4(b, l):
        return (l, 0, 0, 0)

    def _batch3(b, l):
        return (b, 0, 0)

    in_specs = [
        pl.BlockSpec((Bt, N, Pd), _batch3),                   # patches
        pl.BlockSpec((Pd, D), _const2),                       # w_emb
        pl.BlockSpec((1, D), _const2),                        # b_emb
        pl.BlockSpec((N, D), _const2),                        # pos
        pl.BlockSpec((1, 1, D), _perlayer3),                  # g1
        pl.BlockSpec((1, 1, D), _perlayer3),                  # b1
        pl.BlockSpec((1, 3 * inner, D), _perlayer3),          # w_qkv_t
        pl.BlockSpec((1, heads, dim_head, D), _perlayer4),    # w_o (head-split)
        pl.BlockSpec((1, 1, D), _perlayer3),                  # b_o
        pl.BlockSpec((1, 1, D), _perlayer3),                  # g2
        pl.BlockSpec((1, 1, D), _perlayer3),                  # b2
        pl.BlockSpec((1, D, mlp_dim), _perlayer3),            # w_ff1
        pl.BlockSpec((1, 1, mlp_dim), _perlayer3),            # b_ff1
        pl.BlockSpec((1, mlp_dim, D), _perlayer3),            # w_ff2
        pl.BlockSpec((1, 1, D), _perlayer3),                  # b_ff2
        pl.BlockSpec((1, D), _const2),                        # g_head
        pl.BlockSpec((1, D), _const2),                        # b_head
        pl.BlockSpec((D, 1), _const2),                        # w_head
        pl.BlockSpec((1, 1), _const2),                        # bias_head
    ]

    kern = functools.partial(_fused_forward_kernel, heads=heads, dim_head=dim_head)
    out = pl.pallas_call(
        kern,
        out_shape=jax.ShapeDtypeStruct((B, 1, 1), jnp.float32),
        grid=(B // Bt, depth),
        in_specs=in_specs,
        out_specs=pl.BlockSpec((Bt, 1, 1), _batch3),
        scratch_shapes=[pltpu.VMEM((Bt, N, D), jnp.float32)],
        compiler_params=pltpu.CompilerParams(
            dimension_semantics=("parallel", "arbitrary")),
    )(patches, params["w_emb"], params["b_emb"], params["pos"],
      params["g1"], params["b1"], params["w_qkv_t"], params["w_o"], params["b_o"],
      params["g2"], params["b2"], params["w_ff1"], params["b_ff1"],
      params["w_ff2"], params["b_ff2"],
      params["g_head"], params["b_head"], params["w_head"], params["bias_head"])
    return out.reshape(B, 1)


# ----------------------------- plain-JAX glue -----------------------------

def to_patches(img, patch_size):
    # einops: 'b c (h p0) (w p1) (d p2) -> b (h w d) p0 p1 p2 c' then Flatten(start_dim=2)
    B, C, H, W, Dd = img.shape
    p0, p1, p2 = patch_size
    h, w, d = H // p0, W // p1, Dd // p2
    x = img.reshape(B, C, h, p0, w, p1, d, p2)
    x = x.transpose(0, 2, 4, 6, 3, 5, 7, 1)                   # b h w d p0 p1 p2 c
    return x.reshape(B, h * w * d, p0 * p1 * p2 * C)


def init_params(key, patch_dim, num_patches, embed_dim, depth, heads, dim_head, mlp_dim):
    inner = heads * dim_head
    ks = jax.random.split(key, 7)

    def nrm(k, shape, s=0.02, dtype=jnp.float32):
        return (jax.random.normal(k, shape, jnp.float32) * s).astype(dtype)

    # big matmul weights are stored bf16 (MXU operands); all vector params stay f32
    return {
        "w_emb": nrm(ks[0], (patch_dim, embed_dim), dtype=jnp.bfloat16),
        "b_emb": jnp.zeros((1, embed_dim), jnp.float32),
        "pos": jax.random.normal(ks[1], (num_patches, embed_dim), jnp.float32),
        "g1": jnp.ones((depth, 1, embed_dim), jnp.float32),
        "b1": jnp.zeros((depth, 1, embed_dim), jnp.float32),
        # qkv weight in torch (out_features, in_features) orientation, head-contiguous rows
        "w_qkv_t": nrm(ks[2], (depth, 3 * inner, embed_dim), dtype=jnp.bfloat16),
        # output projection split per head: (depth, heads, dim_head, embed_dim)
        "w_o": nrm(ks[3], (depth, heads, dim_head, embed_dim), dtype=jnp.bfloat16),
        "b_o": jnp.zeros((depth, 1, embed_dim), jnp.float32),
        "g2": jnp.ones((depth, 1, embed_dim), jnp.float32),
        "b2": jnp.zeros((depth, 1, embed_dim), jnp.float32),
        "w_ff1": nrm(ks[4], (depth, embed_dim, mlp_dim), dtype=jnp.bfloat16),
        "b_ff1": jnp.zeros((depth, 1, mlp_dim), jnp.float32),
        "w_ff2": nrm(ks[5], (depth, mlp_dim, embed_dim), dtype=jnp.bfloat16),
        "b_ff2": jnp.zeros((depth, 1, embed_dim), jnp.float32),
        "g_head": jnp.ones((1, embed_dim), jnp.float32),
        "b_head": jnp.zeros((1, embed_dim), jnp.float32),
        "w_head": nrm(ks[6], (embed_dim, 1)),
        "bias_head": jnp.zeros((1, 1), jnp.float32),
    }


# ----------------------------- demo -----------------------------

if __name__ == "__main__":
    B, C = 4, 1
    image_size = (16, 16, 16)
    patch_size = (4, 4, 4)
    embed_dim = 128
    depth = 2
    heads = 2
    dim_head = 64
    mlp_dim = 256

    h, w, d = (image_size[0] // patch_size[0],
               image_size[1] // patch_size[1],
               image_size[2] // patch_size[2])
    num_patches = h * w * d
    patch_dim = patch_size[0] * patch_size[1] * patch_size[2] * C

    key = jax.random.PRNGKey(0)
    k_img, k_par = jax.random.split(key)
    img = jax.random.normal(k_img, (B, C) + image_size, jnp.float32)

    params = init_params(k_par, patch_dim, num_patches, embed_dim,
                         depth, heads, dim_head, mlp_dim)

    fwd = jax.jit(functools.partial(local_local_transformer3d,
                                    patch_size=patch_size, heads=heads,
                                    dim_head=dim_head))
    out = fwd(img, params)
    jax.block_until_ready(out)
    assert out.shape == (B, 1), out.shape
    assert bool(jnp.all(jnp.isfinite(out)))
    print("KERNEL_OK")
</pallas_src>

<mosaic_0001>
module attributes {stable_mosaic.version = 11 : i64} {
  func.func @_fused_forward_kernel(%arg0: i32, %arg1: i32, %arg2: memref<2x64x64xf32, #tpu.memory_space<vmem>>, %arg3: memref<64x128xbf16, #tpu.memory_space<vmem>>, %arg4: memref<1x128xf32, #tpu.memory_space<vmem>>, %arg5: memref<64x128xf32, #tpu.memory_space<vmem>>, %arg6: memref<1x1x128xf32, #tpu.memory_space<vmem>>, %arg7: memref<1x1x128xf32, #tpu.memory_space<vmem>>, %arg8: memref<1x384x128xbf16, #tpu.memory_space<vmem>>, %arg9: memref<1x2x64x128xbf16, #tpu.memory_space<vmem>>, %arg10: memref<1x1x128xf32, #tpu.memory_space<vmem>>, %arg11: memref<1x1x128xf32, #tpu.memory_space<vmem>>, %arg12: memref<1x1x128xf32, #tpu.memory_space<vmem>>, %arg13: memref<1x128x256xbf16, #tpu.memory_space<vmem>>, %arg14: memref<1x1x256xf32, #tpu.memory_space<vmem>>, %arg15: memref<1x256x128xbf16, #tpu.memory_space<vmem>>, %arg16: memref<1x1x128xf32, #tpu.memory_space<vmem>>, %arg17: memref<1x128xf32, #tpu.memory_space<vmem>>, %arg18: memref<1x128xf32, #tpu.memory_space<vmem>>, %arg19: memref<128x1xf32, #tpu.memory_space<vmem>>, %arg20: memref<1x1xf32, #tpu.memory_space<vmem>>, %arg21: memref<2x1x1xf32, #tpu.memory_space<vmem>>, %arg22: memref<2x64x128xf32, #tpu.memory_space<vmem>>) attributes {dimension_semantics = [#tpu.dimension_semantics<parallel>, #tpu.dimension_semantics<arbitrary>], iteration_bounds = array<i64: 2, 2>, scalar_prefetch = 0 : i64, scratch_operands = 1 : i64, tpu.core_type = #tpu.core_type<tc>, window_params = [{transform_indices = @transform_0, window_bounds = array<i64: 2, 64, 64>}, {pipeline_mode = #tpu.pipeline_mode<synchronous>, transform_indices = @transform_1, window_bounds = array<i64: 64, 128>}, {pipeline_mode = #tpu.pipeline_mode<synchronous>, transform_indices = @transform_2, window_bounds = array<i64: 1, 128>}, {pipeline_mode = #tpu.pipeline_mode<synchronous>, transform_indices = @transform_3, window_bounds = array<i64: 64, 128>}, {transform_indices = @transform_4, window_bounds = array<i64: 1, 1, 128>}, {transform_indices = @transform_5, window_bounds = array<i64: 1, 1, 128>}, {transform_indices = @transform_6, window_bounds = array<i64: 1, 384, 128>}, {transform_indices = @transform_7, window_bounds = array<i64: 1, 2, 64, 128>}, {transform_indices = @transform_8, window_bounds = array<i64: 1, 1, 128>}, {transform_indices = @transform_9, window_bounds = array<i64: 1, 1, 128>}, {transform_indices = @transform_10, window_bounds = array<i64: 1, 1, 128>}, {transform_indices = @transform_11, window_bounds = array<i64: 1, 128, 256>}, {transform_indices = @transform_12, window_bounds = array<i64: 1, 1, 256>}, {transform_indices = @transform_13, window_bounds = array<i64: 1, 256, 128>}, {transform_indices = @transform_14, window_bounds = array<i64: 1, 1, 128>}, {pipeline_mode = #tpu.pipeline_mode<synchronous>, transform_indices = @transform_15, window_bounds = array<i64: 1, 128>}, {pipeline_mode = #tpu.pipeline_mode<synchronous>, transform_indices = @transform_16, window_bounds = array<i64: 1, 128>}, {pipeline_mode = #tpu.pipeline_mode<synchronous>, transform_indices = @transform_17, window_bounds = array<i64: 128, 1>}, {pipeline_mode = #tpu.pipeline_mode<synchronous>, transform_indices = @transform_18, window_bounds = array<i64: 1, 1>}, {transform_indices = @transform_19, window_bounds = array<i64: 2, 1, 1>}]} {
    %c0_i32 = arith.constant 0 : i32
    %0 = arith.cmpi eq, %arg1, %c0_i32 : i32
    %1 = arith.extui %0 : i1 to i32
    %c0_i32_0 = arith.constant 0 : i32
    %2 = arith.cmpi ne, %1, %c0_i32_0 : i32
    scf.if %2 {
      %c0_71 = arith.constant 0 : index
      %c0_72 = arith.constant 0 : index
      %c0_73 = arith.constant 0 : index
      %180 = vector.load %arg2[%c0_71, %c0_72, %c0_73] : memref<2x64x64xf32, #tpu.memory_space<vmem>>, vector<2x64x64xf32>
      %181 = vector.shape_cast %180 : vector<2x64x64xf32> to vector<128x64xf32>
      %182 = arith.truncf %181 : vector<128x64xf32> to vector<128x64xbf16>
      %c0_74 = arith.constant 0 : index
      %c0_75 = arith.constant 0 : index
      %183 = vector.load %arg3[%c0_74, %c0_75] : memref<64x128xbf16, #tpu.memory_space<vmem>>, vector<64x128xbf16>
      %cst_76 = arith.constant dense<0.000000e+00> : vector<128x128xf32>
      %184 = tpu.matmul %182, %183, %cst_76 {dimension_numbers = #tpu.dot_dimension_numbers<[1], [0], [0], [1], [0, 0, 1, 1], [], []>} : vector<128x64xbf16>, vector<64x128xbf16>, vector<128x128xf32> -> vector<128x128xf32>
      %c0_77 = arith.constant 0 : index
      %c0_78 = arith.constant 0 : index
      %185 = vector.load %arg4[%c0_77, %c0_78] : memref<1x128xf32, #tpu.memory_space<vmem>>, vector<1x128xf32>
      %186 = vector.broadcast %185 : vector<1x128xf32> to vector<128x128xf32>
      %187 = arith.addf %184, %186 : vector<128x128xf32>
      %cst_79 = arith.constant 0.000000e+00 : f32
      %188 = vector.broadcast %cst_79 : f32 to vector<128x128xf32>
      %189 = arith.maximumf %187, %188 : vector<128x128xf32>
      %190 = vector.shape_cast %189 : vector<128x128xf32> to vector<2x64x128xf32>
      %c0_80 = arith.constant 0 : index
      %c0_81 = arith.constant 0 : index
      %191 = vector.load %arg5[%c0_80, %c0_81] : memref<64x128xf32, #tpu.memory_space<vmem>>, vector<64x128xf32>
      %192 = vector.shape_cast %191 : vector<64x128xf32> to vector<1x64x128xf32>
      %193 = vector.broadcast %192 : vector<1x64x128xf32> to vector<2x64x128xf32>
      %194 = arith.addf %190, %193 : vector<2x64x128xf32>
      %c0_82 = arith.constant 0 : index
      %c0_83 = arith.constant 0 : index
      %c0_84 = arith.constant 0 : index
      %195 = vector.load %arg22[%c0_82, %c0_83, %c0_84] : memref<2x64x128xf32, #tpu.memory_space<vmem>>, vector<2x64x128xf32>
      tpu.vector_store %arg22[%c0_82, %c0_83, %c0_84], %194 {strides = array<i32>} : memref<2x64x128xf32, #tpu.memory_space<vmem>>, vector<2x64x128xf32>,
    } else {
    }
    %c0 = arith.constant 0 : index
    %c0_1 = arith.constant 0 : index
    %c0_2 = arith.constant 0 : index
    %3 = vector.load %arg22[%c0, %c0_1, %c0_2] : memref<2x64x128xf32, #tpu.memory_space<vmem>>, vector<2x64x128xf32>
    %c0_3 = arith.constant 0 : index
    %c0_4 = arith.constant 0 : index
    %c0_5 = arith.constant 0 : index
    %4 = vector.load %arg6[%c0_3, %c0_4, %c0_5] : memref<1x1x128xf32, #tpu.memory_space<vmem>>, vector<1x1x128xf32>
    %5 = vector.shape_cast %4 : vector<1x1x128xf32> to vector<1x128xf32>
    %c0_6 = arith.constant 0 : index
    %c0_7 = arith.constant 0 : index
    %c0_8 = arith.constant 0 : index
    %6 = vector.load %arg7[%c0_6, %c0_7, %c0_8] : memref<1x1x128xf32, #tpu.memory_space<vmem>>, vector<1x1x128xf32>
    %7 = vector.shape_cast %6 : vector<1x1x128xf32> to vector<1x128xf32>
    %cst = arith.constant dense<0.000000e+00> : vector<2x64xf32>
    %8 = vector.multi_reduction <add>, %3, %cst [2] : vector<2x64x128xf32> to vector<2x64xf32>
    %9 = vector.shape_cast %8 : vector<2x64xf32> to vector<2x64x1xf32>
    %cst_9 = arith.constant 1.280000e+02 : f32
    %10 = vector.broadcast %cst_9 : f32 to vector<2x64x1xf32>
    %11 = arith.divf %9, %10 : vector<2x64x1xf32>
    %12 = vector.broadcast %11 : vector<2x64x1xf32> to vector<2x64x128xf32>
    %13 = arith.subf %3, %12 : vector<2x64x128xf32>
    %14 = arith.mulf %13, %13 : vector<2x64x128xf32>
    %cst_10 = arith.constant dense<0.000000e+00> : vector<2x64xf32>
    %15 = vector.multi_reduction <add>, %14, %cst_10 [2] : vector<2x64x128xf32> to vector<2x64xf32>
    %16 = vector.shape_cast %15 : vector<2x64xf32> to vector<2x64x1xf32>
    %cst_11 = arith.constant 1.280000e+02 : f32
    %17 = vector.broadcast %cst_11 : f32 to vector<2x64x1xf32>
    %18 = arith.divf %16, %17 : vector<2x64x1xf32>
    %19 = vector.broadcast %11 : vector<2x64x1xf32> to vector<2x64x128xf32>
    %20 = arith.subf %3, %19 : vector<2x64x128xf32>
    %cst_12 = arith.constant 9.99999974E-6 : f32
    %21 = vector.broadcast %cst_12 : f32 to vector<2x64x1xf32>
    %22 = arith.addf %18, %21 : vector<2x64x1xf32>
    %23 = math.rsqrt %22 : vector<2x64x1xf32>
    %24 = vector.broadcast %23 : vector<2x64x1xf32> to vector<2x64x128xf32>
    %25 = arith.mulf %20, %24 : vector<2x64x128xf32>
    %26 = vector.shape_cast %5 : vector<1x128xf32> to vector<1x1x128xf32>
    %27 = vector.broadcast %26 : vector<1x1x128xf32> to vector<2x64x128xf32>
    %28 = arith.mulf %25, %27 : vector<2x64x128xf32>
    %29 = vector.shape_cast %7 : vector<1x128xf32> to vector<1x1x128xf32>
    %30 = vector.broadcast %29 : vector<1x1x128xf32> to vector<2x64x128xf32>
    %31 = arith.addf %28, %30 : vector<2x64x128xf32>
    %c0_13 = arith.constant 0 : index
    %c0_14 = arith.constant 0 : index
    %c0_15 = arith.constant 0 : index
    %32 = vector.load %arg8[%c0_13, %c0_14, %c0_15] : memref<1x384x128xbf16, #tpu.memory_space<vmem>>, vector<1x384x128xbf16>
    %33 = vector.shape_cast %32 : vector<1x384x128xbf16> to vector<384x128xbf16>
    %c0_16 = arith.constant 0 : index
    %c0_17 = arith.constant 0 : index
    %c0_18 = arith.constant 0 : index
    %c0_19 = arith.constant 0 : index
    %34 = vector.load %arg9[%c0_16, %c0_17, %c0_18, %c0_19] : memref<1x2x64x128xbf16, #tpu.memory_space<vmem>>, vector<1x2x64x128xbf16>
    %35 = vector.shape_cast %34 : vector<1x2x64x128xbf16> to vector<2x64x128xbf16>
    %36 = vector.extract_strided_slice %31 {offsets = [0, 0, 0], sizes = [1, 64, 128], strides = [1, 1, 1]} : vector<2x64x128xf32> to vector<1x64x128xf32>
    %37 = vector.shape_cast %36 : vector<1x64x128xf32> to vector<64x128xf32>
    %38 = arith.truncf %37 : vector<64x128xf32> to vector<64x128xbf16>
    %cst_20 = arith.constant dense<0.000000e+00> : vector<384x64xf32>
    %39 = tpu.matmul %33, %38, %cst_20 {dimension_numbers = #tpu.dot_dimension_numbers<[1], [1], [0], [0], [0, 0, 1, 0], [], []>} : vector<384x128xbf16>, vector<64x128xbf16>, vector<384x64xf32> -> vector<384x64xf32>
    %40 = vector.shape_cast %39 : vector<384x64xf32> to vector<6x64x64xf32>
    %41 = vector.extract_strided_slice %40 {offsets = [0, 0, 0], sizes = [2, 64, 64], strides = [1, 1, 1]} : vector<6x64x64xf32> to vector<2x64x64xf32>
    %42 = vector.extract_strided_slice %40 {offsets = [2, 0, 0], sizes = [2, 64, 64], strides = [1, 1, 1]} : vector<6x64x64xf32> to vector<2x64x64xf32>
    %43 = arith.truncf %42 : vector<2x64x64xf32> to vector<2x64x64xbf16>
    %44 = vector.extract_strided_slice %40 {offsets = [4, 0, 0], sizes = [2, 64, 64], strides = [1, 1, 1]} : vector<6x64x64xf32> to vector<2x64x64xf32>
    %45 = arith.truncf %44 : vector<2x64x64xf32> to vector<2x64x64xbf16>
    %46 = vector.extract_strided_slice %41 {offsets = [0, 0, 0], sizes = [1, 64, 64], strides = [1, 1, 1]} : vector<2x64x64xf32> to vector<1x64x64xf32>
    %47 = vector.shape_cast %46 : vector<1x64x64xf32> to vector<64x64xf32>
    %48 = tpu.transpose %47, [1, 0] : vector<64x64xf32> -> vector<64x64xf32>
    %49 = vector.shape_cast %48 : vector<64x64xf32> to vector<1x64x64xf32>
    %50 = vector.extract_strided_slice %41 {offsets = [1, 0, 0], sizes = [1, 64, 64], strides = [1, 1, 1]} : vector<2x64x64xf32> to vector<1x64x64xf32>
    %51 = vector.shape_cast %50 : vector<1x64x64xf32> to vector<64x64xf32>
    %52 = tpu.transpose %51, [1, 0] : vector<64x64xf32> -> vector<64x64xf32>
    %53 = vector.shape_cast %52 : vector<64x64xf32> to vector<1x64x64xf32>
    %54 = tpu.concatenate %49, %53 in 0 : vector<1x64x64xf32>, vector<1x64x64xf32> -> vector<2x64x64xf32>
    %55 = arith.truncf %54 : vector<2x64x64xf32> to vector<2x64x64xbf16>
    %cst_21 = arith.constant dense<0.000000e+00> : vector<2x64x64xf32>
    %56 = tpu.matmul %55, %43, %cst_21 {dimension_numbers = #tpu.dot_dimension_numbers<[2], [1], [1], [2], [0, 0, 0, 1, 1, 2], [0], [0]>} : vector<2x64x64xbf16>, vector<2x64x64xbf16>, vector<2x64x64xf32> -> vector<2x64x64xf32>
    %cst_22 = arith.constant 1.250000e-01 : f32
    %57 = vector.broadcast %cst_22 : f32 to vector<2x64x64xf32>
    %58 = arith.mulf %56, %57 : vector<2x64x64xf32>
    %cst_23 = arith.constant dense<0xFF800000> : vector<2x64xf32>
    %59 = vector.multi_reduction <maximumf>, %58, %cst_23 [2] : vector<2x64x64xf32> to vector<2x64xf32>
    %60 = vector.shape_cast %59 : vector<2x64xf32> to vector<2x64x1xf32>
    %61 = vector.broadcast %60 : vector<2x64x1xf32> to vector<2x64x64xf32>
    %62 = arith.subf %58, %61 : vector<2x64x64xf32>
    %63 = math.exp %62 : vector<2x64x64xf32>
    %cst_24 = arith.constant dense<0.000000e+00> : vector<2x64xf32>
    %64 = vector.multi_reduction <add>, %63, %cst_24 [2] : vector<2x64x64xf32> to vector<2x64xf32>
    %65 = vector.shape_cast %64 : vector<2x64xf32> to vector<2x64x1xf32>
    %66 = tpu.reciprocal %65 {approx = true} : vector<2x64x1xf32> -> vector<2x64x1xf32>
    %67 = vector.broadcast %66 : vector<2x64x1xf32> to vector<2x64x64xf32>
    %68 = arith.mulf %63, %67 : vector<2x64x64xf32>
    %69 = arith.truncf %68 : vector<2x64x64xf32> to vector<2x64x64xbf16>
    %cst_25 = arith.constant dense<0.000000e+00> : vector<2x64x64xf32>
    %70 = tpu.matmul %69, %45, %cst_25 {dimension_numbers = #tpu.dot_dimension_numbers<[2], [2], [1], [1], [0, 0, 0, 1, 1, 1], [0], [0]>} : vector<2x64x64xbf16>, vector<2x64x64xbf16>, vector<2x64x64xf32> -> vector<2x64x64xf32>
    %71 = arith.truncf %70 : vector<2x64x64xf32> to vector<2x64x64xbf16>
    %cst_26 = arith.constant dense<0.000000e+00> : vector<2x64x128xf32>
    %72 = tpu.matmul %71, %35, %cst_26 {dimension_numbers = #tpu.dot_dimension_numbers<[2], [1], [1], [2], [0, 0, 0, 1, 1, 2], [0], [0]>} : vector<2x64x64xbf16>, vector<2x64x128xbf16>, vector<2x64x128xf32> -> vector<2x64x128xf32>
    %cst_27 = arith.constant dense<0.000000e+00> : vector<64x128xf32>
    %73 = vector.multi_reduction <add>, %72, %cst_27 [0] : vector<2x64x128xf32> to vector<64x128xf32>
    %74 = vector.shape_cast %73 : vector<64x128xf32> to vector<1x64x128xf32>
    %75 = vector.extract_strided_slice %31 {offsets = [1, 0, 0], sizes = [1, 64, 128], strides = [1, 1, 1]} : vector<2x64x128xf32> to vector<1x64x128xf32>
    %76 = vector.shape_cast %75 : vector<1x64x128xf32> to vector<64x128xf32>
    %77 = arith.truncf %76 : vector<64x128xf32> to vector<64x128xbf16>
    %cst_28 = arith.constant dense<0.000000e+00> : vector<384x64xf32>
    %78 = tpu.matmul %33, %77, %cst_28 {dimension_numbers = #tpu.dot_dimension_numbers<[1], [1], [0], [0], [0, 0, 1, 0], [], []>} : vector<384x128xbf16>, vector<64x128xbf16>, vector<384x64xf32> -> vector<384x64xf32>
    %79 = vector.shape_cast %78 : vector<384x64xf32> to vector<6x64x64xf32>
    %80 = vector.extract_strided_slice %79 {offsets = [0, 0, 0], sizes = [2, 64, 64], strides = [1, 1, 1]} : vector<6x64x64xf32> to vector<2x64x64xf32>
    %81 = vector.extract_strided_slice %79 {offsets = [2, 0, 0], sizes = [2, 64, 64], strides = [1, 1, 1]} : vector<6x64x64xf32> to vector<2x64x64xf32>
    %82 = arith.truncf %81 : vector<2x64x64xf32> to vector<2x64x64xbf16>
    %83 = vector.extract_strided_slice %79 {offsets = [4, 0, 0], sizes = [2, 64, 64], strides = [1, 1, 1]} : vector<6x64x64xf32> to vector<2x64x64xf32>
    %84 = arith.truncf %83 : vector<2x64x64xf32> to vector<2x64x64xbf16>
    %85 = vector.extract_strided_slice %80 {offsets = [0, 0, 0], sizes = [1, 64, 64], strides = [1, 1, 1]} : vector<2x64x64xf32> to vector<1x64x64xf32>
    %86 = vector.shape_cast %85 : vector<1x64x64xf32> to vector<64x64xf32>
    %87 = tpu.transpose %86, [1, 0] : vector<64x64xf32> -> vector<64x64xf32>
    %88 = vector.shape_cast %87 : vector<64x64xf32> to vector<1x64x64xf32>
    %89 = vector.extract_strided_slice %80 {offsets = [1, 0, 0], sizes = [1, 64, 64], strides = [1, 1, 1]} : vector<2x64x64xf32> to vector<1x64x64xf32>
    %90 = vector.shape_cast %89 : vector<1x64x64xf32> to vector<64x64xf32>
    %91 = tpu.transpose %90, [1, 0] : vector<64x64xf32> -> vector<64x64xf32>
    %92 = vector.shape_cast %91 : vector<64x64xf32> to vector<1x64x64xf32>
    %93 = tpu.concatenate %88, %92 in 0 : vector<1x64x64xf32>, vector<1x64x64xf32> -> vector<2x64x64xf32>
    %94 = arith.truncf %93 : vector<2x64x64xf32> to vector<2x64x64xbf16>
    %cst_29 = arith.constant dense<0.000000e+00> : vector<2x64x64xf32>
    %95 = tpu.matmul %94, %82, %cst_29 {dimension_numbers = #tpu.dot_dimension_numbers<[2], [1], [1], [2], [0, 0, 0, 1, 1, 2], [0], [0]>} : vector<2x64x64xbf16>, vector<2x64x64xbf16>, vector<2x64x64xf32> -> vector<2x64x64xf32>
    %cst_30 = arith.constant 1.250000e-01 : f32
    %96 = vector.broadcast %cst_30 : f32 to vector<2x64x64xf32>
    %97 = arith.mulf %95, %96 : vector<2x64x64xf32>
    %cst_31 = arith.constant dense<0xFF800000> : vector<2x64xf32>
    %98 = vector.multi_reduction <maximumf>, %97, %cst_31 [2] : vector<2x64x64xf32> to vector<2x64xf32>
    %99 = vector.shape_cast %98 : vector<2x64xf32> to vector<2x64x1xf32>
    %100 = vector.broadcast %99 : vector<2x64x1xf32> to vector<2x64x64xf32>
    %101 = arith.subf %97, %100 : vector<2x64x64xf32>
    %102 = math.exp %101 : vector<2x64x64xf32>
    %cst_32 = arith.constant dense<0.000000e+00> : vector<2x64xf32>
    %103 = vector.multi_reduction <add>, %102, %cst_32 [2] : vector<2x64x64xf32> to vector<2x64xf32>
    %104 = vector.shape_cast %103 : vector<2x64xf32> to vector<2x64x1xf32>
    %105 = tpu.reciprocal %104 {approx = true} : vector<2x64x1xf32> -> vector<2x64x1xf32>
    %106 = vector.broadcast %105 : vector<2x64x1xf32> to vector<2x64x64xf32>
    %107 = arith.mulf %102, %106 : vector<2x64x64xf32>
    %108 = arith.truncf %107 : vector<2x64x64xf32> to vector<2x64x64xbf16>
    %cst_33 = arith.constant dense<0.000000e+00> : vector<2x64x64xf32>
    %109 = tpu.matmul %108, %84, %cst_33 {dimension_numbers = #tpu.dot_dimension_numbers<[2], [2], [1], [1], [0, 0, 0, 1, 1, 1], [0], [0]>} : vector<2x64x64xbf16>, vector<2x64x64xbf16>, vector<2x64x64xf32> -> vector<2x64x64xf32>
    %110 = arith.truncf %109 : vector<2x64x64xf32> to vector<2x64x64xbf16>
    %cst_34 = arith.constant dense<0.000000e+00> : vector<2x64x128xf32>
    %111 = tpu.matmul %110, %35, %cst_34 {dimension_numbers = #tpu.dot_dimension_numbers<[2], [1], [1], [2], [0, 0, 0, 1, 1, 2], [0], [0]>} : vector<2x64x64xbf16>, vector<2x64x128xbf16>, vector<2x64x128xf32> -> vector<2x64x128xf32>
    %cst_35 = arith.constant dense<0.000000e+00> : vector<64x128xf32>
    %112 = vector.multi_reduction <add>, %111, %cst_35 [0] : vector<2x64x128xf32> to vector<64x128xf32>
    %113 = vector.shape_cast %112 : vector<64x128xf32> to vector<1x64x128xf32>
    %114 = tpu.concatenate %74, %113 in 0 : vector<1x64x128xf32>, vector<1x64x128xf32> -> vector<2x64x128xf32>
    %c0_36 = arith.constant 0 : index
    %c0_37 = arith.constant 0 : index
    %c0_38 = arith.constant 0 : index
    %115 = vector.load %arg10[%c0_36, %c0_37, %c0_38] : memref<1x1x128xf32, #tpu.memory_space<vmem>>, vector<1x1x128xf32>
    %116 = vector.shape_cast %115 : vector<1x1x128xf32> to vector<1x128xf32>
    %117 = vector.shape_cast %116 : vector<1x128xf32> to vector<1x1x128xf32>
    %118 = vector.broadcast %117 : vector<1x1x128xf32> to vector<2x64x128xf32>
    %119 = arith.addf %114, %118 : vector<2x64x128xf32>
    %120 = arith.addf %3, %119 : vector<2x64x128xf32>
    %c0_39 = arith.constant 0 : index
    %c0_40 = arith.constant 0 : index
    %c0_41 = arith.constant 0 : index
    %121 = vector.load %arg11[%c0_39, %c0_40, %c0_41] : memref<1x1x128xf32, #tpu.memory_space<vmem>>, vector<1x1x128xf32>
    %122 = vector.shape_cast %121 : vector<1x1x128xf32> to vector<1x128xf32>
    %c0_42 = arith.constant 0 : index
    %c0_43 = arith.constant 0 : index
    %c0_44 = arith.constant 0 : index
    %123 = vector.load %arg12[%c0_42, %c0_43, %c0_44] : memref<1x1x128xf32, #tpu.memory_space<vmem>>, vector<1x1x128xf32>
    %124 = vector.shape_cast %123 : vector<1x1x128xf32> to vector<1x128xf32>
    %cst_45 = arith.constant dense<0.000000e+00> : vector<2x64xf32>
    %125 = vector.multi_reduction <add>, %120, %cst_45 [2] : vector<2x64x128xf32> to vector<2x64xf32>
    %126 = vector.shape_cast %125 : vector<2x64xf32> to vector<2x64x1xf32>
    %cst_46 = arith.constant 1.280000e+02 : f32
    %127 = vector.broadcast %cst_46 : f32 to vector<2x64x1xf32>
    %128 = arith.divf %126, %127 : vector<2x64x1xf32>
    %129 = vector.broadcast %128 : vector<2x64x1xf32> to vector<2x64x128xf32>
    %130 = arith.subf %120, %129 : vector<2x64x128xf32>
    %131 = arith.mulf %130, %130 : vector<2x64x128xf32>
    %cst_47 = arith.constant dense<0.000000e+00> : vector<2x64xf32>
    %132 = vector.multi_reduction <add>, %131, %cst_47 [2] : vector<2x64x128xf32> to vector<2x64xf32>
    %133 = vector.shape_cast %132 : vector<2x64xf32> to vector<2x64x1xf32>
    %cst_48 = arith.constant 1.280000e+02 : f32
    %134 = vector.broadcast %cst_48 : f32 to vector<2x64x1xf32>
    %135 = arith.divf %133, %134 : vector<2x64x1xf32>
    %136 = vector.broadcast %128 : vector<2x64x1xf32> to vector<2x64x128xf32>
    %137 = arith.subf %120, %136 : vector<2x64x128xf32>
    %cst_49 = arith.constant 9.99999974E-6 : f32
    %138 = vector.broadcast %cst_49 : f32 to vector<2x64x1xf32>
    %139 = arith.addf %135, %138 : vector<2x64x1xf32>
    %140 = math.rsqrt %139 : vector<2x64x1xf32>
    %141 = vector.broadcast %140 : vector<2x64x1xf32> to vector<2x64x128xf32>
    %142 = arith.mulf %137, %141 : vector<2x64x128xf32>
    %143 = vector.shape_cast %122 : vector<1x128xf32> to vector<1x1x128xf32>
    %144 = vector.broadcast %143 : vector<1x1x128xf32> to vector<2x64x128xf32>
    %145 = arith.mulf %142, %144 : vector<2x64x128xf32>
    %146 = vector.shape_cast %124 : vector<1x128xf32> to vector<1x1x128xf32>
    %147 = vector.broadcast %146 : vector<1x1x128xf32> to vector<2x64x128xf32>
    %148 = arith.addf %145, %147 : vector<2x64x128xf32>
    %149 = vector.shape_cast %148 : vector<2x64x128xf32> to vector<128x128xf32>
    %150 = arith.truncf %149 : vector<128x128xf32> to vector<128x128xbf16>
    %c0_50 = arith.constant 0 : index
    %c0_51 = arith.constant 0 : index
    %c0_52 = arith.constant 0 : index
    %151 = vector.load %arg13[%c0_50, %c0_51, %c0_52] : memref<1x128x256xbf16, #tpu.memory_space<vmem>>, vector<1x128x256xbf16>
    %152 = vector.shape_cast %151 : vector<1x128x256xbf16> to vector<128x256xbf16>
    %cst_53 = arith.constant dense<0.000000e+00> : vector<128x256xf32>
    %153 = tpu.matmul %150, %152, %cst_53 {dimension_numbers = #tpu.dot_dimension_numbers<[1], [0], [0], [1], [0, 0, 1, 1], [], []>} : vector<128x128xbf16>, vector<128x256xbf16>, vector<128x256xf32> -> vector<128x256xf32>
    %c0_54 = arith.constant 0 : index
    %c0_55 = arith.constant 0 : index
    %c0_56 = arith.constant 0 : index
    %154 = vector.load %arg14[%c0_54, %c0_55, %c0_56] : memref<1x1x256xf32, #tpu.memory_space<vmem>>, vector<1x1x256xf32>
    %155 = vector.shape_cast %154 : vector<1x1x256xf32> to vector<1x256xf32>
    %156 = vector.broadcast %155 : vector<1x256xf32> to vector<128x256xf32>
    %157 = arith.addf %153, %156 : vector<128x256xf32>
    %cst_57 = arith.constant 5.000000e-01 : f32
    %158 = vector.broadcast %cst_57 : f32 to vector<128x256xf32>
    %159 = arith.mulf %158, %157 : vector<128x256xf32>
    %cst_58 = arith.constant 0.707106769 : f32
    %160 = vector.broadcast %cst_58 : f32 to vector<128x256xf32>
    %161 = arith.mulf %157, %160 : vector<128x256xf32>
    %162 = math.erf %161 : vector<128x256xf32>
    %cst_59 = arith.constant 1.000000e+00 : f32
    %163 = vector.broadcast %cst_59 : f32 to vector<128x256xf32>
    %164 = arith.addf %163, %162 : vector<128x256xf32>
    %165 = arith.mulf %159, %164 : vector<128x256xf32>
    %166 = arith.truncf %165 : vector<128x256xf32> to vector<128x256xbf16>
    %c0_60 = arith.constant 0 : index
    %c0_61 = arith.constant 0 : index
    %c0_62 = arith.constant 0 : index
    %167 = vector.load %arg15[%c0_60, %c0_61, %c0_62] : memref<1x256x128xbf16, #tpu.memory_space<vmem>>, vector<1x256x128xbf16>
    %168 = vector.shape_cast %167 : vector<1x256x128xbf16> to vector<256x128xbf16>
    %cst_63 = arith.constant dense<0.000000e+00> : vector<128x128xf32>
    %169 = tpu.matmul %166, %168, %cst_63 {dimension_numbers = #tpu.dot_dimension_numbers<[1], [0], [0], [1], [0, 0, 1, 1], [], []>} : vector<128x256xbf16>, vector<256x128xbf16>, vector<128x128xf32> -> vector<128x128xf32>
    %c0_64 = arith.constant 0 : index
    %c0_65 = arith.constant 0 : index
    %c0_66 = arith.constant 0 : index
    %170 = vector.load %arg16[%c0_64, %c0_65, %c0_66] : memref<1x1x128xf32, #tpu.memory_space<vmem>>, vector<1x1x128xf32>
    %171 = vector.shape_cast %170 : vector<1x1x128xf32> to vector<1x128xf32>
    %172 = vector.broadcast %171 : vector<1x128xf32> to vector<128x128xf32>
    %173 = arith.addf %169, %172 : vector<128x128xf32>
    %174 = vector.shape_cast %173 : vector<128x128xf32> to vector<2x64x128xf32>
    %175 = arith.addf %120, %174 : vector<2x64x128xf32>
    %c0_67 = arith.constant 0 : index
    %c0_68 = arith.constant 0 : index
    %c0_69 = arith.constant 0 : index
    %176 = vector.load %arg22[%c0_67, %c0_68, %c0_69] : memref<2x64x128xf32, #tpu.memory_space<vmem>>, vector<2x64x128xf32>
    tpu.vector_store %arg22[%c0_67, %c0_68, %c0_69], %175 {strides = array<i32>} : memref<2x64x128xf32, #tpu.memory_space<vmem>>, vector<2x64x128xf32>,
    %c1_i32 = arith.constant 1 : i32
    %177 = arith.cmpi eq, %arg1, %c1_i32 : i32
    %178 = arith.extui %177 : i1 to i32
    %c0_i32_70 = arith.constant 0 : i32
    %179 = arith.cmpi ne, %178, %c0_i32_70 : i32
    scf.if %179 {
      %cst_71 = arith.constant dense<0.000000e+00> : vector<2x128xf32>
      %180 = vector.multi_reduction <add>, %175, %cst_71 [1] : vector<2x64x128xf32> to vector<2x128xf32>
      %cst_72 = arith.constant 6.400000e+01 : f32
      %181 = vector.broadcast %cst_72 : f32 to vector<2x128xf32>
      %182 = arith.divf %180, %181 : vector<2x128xf32>
      %c0_73 = arith.constant 0 : index
      %c0_74 = arith.constant 0 : index
      %183 = vector.load %arg17[%c0_73, %c0_74] : memref<1x128xf32, #tpu.memory_space<vmem>>, vector<1x128xf32>
      %c0_75 = arith.constant 0 : index
      %c0_76 = arith.constant 0 : index
      %184 = vector.load %arg18[%c0_75, %c0_76] : memref<1x128xf32, #tpu.memory_space<vmem>>, vector<1x128xf32>
      %cst_77 = arith.constant dense<0.000000e+00> : vector<2xf32>
      %185 = vector.multi_reduction <add>, %182, %cst_77 [1] : vector<2x128xf32> to vector<2xf32>
      %186 = vector.shape_cast %185 : vector<2xf32> to vector<2x1xf32>
      %cst_78 = arith.constant 1.280000e+02 : f32
      %187 = vector.broadcast %cst_78 : f32 to vector<2x1xf32>
      %188 = arith.divf %186, %187 : vector<2x1xf32>
      %189 = vector.broadcast %188 : vector<2x1xf32> to vector<2x128xf32>
      %190 = arith.subf %182, %189 : vector<2x128xf32>
      %191 = arith.mulf %190, %190 : vector<2x128xf32>
      %cst_79 = arith.constant dense<0.000000e+00> : vector<2xf32>
      %192 = vector.multi_reduction <add>, %191, %cst_79 [1] : vector<2x128xf32> to vector<2xf32>
      %193 = vector.shape_cast %192 : vector<2xf32> to vector<2x1xf32>
      %cst_80 = arith.constant 1.280000e+02 : f32
      %194 = vector.broadcast %cst_80 : f32 to vector<2x1xf32>
      %195 = arith.divf %193, %194 : vector<2x1xf32>
      %196 = vector.broadcast %188 : vector<2x1xf32> to vector<2x128xf32>
      %197 = arith.subf %182, %196 : vector<2x128xf32>
      %cst_81 = arith.constant 9.99999974E-6 : f32
      %198 = vector.broadcast %cst_81 : f32 to vector<2x1xf32>
      %199 = arith.addf %195, %198 : vector<2x1xf32>
      %200 = math.rsqrt %199 : vector<2x1xf32>
      %201 = vector.broadcast %200 : vector<2x1xf32> to vector<2x128xf32>
      %202 = arith.mulf %197, %201 : vector<2x128xf32>
      %203 = vector.broadcast %183 : vector<1x128xf32> to vector<2x128xf32>
      %204 = arith.mulf %202, %203 : vector<2x128xf32>
      %205 = vector.broadcast %184 : vector<1x128xf32> to vector<2x128xf32>
      %206 = arith.addf %204, %205 : vector<2x128xf32>
      %c0_82 = arith.constant 0 : index
      %c0_83 = arith.constant 0 : index
      %207 = vector.load %arg19[%c0_82, %c0_83] : memref<128x1xf32, #tpu.memory_space<vmem>>, vector<128x1xf32>
      %cst_84 = arith.constant dense<0.000000e+00> : vector<2x1xf32>
      %208 = tpu.matmul %206, %207, %cst_84 {dimension_numbers = #tpu.dot_dimension_numbers<[1], [0], [0], [1], [0, 0, 1, 1], [], []>} : vector<2x128xf32>, vector<128x1xf32>, vector<2x1xf32> -> vector<2x1xf32>
      %c0_85 = arith.constant 0 : index
      %c0_86 = arith.constant 0 : index
      %209 = vector.load %arg20[%c0_85, %c0_86] : memref<1x1xf32, #tpu.memory_space<vmem>>, vector<1x1xf32>
      %210 = vector.broadcast %209 : vector<1x1xf32> to vector<2x1xf32>
      %211 = arith.addf %208, %210 : vector<2x1xf32>
      %212 = vector.shape_cast %211 : vector<2x1xf32> to vector<2x1x1xf32>
      %c0_87 = arith.constant 0 : index
      %c0_88 = arith.constant 0 : index
      %c0_89 = arith.constant 0 : index
      %213 = vector.load %arg21[%c0_87, %c0_88, %c0_89] : memref<2x1x1xf32, #tpu.memory_space<vmem>>, vector<2x1x1xf32>
      tpu.vector_store %arg21[%c0_87, %c0_88, %c0_89], %212 {strides = array<i32>} : memref<2x1x1xf32, #tpu.memory_space<vmem>>, vector<2x1x1xf32>,
    } else {
    }
    return
  }
  func.func @transform_0(%arg0: i32, %arg1: i32) -> (i32, i32, i32) {
    %c0_i32 = arith.constant 0 : i32
    %c0_i32_0 = arith.constant 0 : i32
    %c0_i32_1 = arith.constant 0 : i32
    return %arg0, %c0_i32, %c0_i32_0 : i32, i32, i32
  }
  func.func @transform_1(%arg0: i32, %arg1: i32) -> (i32, i32) {
    %c0_i32 = arith.constant 0 : i32
    %c0_i32_0 = arith.constant 0 : i32
    %c0_i32_1 = arith.constant 0 : i32
    return %c0_i32, %c0_i32_0 : i32, i32
  }
  func.func @transform_2(%arg0: i32, %arg1: i32) -> (i32, i32) {
    %c0_i32 = arith.constant 0 : i32
    %c0_i32_0 = arith.constant 0 : i32
    %c0_i32_1 = arith.constant 0 : i32
    return %c0_i32, %c0_i32_0 : i32, i32
  }
  func.func @transform_3(%arg0: i32, %arg1: i32) -> (i32, i32) {
    %c0_i32 = arith.constant 0 : i32
    %c0_i32_0 = arith.constant 0 : i32
    %c0_i32_1 = arith.constant 0 : i32
    return %c0_i32, %c0_i32_0 : i32, i32
  }
  func.func @transform_4(%arg0: i32, %arg1: i32) -> (i32, i32, i32) {
    %c0_i32 = arith.constant 0 : i32
    %c0_i32_0 = arith.constant 0 : i32
    %c0_i32_1 = arith.constant 0 : i32
    return %arg1, %c0_i32, %c0_i32_0 : i32, i32, i32
  }
  func.func @transform_5(%arg0: i32, %arg1: i32) -> (i32, i32, i32) {
    %c0_i32 = arith.constant 0 : i32
    %c0_i32_0 = arith.constant 0 : i32
    %c0_i32_1 = arith.constant 0 : i32
    return %arg1, %c0_i32, %c0_i32_0 : i32, i32, i32
  }
  func.func @transform_6(%arg0: i32, %arg1: i32) -> (i32, i32, i32) {
    %c0_i32 = arith.constant 0 : i32
    %c0_i32_0 = arith.constant 0 : i32
    %c0_i32_1 = arith.constant 0 : i32
    return %arg1, %c0_i32, %c0_i32_0 : i32, i32, i32
  }
  func.func @transform_7(%arg0: i32, %arg1: i32) -> (i32, i32, i32, i32) {
    %c0_i32 = arith.constant 0 : i32
    %c0_i32_0 = arith.constant 0 : i32
    %c0_i32_1 = arith.constant 0 : i32
    %c0_i32_2 = arith.constant 0 : i32
    return %arg1, %c0_i32, %c0_i32_0, %c0_i32_1 : i32, i32, i32, i32
  }
  func.func @transform_8(%arg0: i32, %arg1: i32) -> (i32, i32, i32) {
    %c0_i32 = arith.constant 0 : i32
    %c0_i32_0 = arith.constant 0 : i32
    %c0_i32_1 = arith.constant 0 : i32
    return %arg1, %c0_i32, %c0_i32_0 : i32, i32, i32
  }
  func.func @transform_9(%arg0: i32, %arg1: i32) -> (i32, i32, i32) {
    %c0_i32 = arith.constant 0 : i32
    %c0_i32_0 = arith.constant 0 : i32
    %c0_i32_1 = arith.constant 0 : i32
    return %arg1, %c0_i32, %c0_i32_0 : i32, i32, i32
  }
  func.func @transform_10(%arg0: i32, %arg1: i32) -> (i32, i32, i32) {
    %c0_i32 = arith.constant 0 : i32
    %c0_i32_0 = arith.constant 0 : i32
    %c0_i32_1 = arith.constant 0 : i32
    return %arg1, %c0_i32, %c0_i32_0 : i32, i32, i32
  }
  func.func @transform_11(%arg0: i32, %arg1: i32) -> (i32, i32, i32) {
    %c0_i32 = arith.constant 0 : i32
    %c0_i32_0 = arith.constant 0 : i32
    %c0_i32_1 = arith.constant 0 : i32
    return %arg1, %c0_i32, %c0_i32_0 : i32, i32, i32
  }
  func.func @transform_12(%arg0: i32, %arg1: i32) -> (i32, i32, i32) {
    %c0_i32 = arith.constant 0 : i32
    %c0_i32_0 = arith.constant 0 : i32
    %c0_i32_1 = arith.constant 0 : i32
    return %arg1, %c0_i32, %c0_i32_0 : i32, i32, i32
  }
  func.func @transform_13(%arg0: i32, %arg1: i32) -> (i32, i32, i32) {
    %c0_i32 = arith.constant 0 : i32
    %c0_i32_0 = arith.constant 0 : i32
    %c0_i32_1 = arith.constant 0 : i32
    return %arg1, %c0_i32, %c0_i32_0 : i32, i32, i32
  }
  func.func @transform_14(%arg0: i32, %arg1: i32) -> (i32, i32, i32) {
    %c0_i32 = arith.constant 0 : i32
    %c0_i32_0 = arith.constant 0 : i32
    %c0_i32_1 = arith.constant 0 : i32
    return %arg1, %c0_i32, %c0_i32_0 : i32, i32, i32
  }
  func.func @transform_15(%arg0: i32, %arg1: i32) -> (i32, i32) {
    %c0_i32 = arith.constant 0 : i32
    %c0_i32_0 = arith.constant 0 : i32
    %c0_i32_1 = arith.constant 0 : i32
    return %c0_i32, %c0_i32_0 : i32, i32
  }
  func.func @transform_16(%arg0: i32, %arg1: i32) -> (i32, i32) {
    %c0_i32 = arith.constant 0 : i32
    %c0_i32_0 = arith.constant 0 : i32
    %c0_i32_1 = arith.constant 0 : i32
    return %c0_i32, %c0_i32_0 : i32, i32
  }
  func.func @transform_17(%arg0: i32, %arg1: i32) -> (i32, i32) {
    %c0_i32 = arith.constant 0 : i32
    %c0_i32_0 = arith.constant 0 : i32
    %c0_i32_1 = arith.constant 0 : i32
    return %c0_i32, %c0_i32_0 : i32, i32
  }
  func.func @transform_18(%arg0: i32, %arg1: i32) -> (i32, i32) {
    %c0_i32 = arith.constant 0 : i32
    %c0_i32_0 = arith.constant 0 : i32
    %c0_i32_1 = arith.constant 0 : i32
    return %c0_i32, %c0_i32_0 : i32, i32
  }
  func.func @transform_19(%arg0: i32, %arg1: i32) -> (i32, i32, i32) {
    %c0_i32 = arith.constant 0 : i32
    %c0_i32_0 = arith.constant 0 : i32
    %c0_i32_1 = arith.constant 0 : i32
    return %arg0, %c0_i32, %c0_i32_0 : i32, i32, i32
  }
}

</mosaic_0001>

<llo_original>
// kernel: local_local_transformer3d.1
$region0: #{local_local_transformer3d.1}
  #allocation0 [shape = 'u32[]', space=smem, size = 0x4, offset = 0x4, fixed_abs, tag = 'smem constant byte address 0x4 - core index']
  #allocation1 [shape = 'u32[144,128]{1,0:T(1,128)}', space=vmem, size = 0x12000, scoped, tag = 'internal scratch']
  #allocation2 [shape = 'f32[2,64,128]{2,1,0:T(8,128)}', space=vmem, size = 0x10000, scoped, tag = 'scratch operand']
  #allocation3 [shape = 'f32[1,1]{1,0:T(1,128)S(1)}', space=vmem, size = 0x200, scoped, tag = 'scoped memory for local_local_transformer3d.1']
  %s0 = inlined_call_operand.vmem [shape: f32[4,64,64], index: 0, kind: input, shape index: {}]
  %s1 = inlined_call_operand.vmem [shape: bf16[64,128], index: 1, kind: input, shape index: {}]
  %s2 = inlined_call_operand.vmem [shape: f32[1,128], index: 2, kind: input, shape index: {}]
  %s3 = inlined_call_operand.vmem [shape: f32[64,128], index: 3, kind: input, shape index: {}]
  %s4 = inlined_call_operand.vmem [shape: f32[2,1,128], index: 4, kind: input, shape index: {}]
  %s5 = inlined_call_operand.vmem [shape: f32[2,1,128], index: 5, kind: input, shape index: {}]
  %s6 = inlined_call_operand.vmem [shape: bf16[2,384,128], index: 6, kind: input, shape index: {}]
  %s7 = inlined_call_operand.vmem [shape: bf16[2,2,64,128], index: 7, kind: input, shape index: {}]
  %s8 = inlined_call_operand.vmem [shape: f32[2,1,128], index: 8, kind: input, shape index: {}]
  %s9 = inlined_call_operand.vmem [shape: f32[2,1,128], index: 9, kind: input, shape index: {}]
  %s10 = inlined_call_operand.vmem [shape: f32[2,1,128], index: 10, kind: input, shape index: {}]
  %s11 = inlined_call_operand.vmem [shape: bf16[2,128,256], index: 11, kind: input, shape index: {}]
  %s12 = inlined_call_operand.vmem [shape: f32[2,1,256], index: 12, kind: input, shape index: {}]
  %s13 = inlined_call_operand.vmem [shape: bf16[2,256,128], index: 13, kind: input, shape index: {}]
  %s14 = inlined_call_operand.vmem [shape: f32[2,1,128], index: 14, kind: input, shape index: {}]
  %s15 = inlined_call_operand.vmem [shape: f32[1,128], index: 15, kind: input, shape index: {}]
  %s16 = inlined_call_operand.vmem [shape: f32[1,128], index: 16, kind: input, shape index: {}]
  %s17 = inlined_call_operand.vmem [shape: f32[128,1], index: 17, kind: input, shape index: {}]
  %s18 = inlined_call_operand.<no memory space> [shape: f32[1,1], index: 18, kind: input, shape index: {}]
  %s19 = inlined_call_operand.vmem [shape: f32[4,1,1], index: 19, kind: output, shape index: {}]
  %s20 = sld [smem:[#allocation0]]
  $region117: #{local_local_transformer3d.1} parent=0
    _
  %s22 = ssub.s32 1, %s20
  %s23 = scalar_select 0, %s22, %s20
  %v24 = vstv %s18
  %25 = vst [vmem:[#allocation3] sm:$0x1] %v24
  loop: start=0, step=1, limit=6
  $region2: #{local_local_transformer3d.1} parent=0 // loop_pre_header
    _
  $region3: #{local_local_transformer3d.1} parent=0 // loop_header
    %s27 = sphi 0, %s31
    %p28 = scmp.ge.s32.totalorder %s27, 6
    %s34 = sphi 0, %s46
    %s35 = sphi 0, %s42
    %s36 = sphi 0, %s34
    %s37 = sphi 0, %s35
    %s38 = sphi 0, %s36
    %s39 = sphi 0, %s37
    %s49 = sphi 0, %s51
    %s52 = sphi 0, %s49
    %s53 = sphi 0, %s52
    %s69 = sphi 0, %s53
    %s73 = sphi 0, %s73
    %s75 = sphi 0, %s73
    %s76 = sphi 0, %s75
    %s90 = sphi 0, %s76
    %s94 = sphi 0, %s94
    %s96 = sphi 0, %s94
    %s97 = sphi 0, %s96
    %s111 = sphi 0, %s97
    %s115 = sphi 0, %s115
    %s117 = sphi 0, %s115
    %s118 = sphi 0, %s117
    %s132 = sphi 0, %s118
    %s138 = sphi 0, %s140
    %s141 = sphi 0, %s138
    %s142 = sphi 0, %s141
    %s158 = sphi 0, %s142
    %s164 = sphi 0, %s166
    %s167 = sphi 0, %s164
    %s168 = sphi 0, %s167
    %s184 = sphi 0, %s168
    %s190 = sphi 0, %s192
    %s193 = sphi 0, %s190
    %s194 = sphi 0, %s193
    %s210 = sphi 0, %s194
    %s216 = sphi 0, %s218
    %s219 = sphi 0, %s216
    %s220 = sphi 0, %s219
    %s236 = sphi 0, %s220
    %s242 = sphi 0, %s244
    %s245 = sphi 0, %s242
    %s246 = sphi 0, %s245
    %s262 = sphi 0, %s246
    %s268 = sphi 0, %s270
    %s271 = sphi 0, %s268
    %s272 = sphi 0, %s271
    %s288 = sphi 0, %s272
    %s294 = sphi 0, %s296
    %s297 = sphi 0, %s294
    %s298 = sphi 0, %s297
    %s314 = sphi 0, %s298
    %s320 = sphi 0, %s322
    %s323 = sphi 0, %s320
    %s324 = sphi 0, %s323
    %s340 = sphi 0, %s324
    %s346 = sphi 0, %s348
    %s349 = sphi 0, %s346
    %s350 = sphi 0, %s349
    %s366 = sphi 0, %s350
    %s372 = sphi 0, %s374
    %s375 = sphi 0, %s372
    %s376 = sphi 0, %s375
    %s392 = sphi 0, %s376
    %s398 = sphi 0, %s400
    %s401 = sphi 0, %s398
    %s402 = sphi 0, %s401
    %s418 = sphi 0, %s402
    %s422 = sphi 0, %s422
    %s424 = sphi 0, %s422
    %s425 = sphi 0, %s424
    %s439 = sphi 0, %s425
    %s443 = sphi 0, %s443
    %s445 = sphi 0, %s443
    %s446 = sphi 0, %s445
    %s460 = sphi 0, %s446
    %s464 = sphi 0, %s464
    %s466 = sphi 0, %s464
    %s467 = sphi 0, %s466
    %s481 = sphi 0, %s467
    %s485 = sphi 0, %s485
    %s487 = sphi 0, %s485
    %s488 = sphi 0, %s487
    %s502 = sphi 0, %s488
    %s508 = sphi 0, %s510
    %s511 = sphi 0, %s508
    %s512 = sphi 0, %s511
    %s528 = sphi 0, %s512
  $region4: #{local_local_transformer3d.1} parent=0 // loop_header_branch
    %30 = sbr.rel (%p28) target = $region8
  $region5: #{local_local_transformer3d.1} parent=0 // loop_body
    %s32 = ssub.s32 %s27, 1
    %s33 = ssub.s32 %s27, 2
    %s40 = sadd.s32 1, %s35
    %p41 = scmp.ge.s32.totalorder %s40, 2
    %s42 = scalar_select %p41, 0, %s40
    %s43 = sadd.s32 1, %s34
    %s44 = scalar_select %p41, %s43, %s34
    %p45 = scmp.ge.s32.totalorder %s44, 2
    %s46 = scalar_select %p45, 0, %s44
    %s47 = ssub.s32 %s34, %s46
    %p48 = scmp.eq.s32.totalorder %s47, 0
    %s50 = sadd.s32 %s49, 1
    %s51 = scalar_select %p48, %s49, %s50
    %p54 = pneg %p48
    %p55 = scmp.eq.s32.totalorder %s27, 3
    %p56 = por %p54, %p55
    %p57 = scmp.ne.s32.totalorder %s49, %s52
    %p58 = scmp.eq.s32.totalorder %s27, 0
    %p59 = por %p57, %p58
    %p60 = scmp.ne.s32.totalorder %s49, %s52
    %p61 = scmp.eq.s32.totalorder %s32, 3
    %p62 = por %p60, %p61
    %p63 = scmp.ne.s32.totalorder %s52, %s53
    %p64 = scmp.eq.s32.totalorder %s32, 0
    %p65 = por %p63, %p64
    %p66 = scmp.ne.s32.totalorder %s52, %s53
    %p67 = scmp.eq.s32.totalorder %s33, 3
    %p68 = por %p66, %p67
    %p70 = scmp.ne.s32.totalorder %s53, %s69
    %p71 = scmp.eq.s32.totalorder %s33, 0
    %p72 = por %p70, %p71
    %s74 = sadd.s32 %s73, 1
    %p77 = scmp.eq.s32.totalorder %s27, 3
    %p78 = scmp.ne.s32.totalorder %s73, %s75
    %p79 = scmp.eq.s32.totalorder %s27, 0
    %p80 = por %p78, %p79
    %p81 = scmp.ne.s32.totalorder %s73, %s75
    %p82 = scmp.eq.s32.totalorder %s32, 3
    %p83 = por %p81, %p82
    %p84 = scmp.ne.s32.totalorder %s75, %s76
    %p85 = scmp.eq.s32.totalorder %s32, 0
    %p86 = por %p84, %p85
    %p87 = scmp.ne.s32.totalorder %s75, %s76
    %p88 = scmp.eq.s32.totalorder %s33, 3
    %p89 = por %p87, %p88
    %p91 = scmp.ne.s32.totalorder %s76, %s90
    %p92 = scmp.eq.s32.totalorder %s33, 0
    %p93 = por %p91, %p92
    %s95 = sadd.s32 %s94, 1
    %p98 = scmp.eq.s32.totalorder %s27, 3
    %p99 = scmp.ne.s32.totalorder %s94, %s96
    %p100 = scmp.eq.s32.totalorder %s27, 0
    %p101 = por %p99, %p100
    %p102 = scmp.ne.s32.totalorder %s94, %s96
    %p103 = scmp.eq.s32.totalorder %s32, 3
    %p104 = por %p102, %p103
    %p105 = scmp.ne.s32.totalorder %s96, %s97
    %p106 = scmp.eq.s32.totalorder %s32, 0
    %p107 = por %p105, %p106
    %p108 = scmp.ne.s32.totalorder %s96, %s97
    %p109 = scmp.eq.s32.totalorder %s33, 3
    %p110 = por %p108, %p109
    %p112 = scmp.ne.s32.totalorder %s97, %s111
    %p113 = scmp.eq.s32.totalorder %s33, 0
    %p114 = por %p112, %p113
    %s116 = sadd.s32 %s115, 1
    %p119 = scmp.eq.s32.totalorder %s27, 3
    %p120 = scmp.ne.s32.totalorder %s115, %s117
    %p121 = scmp.eq.s32.totalorder %s27, 0
    %p122 = por %p120, %p121
    %p123 = scmp.ne.s32.totalorder %s115, %s117
    %p124 = scmp.eq.s32.totalorder %s32, 3
    %p125 = por %p123, %p124
    %p126 = scmp.ne.s32.totalorder %s117, %s118
    %p127 = scmp.eq.s32.totalorder %s32, 0
    %p128 = por %p126, %p127
    %p129 = scmp.ne.s32.totalorder %s117, %s118
    %p130 = scmp.eq.s32.totalorder %s33, 3
    %p131 = por %p129, %p130
    %p133 = scmp.ne.s32.totalorder %s118, %s132
    %p134 = scmp.eq.s32.totalorder %s33, 0
    %p135 = por %p133, %p134
    %s136 = ssub.s32 %s35, %s42
    %p137 = scmp.eq.s32.totalorder %s136, 0
    %s139 = sadd.s32 %s138, 1
    %s140 = scalar_select %p137, %s138, %s139
    %p143 = pneg %p137
    %p144 = scmp.eq.s32.totalorder %s27, 3
    %p145 = por %p143, %p144
    %p146 = scmp.ne.s32.totalorder %s138, %s141
    %p147 = scmp.eq.s32.totalorder %s27, 0
    %p148 = por %p146, %p147
    %p149 = scmp.ne.s32.totalorder %s138, %s141
    %p150 = scmp.eq.s32.totalorder %s32, 3
    %p151 = por %p149, %p150
    %p152 = scmp.ne.s32.totalorder %s141, %s142
    %p153 = scmp.eq.s32.totalorder %s32, 0
    %p154 = por %p152, %p153
    %p155 = scmp.ne.s32.totalorder %s141, %s142
    %p156 = scmp.eq.s32.totalorder %s33, 3
    %p157 = por %p155, %p156
    %p159 = scmp.ne.s32.totalorder %s142, %s158
    %p160 = scmp.eq.s32.totalorder %s33, 0
    %p161 = por %p159, %p160
    %s162 = ssub.s32 %s35, %s42
    %p163 = scmp.eq.s32.totalorder %s162, 0
    %s165 = sadd.s32 %s164, 1
    %s166 = scalar_select %p163, %s164, %s165
    %p169 = pneg %p163
    %p170 = scmp.eq.s32.totalorder %s27, 3
    %p171 = por %p169, %p170
    %p172 = scmp.ne.s32.totalorder %s164, %s167
    %p173 = scmp.eq.s32.totalorder %s27, 0
    %p174 = por %p172, %p173
    %p175 = scmp.ne.s32.totalorder %s164, %s167
    %p176 = scmp.eq.s32.totalorder %s32, 3
    %p177 = por %p175, %p176
    %p178 = scmp.ne.s32.totalorder %s167, %s168
    %p179 = scmp.eq.s32.totalorder %s32, 0
    %p180 = por %p178, %p179
    %p181 = scmp.ne.s32.totalorder %s167, %s168
    %p182 = scmp.eq.s32.totalorder %s33, 3
    %p183 = por %p181, %p182
    %p185 = scmp.ne.s32.totalorder %s168, %s184
    %p186 = scmp.eq.s32.totalorder %s33, 0
    %p187 = por %p185, %p186
    %s188 = ssub.s32 %s35, %s42
    %p189 = scmp.eq.s32.totalorder %s188, 0
    %s191 = sadd.s32 %s190, 1
    %s192 = scalar_select %p189, %s190, %s191
    %p195 = pneg %p189
    %p196 = scmp.eq.s32.totalorder %s27, 3
    %p197 = por %p195, %p196
    %p198 = scmp.ne.s32.totalorder %s190, %s193
    %p199 = scmp.eq.s32.totalorder %s27, 0
    %p200 = por %p198, %p199
    %p201 = scmp.ne.s32.totalorder %s190, %s193
    %p202 = scmp.eq.s32.totalorder %s32, 3
    %p203 = por %p201, %p202
    %p204 = scmp.ne.s32.totalorder %s193, %s194
    %p205 = scmp.eq.s32.totalorder %s32, 0
    %p206 = por %p204, %p205
    %p207 = scmp.ne.s32.totalorder %s193, %s194
    %p208 = scmp.eq.s32.totalorder %s33, 3
    %p209 = por %p207, %p208
    %p211 = scmp.ne.s32.totalorder %s194, %s210
    %p212 = scmp.eq.s32.totalorder %s33, 0
    %p213 = por %p211, %p212
    %s214 = ssub.s32 %s35, %s42
    %p215 = scmp.eq.s32.totalorder %s214, 0
    %s217 = sadd.s32 %s216, 1
    %s218 = scalar_select %p215, %s216, %s217
    %p221 = pneg %p215
    %p222 = scmp.eq.s32.totalorder %s27, 3
    %p223 = por %p221, %p222
    %p224 = scmp.ne.s32.totalorder %s216, %s219
    %p225 = scmp.eq.s32.totalorder %s27, 0
    %p226 = por %p224, %p225
    %p227 = scmp.ne.s32.totalorder %s216, %s219
    %p228 = scmp.eq.s32.totalorder %s32, 3
    %p229 = por %p227, %p228
    %p230 = scmp.ne.s32.totalorder %s219, %s220
    %p231 = scmp.eq.s32.totalorder %s32, 0
    %p232 = por %p230, %p231
    %p233 = scmp.ne.s32.totalorder %s219, %s220
    %p234 = scmp.eq.s32.totalorder %s33, 3
    %p235 = por %p233, %p234
    %p237 = scmp.ne.s32.totalorder %s220, %s236
    %p238 = scmp.eq.s32.totalorder %s33, 0
    %p239 = por %p237, %p238
    %s240 = ssub.s32 %s35, %s42
    %p241 = scmp.eq.s32.totalorder %s240, 0
    %s243 = sadd.s32 %s242, 1
    %s244 = scalar_select %p241, %s242, %s243
    %p247 = pneg %p241
    %p248 = scmp.eq.s32.totalorder %s27, 3
    %p249 = por %p247, %p248
    %p250 = scmp.ne.s32.totalorder %s242, %s245
    %p251 = scmp.eq.s32.totalorder %s27, 0
    %p252 = por %p250, %p251
    %p253 = scmp.ne.s32.totalorder %s242, %s245
    %p254 = scmp.eq.s32.totalorder %s32, 3
    %p255 = por %p253, %p254
    %p256 = scmp.ne.s32.totalorder %s245, %s246
    %p257 = scmp.eq.s32.totalorder %s32, 0
    %p258 = por %p256, %p257
    %p259 = scmp.ne.s32.totalorder %s245, %s246
    %p260 = scmp.eq.s32.totalorder %s33, 3
    %p261 = por %p259, %p260
    %p263 = scmp.ne.s32.totalorder %s246, %s262
    %p264 = scmp.eq.s32.totalorder %s33, 0
    %p265 = por %p263, %p264
    %s266 = ssub.s32 %s35, %s42
    %p267 = scmp.eq.s32.totalorder %s266, 0
    %s269 = sadd.s32 %s268, 1
    %s270 = scalar_select %p267, %s268, %s269
    %p273 = pneg %p267
    %p274 = scmp.eq.s32.totalorder %s27, 3
    %p275 = por %p273, %p274
    %p276 = scmp.ne.s32.totalorder %s268, %s271
    %p277 = scmp.eq.s32.totalorder %s27, 0
    %p278 = por %p276, %p277
    %p279 = scmp.ne.s32.totalorder %s268, %s271
    %p280 = scmp.eq.s32.totalorder %s32, 3
    %p281 = por %p279, %p280
    %p282 = scmp.ne.s32.totalorder %s271, %s272
    %p283 = scmp.eq.s32.totalorder %s32, 0
    %p284 = por %p282, %p283
    %p285 = scmp.ne.s32.totalorder %s271, %s272
    %p286 = scmp.eq.s32.totalorder %s33, 3
    %p287 = por %p285, %p286
    %p289 = scmp.ne.s32.totalorder %s272, %s288
    %p290 = scmp.eq.s32.totalorder %s33, 0
    %p291 = por %p289, %p290
    %s292 = ssub.s32 %s35, %s42
    %p293 = scmp.eq.s32.totalorder %s292, 0
    %s295 = sadd.s32 %s294, 1
    %s296 = scalar_select %p293, %s294, %s295
    %p299 = pneg %p293
    %p300 = scmp.eq.s32.totalorder %s27, 3
    %p301 = por %p299, %p300
    %p302 = scmp.ne.s32.totalorder %s294, %s297
    %p303 = scmp.eq.s32.totalorder %s27, 0
    %p304 = por %p302, %p303
    %p305 = scmp.ne.s32.totalorder %s294, %s297
    %p306 = scmp.eq.s32.totalorder %s32, 3
    %p307 = por %p305, %p306
    %p308 = scmp.ne.s32.totalorder %s297, %s298
    %p309 = scmp.eq.s32.totalorder %s32, 0
    %p310 = por %p308, %p309
    %p311 = scmp.ne.s32.totalorder %s297, %s298
    %p312 = scmp.eq.s32.totalorder %s33, 3
    %p313 = por %p311, %p312
    %p315 = scmp.ne.s32.totalorder %s298, %s314
    %p316 = scmp.eq.s32.totalorder %s33, 0
    %p317 = por %p315, %p316
    %s318 = ssub.s32 %s35, %s42
    %p319 = scmp.eq.s32.totalorder %s318, 0
    %s321 = sadd.s32 %s320, 1
    %s322 = scalar_select %p319, %s320, %s321
    %p325 = pneg %p319
    %p326 = scmp.eq.s32.totalorder %s27, 3
    %p327 = por %p325, %p326
    %p328 = scmp.ne.s32.totalorder %s320, %s323
    %p329 = scmp.eq.s32.totalorder %s27, 0
    %p330 = por %p328, %p329
    %p331 = scmp.ne.s32.totalorder %s320, %s323
    %p332 = scmp.eq.s32.totalorder %s32, 3
    %p333 = por %p331, %p332
    %p334 = scmp.ne.s32.totalorder %s323, %s324
    %p335 = scmp.eq.s32.totalorder %s32, 0
    %p336 = por %p334, %p335
    %p337 = scmp.ne.s32.totalorder %s323, %s324
    %p338 = scmp.eq.s32.totalorder %s33, 3
    %p339 = por %p337, %p338
    %p341 = scmp.ne.s32.totalorder %s324, %s340
    %p342 = scmp.eq.s32.totalorder %s33, 0
    %p343 = por %p341, %p342
    %s344 = ssub.s32 %s35, %s42
    %p345 = scmp.eq.s32.totalorder %s344, 0
    %s347 = sadd.s32 %s346, 1
    %s348 = scalar_select %p345, %s346, %s347
    %p351 = pneg %p345
    %p352 = scmp.eq.s32.totalorder %s27, 3
    %p353 = por %p351, %p352
    %p354 = scmp.ne.s32.totalorder %s346, %s349
    %p355 = scmp.eq.s32.totalorder %s27, 0
    %p356 = por %p354, %p355
    %p357 = scmp.ne.s32.totalorder %s346, %s349
    %p358 = scmp.eq.s32.totalorder %s32, 3
    %p359 = por %p357, %p358
    %p360 = scmp.ne.s32.totalorder %s349, %s350
    %p361 = scmp.eq.s32.totalorder %s32, 0
    %p362 = por %p360, %p361
    %p363 = scmp.ne.s32.totalorder %s349, %s350
    %p364 = scmp.eq.s32.totalorder %s33, 3
    %p365 = por %p363, %p364
    %p367 = scmp.ne.s32.totalorder %s350, %s366
    %p368 = scmp.eq.s32.totalorder %s33, 0
    %p369 = por %p367, %p368
    %s370 = ssub.s32 %s35, %s42
    %p371 = scmp.eq.s32.totalorder %s370, 0
    %s373 = sadd.s32 %s372, 1
    %s374 = scalar_select %p371, %s372, %s373
    %p377 = pneg %p371
    %p378 = scmp.eq.s32.totalorder %s27, 3
    %p379 = por %p377, %p378
    %p380 = scmp.ne.s32.totalorder %s372, %s375
    %p381 = scmp.eq.s32.totalorder %s27, 0
    %p382 = por %p380, %p381
    %p383 = scmp.ne.s32.totalorder %s372, %s375
    %p384 = scmp.eq.s32.totalorder %s32, 3
    %p385 = por %p383, %p384
    %p386 = scmp.ne.s32.totalorder %s375, %s376
    %p387 = scmp.eq.s32.totalorder %s32, 0
    %p388 = por %p386, %p387
    %p389 = scmp.ne.s32.totalorder %s375, %s376
    %p390 = scmp.eq.s32.totalorder %s33, 3
    %p391 = por %p389, %p390
    %p393 = scmp.ne.s32.totalorder %s376, %s392
    %p394 = scmp.eq.s32.totalorder %s33, 0
    %p395 = por %p393, %p394
    %s396 = ssub.s32 %s35, %s42
    %p397 = scmp.eq.s32.totalorder %s396, 0
    %s399 = sadd.s32 %s398, 1
    %s400 = scalar_select %p397, %s398, %s399
    %p403 = pneg %p397
    %p404 = scmp.eq.s32.totalorder %s27, 3
    %p405 = por %p403, %p404
    %p406 = scmp.ne.s32.totalorder %s398, %s401
    %p407 = scmp.eq.s32.totalorder %s27, 0
    %p408 = por %p406, %p407
    %p409 = scmp.ne.s32.totalorder %s398, %s401
    %p410 = scmp.eq.s32.totalorder %s32, 3
    %p411 = por %p409, %p410
    %p412 = scmp.ne.s32.totalorder %s401, %s402
    %p413 = scmp.eq.s32.totalorder %s32, 0
    %p414 = por %p412, %p413
    %p415 = scmp.ne.s32.totalorder %s401, %s402
    %p416 = scmp.eq.s32.totalorder %s33, 3
    %p417 = por %p415, %p416
    %p419 = scmp.ne.s32.totalorder %s402, %s418
    %p420 = scmp.eq.s32.totalorder %s33, 0
    %p421 = por %p419, %p420
    %s423 = sadd.s32 %s422, 1
    %p426 = scmp.eq.s32.totalorder %s27, 3
    %p427 = scmp.ne.s32.totalorder %s422, %s424
    %p428 = scmp.eq.s32.totalorder %s27, 0
    %p429 = por %p427, %p428
    %p430 = scmp.ne.s32.totalorder %s422, %s424
    %p431 = scmp.eq.s32.totalorder %s32, 3
    %p432 = por %p430, %p431
    %p433 = scmp.ne.s32.totalorder %s424, %s425
    %p434 = scmp.eq.s32.totalorder %s32, 0
    %p435 = por %p433, %p434
    %p436 = scmp.ne.s32.totalorder %s424, %s425
    %p437 = scmp.eq.s32.totalorder %s33, 3
    %p438 = por %p436, %p437
    %p440 = scmp.ne.s32.totalorder %s425, %s439
    %p441 = scmp.eq.s32.totalorder %s33, 0
    %p442 = por %p440, %p441
    %s444 = sadd.s32 %s443, 1
    %p447 = scmp.eq.s32.totalorder %s27, 3
    %p448 = scmp.ne.s32.totalorder %s443, %s445
    %p449 = scmp.eq.s32.totalorder %s27, 0
    %p450 = por %p448, %p449
    %p451 = scmp.ne.s32.totalorder %s443, %s445
    %p452 = scmp.eq.s32.totalorder %s32, 3
    %p453 = por %p451, %p452
    %p454 = scmp.ne.s32.totalorder %s445, %s446
    %p455 = scmp.eq.s32.totalorder %s32, 0
    %p456 = por %p454, %p455
    %p457 = scmp.ne.s32.totalorder %s445, %s446
    %p458 = scmp.eq.s32.totalorder %s33, 3
    %p459 = por %p457, %p458
    %p461 = scmp.ne.s32.totalorder %s446, %s460
    %p462 = scmp.eq.s32.totalorder %s33, 0
    %p463 = por %p461, %p462
    %s465 = sadd.s32 %s464, 1
    %p468 = scmp.eq.s32.totalorder %s27, 3
    %p469 = scmp.ne.s32.totalorder %s464, %s466
    %p470 = scmp.eq.s32.totalorder %s27, 0
    %p471 = por %p469, %p470
    %p472 = scmp.ne.s32.totalorder %s464, %s466
    %p473 = scmp.eq.s32.totalorder %s32, 3
    %p474 = por %p472, %p473
    %p475 = scmp.ne.s32.totalorder %s466, %s467
    %p476 = scmp.eq.s32.totalorder %s32, 0
    %p477 = por %p475, %p476
    %p478 = scmp.ne.s32.totalorder %s466, %s467
    %p479 = scmp.eq.s32.totalorder %s33, 3
    %p480 = por %p478, %p479
    %p482 = scmp.ne.s32.totalorder %s467, %s481
    %p483 = scmp.eq.s32.totalorder %s33, 0
    %p484 = por %p482, %p483
    %s486 = sadd.s32 %s485, 1
    %p489 = scmp.eq.s32.totalorder %s27, 3
    %p490 = scmp.ne.s32.totalorder %s485, %s487
    %p491 = scmp.eq.s32.totalorder %s27, 0
    %p492 = por %p490, %p491
    %p493 = scmp.ne.s32.totalorder %s485, %s487
    %p494 = scmp.eq.s32.totalorder %s32, 3
    %p495 = por %p493, %p494
    %p496 = scmp.ne.s32.totalorder %s487, %s488
    %p497 = scmp.eq.s32.totalorder %s32, 0
    %p498 = por %p496, %p497
    %p499 = scmp.ne.s32.totalorder %s487, %s488
    %p500 = scmp.eq.s32.totalorder %s33, 3
    %p501 = por %p499, %p500
    %p503 = scmp.ne.s32.totalorder %s488, %s502
    %p504 = scmp.eq.s32.totalorder %s33, 0
    %p505 = por %p503, %p504
    %s506 = ssub.s32 %s34, %s46
    %p507 = scmp.eq.s32.totalorder %s506, 0
    %s509 = sadd.s32 %s508, 1
    %s510 = scalar_select %p507, %s508, %s509
    %p513 = pneg %p507
    %p514 = scmp.eq.s32.totalorder %s27, 3
    %p515 = por %p513, %p514
    %p516 = scmp.ne.s32.totalorder %s508, %s511
    %p517 = scmp.eq.s32.totalorder %s27, 0
    %p518 = por %p516, %p517
    %p519 = scmp.ne.s32.totalorder %s508, %s511
    %p520 = scmp.eq.s32.totalorder %s32, 3
    %p521 = por %p519, %p520
    %p522 = scmp.ne.s32.totalorder %s511, %s512
    %p523 = scmp.eq.s32.totalorder %s32, 0
    %p524 = por %p522, %p523
    %p525 = scmp.ne.s32.totalorder %s511, %s512
    %p526 = scmp.eq.s32.totalorder %s33, 3
    %p527 = por %p525, %p526
    %p529 = scmp.ne.s32.totalorder %s512, %s528
    %p530 = scmp.eq.s32.totalorder %s33, 0
    %p531 = por %p529, %p530
    %p532 = scmp.le.s32.totalorder 1, %s27
    %p533 = scmp.lt.s32.totalorder %s27, 5
    %p534 = pnand %p532, %p533
    %p535 = pneg %p534
    // Predicated region
    $region9: #{local_local_transformer3d.1} parent=5 // pred_check
      _
    $region10: #{local_local_transformer3d.1} parent=5 // pred_check_branch
      %537 = sbr.rel (%p534) target = $region12
    $region11: #{local_local_transformer3d.1} parent=5 // pred_region
      %s538 = ssub.s32 %s27, 1
      // Predicated region
      $region13: #{local_local_transformer3d.1} parent=11 // pred_check
        %p539 = pneg %p86
      $region14: #{local_local_transformer3d.1} parent=11 // pred_check_branch
        %541 = sbr.rel (%p539) target = $region16
      $region15: #{local_local_transformer3d.1} parent=11 // pred_region
        _
      $region16: #{local_local_transformer3d.1} parent=11 // pred_fallthru
        _
      // Predicated region
      $region17: #{local_local_transformer3d.1} parent=11 // pred_check
        %p542 = pneg %p107
      $region18: #{local_local_transformer3d.1} parent=11 // pred_check_branch
        %544 = sbr.rel (%p542) target = $region20
      $region19: #{local_local_transformer3d.1} parent=11 // pred_region
        _
      $region20: #{local_local_transformer3d.1} parent=11 // pred_fallthru
        _
      // Predicated region
      $region21: #{local_local_transformer3d.1} parent=11 // pred_check
        %p545 = pneg %p128
      $region22: #{local_local_transformer3d.1} parent=11 // pred_check_branch
        %547 = sbr.rel (%p545) target = $region24
      $region23: #{local_local_transformer3d.1} parent=11 // pred_region
        _
      $region24: #{local_local_transformer3d.1} parent=11 // pred_fallthru
        _
      // Predicated region
      $region25: #{local_local_transformer3d.1} parent=11 // pred_check
        %p548 = pneg %p435
      $region26: #{local_local_transformer3d.1} parent=11 // pred_check_branch
        %550 = sbr.rel (%p548) target = $region28
      $region27: #{local_local_transformer3d.1} parent=11 // pred_region
        _
      $region28: #{local_local_transformer3d.1} parent=11 // pred_fallthru
        _
      // Predicated region
      $region29: #{local_local_transformer3d.1} parent=11 // pred_check
        %p551 = pneg %p456
      $region30: #{local_local_transformer3d.1} parent=11 // pred_check_branch
        %553 = sbr.rel (%p551) target = $region32
      $region31: #{local_local_transformer3d.1} parent=11 // pred_region
        _
      $region32: #{local_local_transformer3d.1} parent=11 // pred_fallthru
        _
      // Predicated region
      $region33: #{local_local_transformer3d.1} parent=11 // pred_check
        %p554 = pneg %p477
      $region34: #{local_local_transformer3d.1} parent=11 // pred_check_branch
        %556 = sbr.rel (%p554) target = $region36
      $region35: #{local_local_transformer3d.1} parent=11 // pred_region
        _
      $region36: #{local_local_transformer3d.1} parent=11 // pred_fallthru
        _
      // Predicated region
      $region37: #{local_local_transformer3d.1} parent=11 // pred_check
        %p557 = pneg %p498
      $region38: #{local_local_transformer3d.1} parent=11 // pred_check_branch
        %559 = sbr.rel (%p557) target = $region40
      $region39: #{local_local_transformer3d.1} parent=11 // pred_region
        _
      $region40: #{local_local_transformer3d.1} parent=11 // pred_fallthru
        _
    $region12: #{local_local_transformer3d.1} parent=5 // pred_fallthru
      _
    %p560 = scmp.lt.s32.totalorder %s27, 4
    // Predicated region
    $region41: #{local_local_transformer3d.1} parent=5 // pred_check
      %p561 = pneg %p560
    $region42: #{local_local_transformer3d.1} parent=5 // pred_check_branch
      %563 = sbr.rel (%p561) target = $region44
    $region43: #{local_local_transformer3d.1} parent=5 // pred_region
      // Predicated region
      $region45: #{local_local_transformer3d.1} parent=43 // pred_check
        %p564 = pneg %p59
      $region46: #{local_local_transformer3d.1} parent=43 // pred_check_branch
        %566 = sbr.rel (%p564) target = $region48
      $region47: #{local_local_transformer3d.1} parent=43 // pred_region
        %s567 = smul.u32 2, %s34
        %p568 = scmp.lt.s32.totalorder %s567, 3
        %s569 = scalar_select %p568, %s567, 3
        %s570 = smul.addr %s569, 8
        %s571 = smul.addr %s570, 8
        %s572 = scalar_lea.vmem %s0, %s571
        %s573 = smul.u32 2, %s34
      $region48: #{local_local_transformer3d.1} parent=43 // pred_fallthru
        _
      // Predicated region
      $region49: #{local_local_transformer3d.1} parent=43 // pred_check
        %p574 = pneg %p148
      $region50: #{local_local_transformer3d.1} parent=43 // pred_check_branch
        %576 = sbr.rel (%p574) target = $region52
      $region51: #{local_local_transformer3d.1} parent=43 // pred_region
        %p577 = scmp.lt.s32.totalorder %s35, 1
        %s578 = scalar_select %p577, %s35, 1
        %s579 = scalar_lea.vmem %s4, %s578
      $region52: #{local_local_transformer3d.1} parent=43 // pred_fallthru
        _
      // Predicated region
      $region53: #{local_local_transformer3d.1} parent=43 // pred_check
        %p580 = pneg %p174
      $region54: #{local_local_transformer3d.1} parent=43 // pred_check_branch
        %582 = sbr.rel (%p580) target = $region56
      $region55: #{local_local_transformer3d.1} parent=43 // pred_region
        %p583 = scmp.lt.s32.totalorder %s35, 1
        %s584 = scalar_select %p583, %s35, 1
        %s585 = scalar_lea.vmem %s5, %s584
      $region56: #{local_local_transformer3d.1} parent=43 // pred_fallthru
        _
      // Predicated region
      $region57: #{local_local_transformer3d.1} parent=43 // pred_check
        %p586 = pneg %p200
      $region58: #{local_local_transformer3d.1} parent=43 // pred_check_branch
        %588 = sbr.rel (%p586) target = $region60
      $region59: #{local_local_transformer3d.1} parent=43 // pred_region
        %p589 = scmp.lt.s32.totalorder %s35, 1
        %s590 = scalar_select %p589, %s35, 1
        %s591 = smul.addr %s590, 48
        %s592 = smul.addr %s591, 4
        %s593 = scalar_lea.vmem %s6, %s592
      $region60: #{local_local_transformer3d.1} parent=43 // pred_fallthru
        _
      // Predicated region
      $region61: #{local_local_transformer3d.1} parent=43 // pred_check
        %p594 = pneg %p226
      $region62: #{local_local_transformer3d.1} parent=43 // pred_check_branch
        %596 = sbr.rel (%p594) target = $region64
      $region63: #{local_local_transformer3d.1} parent=43 // pred_region
        %p597 = scmp.lt.s32.totalorder %s35, 1
        %s598 = scalar_select %p597, %s35, 1
        %s599 = smul.addr %s598, 16
        %s600 = smul.addr %s599, 4
        %s601 = scalar_lea.vmem %s7, %s600
      $region64: #{local_local_transformer3d.1} parent=43 // pred_fallthru
        _
      // Predicated region
      $region65: #{local_local_transformer3d.1} parent=43 // pred_check
        %p602 = pneg %p252
      $region66: #{local_local_transformer3d.1} parent=43 // pred_check_branch
        %604 = sbr.rel (%p602) target = $region68
      $region67: #{local_local_transformer3d.1} parent=43 // pred_region
        %p605 = scmp.lt.s32.totalorder %s35, 1
        %s606 = scalar_select %p605, %s35, 1
        %s607 = scalar_lea.vmem %s8, %s606
      $region68: #{local_local_transformer3d.1} parent=43 // pred_fallthru
        _
      // Predicated region
      $region69: #{local_local_transformer3d.1} parent=43 // pred_check
        %p608 = pneg %p278
      $region70: #{local_local_transformer3d.1} parent=43 // pred_check_branch
        %610 = sbr.rel (%p608) target = $region72
      $region71: #{local_local_transformer3d.1} parent=43 // pred_region
        %p611 = scmp.lt.s32.totalorder %s35, 1
        %s612 = scalar_select %p611, %s35, 1
        %s613 = scalar_lea.vmem %s9, %s612
      $region72: #{local_local_transformer3d.1} parent=43 // pred_fallthru
        _
      // Predicated region
      $region73: #{local_local_transformer3d.1} parent=43 // pred_check
        %p614 = pneg %p304
      $region74: #{local_local_transformer3d.1} parent=43 // pred_check_branch
        %616 = sbr.rel (%p614) target = $region76
      $region75: #{local_local_transformer3d.1} parent=43 // pred_region
        %p617 = scmp.lt.s32.totalorder %s35, 1
        %s618 = scalar_select %p617, %s35, 1
        %s619 = scalar_lea.vmem %s10, %s618
      $region76: #{local_local_transformer3d.1} parent=43 // pred_fallthru
        _
      // Predicated region
      $region77: #{local_local_transformer3d.1} parent=43 // pred_check
        %p620 = pneg %p330
      $region78: #{local_local_transformer3d.1} parent=43 // pred_check_branch
        %622 = sbr.rel (%p620) target = $region80
      $region79: #{local_local_transformer3d.1} parent=43 // pred_region
        %p623 = scmp.lt.s32.totalorder %s35, 1
        %s624 = scalar_select %p623, %s35, 1
        %s625 = smul.addr %s624, 32
        %s626 = smul.addr %s625, 4
        %s627 = scalar_lea.vmem %s11, %s626
      $region80: #{local_local_transformer3d.1} parent=43 // pred_fallthru
        _
      // Predicated region
      $region81: #{local_local_transformer3d.1} parent=43 // pred_check
        %p628 = pneg %p356
      $region82: #{local_local_transformer3d.1} parent=43 // pred_check_branch
        %630 = sbr.rel (%p628) target = $region84
      $region83: #{local_local_transformer3d.1} parent=43 // pred_region
        %p631 = scmp.lt.s32.totalorder %s35, 1
        %s632 = scalar_select %p631, %s35, 1
        %s633 = smul.addr %s632, 2
        %s634 = scalar_lea.vmem %s12, %s633
      $region84: #{local_local_transformer3d.1} parent=43 // pred_fallthru
        _
      // Predicated region
      $region85: #{local_local_transformer3d.1} parent=43 // pred_check
        %p635 = pneg %p382
      $region86: #{local_local_transformer3d.1} parent=43 // pred_check_branch
        %637 = sbr.rel (%p635) target = $region88
      $region87: #{local_local_transformer3d.1} parent=43 // pred_region
        %p638 = scmp.lt.s32.totalorder %s35, 1
        %s639 = scalar_select %p638, %s35, 1
        %s640 = smul.addr %s639, 32
        %s641 = smul.addr %s640, 4
        %s642 = scalar_lea.vmem %s13, %s641
      $region88: #{local_local_transformer3d.1} parent=43 // pred_fallthru
        _
      // Predicated region
      $region89: #{local_local_transformer3d.1} parent=43 // pred_check
        %p643 = pneg %p408
      $region90: #{local_local_transformer3d.1} parent=43 // pred_check_branch
        %645 = sbr.rel (%p643) target = $region92
      $region91: #{local_local_transformer3d.1} parent=43 // pred_region
        %p646 = scmp.lt.s32.totalorder %s35, 1
        %s647 = scalar_select %p646, %s35, 1
        %s648 = scalar_lea.vmem %s14, %s647
      $region92: #{local_local_transformer3d.1} parent=43 // pred_fallthru
        _
    $region44: #{local_local_transformer3d.1} parent=5 // pred_fallthru
      _
    %p649 = scmp.le.s32.totalorder 1, %s27
    %p650 = scmp.lt.s32.totalorder %s27, 5
    %p651 = pnand %p649, %p650
    %p652 = pneg %p651
    // Predicated region
    $region93: #{local_local_transformer3d.1} parent=5 // pred_check
      _
    $region94: #{local_local_transformer3d.1} parent=5 // pred_check_branch
      %654 = sbr.rel (%p651) target = $region96
    $region95: #{local_local_transformer3d.1} parent=5 // pred_region
      %s655 = ssub.s32 %s27, 1
      %s656 = smul.u32 2, %s36
      %p657 = scmp.lt.s32.totalorder %s656, 3
      %s658 = scalar_select %p657, %s656, 3
      %s659 = smul.addr %s658, 8
      %s660 = smul.addr %s659, 8
      %s661 = scalar_lea.vmem %s0, %s660
      %p662 = pneg %p65
      %p663 = pneg %p62
      %p664 = pneg %p86
      %p665 = pneg %p83
      %p666 = pneg %p107
      %p667 = pneg %p104
      %p668 = pneg %p128
      %p669 = pneg %p125
      %p670 = scmp.lt.s32.totalorder %s37, 1
      %s671 = scalar_select %p670, %s37, 1
      %s672 = scalar_lea.vmem %s4, %s671
      %p673 = pneg %p154
      %p674 = pneg %p151
      %p675 = scmp.lt.s32.totalorder %s37, 1
      %s676 = scalar_select %p675, %s37, 1
      %s677 = scalar_lea.vmem %s5, %s676
      %p678 = pneg %p180
      %p679 = pneg %p177
      %p680 = scmp.lt.s32.totalorder %s37, 1
      %s681 = scalar_select %p680, %s37, 1
      %s682 = smul.addr %s681, 48
      %s683 = smul.addr %s682, 4
      %s684 = scalar_lea.vmem %s6, %s683
      %p685 = pneg %p206
      %p686 = pneg %p203
      %p687 = scmp.lt.s32.totalorder %s37, 1
      %s688 = scalar_select %p687, %s37, 1
      %s689 = smul.addr %s688, 16
      %s690 = smul.addr %s689, 4
      %s691 = scalar_lea.vmem %s7, %s690
      %p692 = pneg %p232
      %p693 = pneg %p229
      %p694 = scmp.lt.s32.totalorder %s37, 1
      %s695 = scalar_select %p694, %s37, 1
      %s696 = scalar_lea.vmem %s8, %s695
      %p697 = pneg %p258
      %p698 = pneg %p255
      %p699 = scmp.lt.s32.totalorder %s37, 1
      %s700 = scalar_select %p699, %s37, 1
      %s701 = scalar_lea.vmem %s9, %s700
      %p702 = pneg %p284
      %p703 = pneg %p281
      %p704 = scmp.lt.s32.totalorder %s37, 1
      %s705 = scalar_select %p704, %s37, 1
      %s706 = scalar_lea.vmem %s10, %s705
      %p707 = pneg %p310
      %p708 = pneg %p307
      %p709 = scmp.lt.s32.totalorder %s37, 1
      %s710 = scalar_select %p709, %s37, 1
      %s711 = smul.addr %s710, 32
      %s712 = smul.addr %s711, 4
      %s713 = scalar_lea.vmem %s11, %s712
      %p714 = pneg %p336
      %p715 = pneg %p333
      %p716 = scmp.lt.s32.totalorder %s37, 1
      %s717 = scalar_select %p716, %s37, 1
      %s718 = smul.addr %s717, 2
      %s719 = scalar_lea.vmem %s12, %s718
      %p720 = pneg %p362
      %p721 = pneg %p359
      %p722 = scmp.lt.s32.totalorder %s37, 1
      %s723 = scalar_select %p722, %s37, 1
      %s724 = smul.addr %s723, 32
      %s725 = smul.addr %s724, 4
      %s726 = scalar_lea.vmem %s13, %s725
      %p727 = pneg %p388
      %p728 = pneg %p385
      %p729 = scmp.lt.s32.totalorder %s37, 1
      %s730 = scalar_select %p729, %s37, 1
      %s731 = scalar_lea.vmem %s14, %s730
      %p732 = pneg %p414
      %p733 = pneg %p411
      %p734 = pneg %p435
      %p735 = pneg %p432
      %p736 = pneg %p456
      %p737 = pneg %p453
      %p738 = pneg %p477
      %p739 = pneg %p474
      %p740 = pneg %p498
      %p741 = pneg %p495
      %p742 = pneg %p524
      %p743 = pneg %p521
      %s744 = smul.u32 2, %s36
      %p745 = scmp.lt.s32.totalorder %s744, 3
      %s746 = scalar_select %p745, %s744, 3
      %s747 = scalar_lea.vmem %s19, %s746
      %s748 = smul.u32 2, %s36
      %p749 = scmp.lt.s32.totalorder %s748, 3
      %s750 = scalar_select %p749, %s748, 3
      %s751 = smul.addr %s750, 8
      %s752 = smul.addr %s751, 8
      %s753 = scalar_lea.vmem %s0, %s752
      %s754 = smul.u32 2, %s36
      %p755 = scmp.lt.s32.totalorder %s37, 1
      %s756 = scalar_select %p755, %s37, 1
      %s757 = scalar_lea.vmem %s4, %s756
      %p758 = scmp.lt.s32.totalorder %s37, 1
      %s759 = scalar_select %p758, %s37, 1
      %s760 = scalar_lea.vmem %s5, %s759
      %p761 = scmp.lt.s32.totalorder %s37, 1
      %s762 = scalar_select %p761, %s37, 1
      %s763 = smul.addr %s762, 48
      %s764 = smul.addr %s763, 4
      %s765 = scalar_lea.vmem %s6, %s764
      %p766 = scmp.lt.s32.totalorder %s37, 1
      %s767 = scalar_select %p766, %s37, 1
      %s768 = smul.addr %s767, 16
      %s769 = smul.addr %s768, 4
      %s770 = scalar_lea.vmem %s7, %s769
      %p771 = scmp.lt.s32.totalorder %s37, 1
      %s772 = scalar_select %p771, %s37, 1
      %s773 = scalar_lea.vmem %s8, %s772
      %p774 = scmp.lt.s32.totalorder %s37, 1
      %s775 = scalar_select %p774, %s37, 1
      %s776 = scalar_lea.vmem %s9, %s775
      %p777 = scmp.lt.s32.totalorder %s37, 1
      %s778 = scalar_select %p777, %s37, 1
      %s779 = scalar_lea.vmem %s10, %s778
      %p780 = scmp.lt.s32.totalorder %s37, 1
      %s781 = scalar_select %p780, %s37, 1
      %s782 = smul.addr %s781, 32
      %s783 = smul.addr %s782, 4
      %s784 = scalar_lea.vmem %s11, %s783
      %p785 = scmp.lt.s32.totalorder %s37, 1
      %s786 = scalar_select %p785, %s37, 1
      %s787 = smul.addr %s786, 2
      %s788 = scalar_lea.vmem %s12, %s787
      %p789 = scmp.lt.s32.totalorder %s37, 1
      %s790 = scalar_select %p789, %s37, 1
      %s791 = smul.addr %s790, 32
      %s792 = smul.addr %s791, 4
      %s793 = scalar_lea.vmem %s13, %s792
      %p794 = scmp.lt.s32.totalorder %s37, 1
      %s795 = scalar_select %p794, %s37, 1
      %s796 = scalar_lea.vmem %s14, %s795
      %s797 = smul.u32 2, %s36
      %p798 = scmp.lt.s32.totalorder %s797, 3
      %s799 = scalar_select %p798, %s797, 3
      %s800 = scalar_lea.vmem %s19, %s799
      %s801 = smul.u32 2, %s36
      %p803 = scmp.eq.s32.totalorder %s37, 0
      // Predicated region
      $region97: #{local_local_transformer3d.1} parent=95 // pred_check
        %p804 = pneg %p803
      $region98: #{local_local_transformer3d.1} parent=95 // pred_check_branch
        %806 = sbr.rel (%p804) target = $region100
      $region99: #{local_local_transformer3d.1} parent=95 // pred_region
        %v807 = vld [vmem:[%s753] sm:$0xff]
        %v808 = vld [vmem:[%s753 + $0x8] sm:$0xff]
        %v809 = vld [vmem:[%s753 + $0x10] sm:$0xff]
        %v810 = vld [vmem:[%s753 + $0x18] sm:$0xff]
        %v811 = vld [vmem:[%s753 + $0x20] sm:$0xff]
        %v812 = vld [vmem:[%s753 + $0x28] sm:$0xff]
        %v813 = vld [vmem:[%s753 + $0x30] sm:$0xff]
        %v814 = vld [vmem:[%s753 + $0x38] sm:$0xff]
        %v815 = vld [vmem:[%s753 + $0x40] sm:$0xff]
        %v816 = vld [vmem:[%s753 + $0x48] sm:$0xff]
        %v817 = vld [vmem:[%s753 + $0x50] sm:$0xff]
        %v818 = vld [vmem:[%s753 + $0x58] sm:$0xff]
        %v819 = vld [vmem:[%s753 + $0x60] sm:$0xff]
        %v820 = vld [vmem:[%s753 + $0x68] sm:$0xff]
        %v821 = vld [vmem:[%s753 + $0x70] sm:$0xff]
        %v822 = vld [vmem:[%s753 + $0x78] sm:$0xff]
        %v823 = vpack.c.bf16 %v808, %v807
        %v824 = vpack.c.bf16 %v810, %v809
        %v825 = vpack.c.bf16 %v812, %v811
        %v826 = vpack.c.bf16 %v814, %v813
        %v827 = vpack.c.bf16 %v816, %v815
        %v828 = vpack.c.bf16 %v818, %v817
        %v829 = vpack.c.bf16 %v820, %v819
        %v830 = vpack.c.bf16 %v822, %v821
        %v831 = vld [vmem:[%s1] sm:$0xf]
        %v832 = vld [vmem:[%s1 + $0x4] sm:$0xf]
        %v833 = vld [vmem:[%s1 + $0x8] sm:$0xf]
        %v834 = vld [vmem:[%s1 + $0xc] sm:$0xf]
        %v835 = vld [vmem:[%s1 + $0x10] sm:$0xf]
        %v836 = vld [vmem:[%s1 + $0x14] sm:$0xf]
        %v837 = vld [vmem:[%s1 + $0x18] sm:$0xf]
        %v838 = vld [vmem:[%s1 + $0x1c] sm:$0xf]
        %v839 = vld [vmem:[%s2] sm:$0x1]
        %v841 = vlaneseq
        %v842 = vshrl.u32 %v841, 7
        %v843 = vsub.s32 0, %v842
        %v844 = vrot.slane %v839, %v843
        %v854 = vunpack.c.l.b16 %v831
        %v855 = vunpack.c.l.b16 %v832
        %v856 = vunpack.c.l.b16 %v833
        %v857 = vunpack.c.l.b16 %v834
        %v858 = vunpack.c.l.b16 %v835
        %v859 = vunpack.c.l.b16 %v836
        %v860 = vunpack.c.l.b16 %v837
        %v861 = vunpack.c.l.b16 %v838
        %v862 = vpack.c.b16 %v855, %v854
        %v863 = vpack.c.b16 %v857, %v856
        %v864 = vpack.c.b16 %v859, %v858
        %v865 = vpack.c.b16 %v861, %v860
        %vm870 = vcmask 523264
        %v872 = vsel %vm870, %v823, 0
        %v875 = vsel %vm870, %v824, 0
        %v878 = vsel %vm870, %v825, 0
        %v881 = vsel %vm870, %v826, 0
        %v884 = vsel %vm870, %v827, 0
        %v887 = vsel %vm870, %v828, 0
        %v890 = vsel %vm870, %v829, 0
        %v893 = vsel %vm870, %v830, 0
        %895 = vmatprep.subr.bf16.mxu0 0
        %896 = vmatpush1.bf16.msra.mxu0 %v862
        %897 = vmatprep.subr.bf16.mxu0 0
        %898 = vmatpush1.bf16.msra.mxu0 %v863
        %899 = vmatprep.subr.bf16.mxu0 0
        %900 = vmatpush1.bf16.msra.mxu0 %v864
        %901 = vmatprep.subr.bf16.mxu0 0
        %902 = vmatpush1.bf16.msra.mxu0 %v865
        %903 = vmatprep.subr.bf16.mxu0 0
        %904 = vmatpush1.bf16.msra.mxu0 0
        %905 = vmatprep.subr.bf16.mxu0 0
        %906 = vmatpush1.bf16.msra.mxu0 0
        %907 = vmatprep.subr.bf16.mxu0 0
        %908 = vmatpush1.bf16.msra.mxu0 0
        %909 = vmatprep.subr.bf16.mxu0 0
        %910 = vmatpush1.bf16.msra.mxu0 0
        %911 = vmatprep.subr.bf16.mxu0 0
        %912 = vmatpush1.bf16.msra.mxu0 0
        %913 = vmatprep.subr.bf16.mxu0 0
        %914 = vmatpush1.bf16.msra.mxu0 0
        %915 = vmatprep.subr.bf16.mxu0 0
        %916 = vmatpush1.bf16.msra.mxu0 0
        %917 = vmatprep.subr.bf16.mxu0 0
        %918 = vmatpush1.bf16.msra.mxu0 0
        %919 = vmatprep.subr.bf16.mxu0 0
        %920 = vmatpush1.bf16.msra.mxu0 0
        %921 = vmatprep.subr.bf16.mxu0 0
        %922 = vmatpush1.bf16.msra.mxu0 0
        %923 = vmatprep.subr.bf16.mxu0 0
        %924 = vmatpush1.bf16.msra.mxu0 0
        %925 = vmatprep.subr.bf16.mxu0 0
        %926 = vmatpush1.bf16.msra.mxu0 0
        %927 = vmatprep.mubr.bf16.mxu0 0
        %928 = vmatmul.mubr.bf16.gmra.mrb[0].mxu0 %v872
        %v929 = vpop.f32.mrb[0].mxu0
        %v930 = vadd.f32 %v844, %v929
        %v931 = vpop.f32.mrb[0].mxu0
        %v932 = vpop.f32.mrb[0].mxu0
        %v933 = vadd.f32 %v844, %v932
        %v934 = vpop.f32.mrb[0].mxu0
        %935 = vmatprep.mubr.bf16.mxu0 0
        %936 = vmatmul.mubr.bf16.gmra.mrb[0].mxu0 %v875
        %v937 = vpop.f32.mrb[0].mxu0
        %v938 = vadd.f32 %v844, %v937
        %v939 = vpop.f32.mrb[0].mxu0
        %v940 = vpop.f32.mrb[0].mxu0
        %v941 = vadd.f32 %v844, %v940
        %v942 = vpop.f32.mrb[0].mxu0
        %943 = vmatprep.mubr.bf16.mxu0 0
        %944 = vmatmul.mubr.bf16.gmra.mrb[0].mxu0 %v878
        %v945 = vpop.f32.mrb[0].mxu0
        %v946 = vadd.f32 %v844, %v945
        %v947 = vpop.f32.mrb[0].mxu0
        %v948 = vpop.f32.mrb[0].mxu0
        %v949 = vadd.f32 %v844, %v948
        %v950 = vpop.f32.mrb[0].mxu0
        %951 = vmatprep.mubr.bf16.mxu0 0
        %952 = vmatmul.mubr.bf16.gmra.mrb[0].mxu0 %v881
        %v953 = vpop.f32.mrb[0].mxu0
        %v954 = vadd.f32 %v844, %v953
        %v955 = vpop.f32.mrb[0].mxu0
        %v956 = vpop.f32.mrb[0].mxu0
        %v957 = vadd.f32 %v844, %v956
        %v958 = vpop.f32.mrb[0].mxu0
        %959 = vmatprep.mubr.bf16.mxu0 0
        %960 = vmatmul.mubr.bf16.gmra.mrb[0].mxu0 %v884
        %v961 = vpop.f32.mrb[0].mxu0
        %v962 = vadd.f32 %v844, %v961
        %v963 = vpop.f32.mrb[0].mxu0
        %v964 = vpop.f32.mrb[0].mxu0
        %v965 = vadd.f32 %v844, %v964
        %v966 = vpop.f32.mrb[0].mxu0
        %967 = vmatprep.mubr.bf16.mxu0 0
        %968 = vmatmul.mubr.bf16.gmra.mrb[0].mxu0 %v887
        %v969 = vpop.f32.mrb[0].mxu0
        %v970 = vadd.f32 %v844, %v969
        %v971 = vpop.f32.mrb[0].mxu0
        %v972 = vpop.f32.mrb[0].mxu0
        %v973 = vadd.f32 %v844, %v972
        %v974 = vpop.f32.mrb[0].mxu0
        %975 = vmatprep.mubr.bf16.mxu0 0
        %976 = vmatmul.mubr.bf16.gmra.mrb[0].mxu0 %v890
        %v977 = vpop.f32.mrb[0].mxu0
        %v978 = vadd.f32 %v844, %v977
        %v979 = vpop.f32.mrb[0].mxu0
        %v980 = vpop.f32.mrb[0].mxu0
        %v981 = vadd.f32 %v844, %v980
        %v982 = vpop.f32.mrb[0].mxu0
        %983 = vmatprep.mubr.bf16.mxu0 0
        %984 = vmatmul.mubr.bf16.gmra.mrb[0].mxu0 %v893
        %v985 = vpop.f32.mrb[0].mxu0
        %v986 = vadd.f32 %v844, %v985
        %v987 = vpop.f32.mrb[0].mxu0
        %v988 = vpop.f32.mrb[0].mxu0
        %v989 = vadd.f32 %v844, %v988
        %v990 = vpop.f32.mrb[0].mxu0
        %991 = vdwg.mxu0
        %v992 = vmax.f32 %v930, 0.0
        %v993 = vmax.f32 %v933, 0.0
        %v994 = vmax.f32 %v938, 0.0
        %v995 = vmax.f32 %v941, 0.0
        %v996 = vmax.f32 %v946, 0.0
        %v997 = vmax.f32 %v949, 0.0
        %v998 = vmax.f32 %v954, 0.0
        %v999 = vmax.f32 %v957, 0.0
        %v1000 = vmax.f32 %v962, 0.0
        %v1001 = vmax.f32 %v965, 0.0
        %v1002 = vmax.f32 %v970, 0.0
        %v1003 = vmax.f32 %v973, 0.0
        %v1004 = vmax.f32 %v978, 0.0
        %v1005 = vmax.f32 %v981, 0.0
        %v1006 = vmax.f32 %v986, 0.0
        %v1007 = vmax.f32 %v989, 0.0
        %v1008 = vld [vmem:[%s3] sm:$0xff]
        %v1009 = vld [vmem:[%s3 + $0x8] sm:$0xff]
        %v1010 = vld [vmem:[%s3 + $0x10] sm:$0xff]
        %v1011 = vld [vmem:[%s3 + $0x18] sm:$0xff]
        %v1012 = vld [vmem:[%s3 + $0x20] sm:$0xff]
        %v1013 = vld [vmem:[%s3 + $0x28] sm:$0xff]
        %v1014 = vld [vmem:[%s3 + $0x30] sm:$0xff]
        %v1015 = vld [vmem:[%s3 + $0x38] sm:$0xff]
        %v1016 = vadd.f32 %v992, %v1008
        %v1017 = vadd.f32 %v993, %v1009
        %v1018 = vadd.f32 %v994, %v1010
        %v1019 = vadd.f32 %v995, %v1011
        %v1020 = vadd.f32 %v996, %v1012
        %v1021 = vadd.f32 %v997, %v1013
        %v1022 = vadd.f32 %v998, %v1014
        %v1023 = vadd.f32 %v999, %v1015
        %v1024 = vadd.f32 %v1000, %v1008
        %v1025 = vadd.f32 %v1001, %v1009
        %v1026 = vadd.f32 %v1002, %v1010
        %v1027 = vadd.f32 %v1003, %v1011
        %v1028 = vadd.f32 %v1004, %v1012
        %v1029 = vadd.f32 %v1005, %v1013
        %v1030 = vadd.f32 %v1006, %v1014
        %v1031 = vadd.f32 %v1007, %v1015
        %1032 = vst [vmem:[#allocation2] sm:$0xff] %v1016
        %1033 = vst [vmem:[#allocation2 + $0x8] sm:$0xff] %v1017
        %1034 = vst [vmem:[#allocation2 + $0x10] sm:$0xff] %v1018
        %1035 = vst [vmem:[#allocation2 + $0x18] sm:$0xff] %v1019
        %1036 = vst [vmem:[#allocation2 + $0x20] sm:$0xff] %v1020
        %1037 = vst [vmem:[#allocation2 + $0x28] sm:$0xff] %v1021
        %1038 = vst [vmem:[#allocation2 + $0x30] sm:$0xff] %v1022
        %1039 = vst [vmem:[#allocation2 + $0x38] sm:$0xff] %v1023
        %1040 = vst [vmem:[#allocation2 + $0x40] sm:$0xff] %v1024
        %1041 = vst [vmem:[#allocation2 + $0x48] sm:$0xff] %v1025
        %1042 = vst [vmem:[#allocation2 + $0x50] sm:$0xff] %v1026
        %1043 = vst [vmem:[#allocation2 + $0x58] sm:$0xff] %v1027
        %1044 = vst [vmem:[#allocation2 + $0x60] sm:$0xff] %v1028
        %1045 = vst [vmem:[#allocation2 + $0x68] sm:$0xff] %v1029
        %1046 = vst [vmem:[#allocation2 + $0x70] sm:$0xff] %v1030
        %1047 = vst [vmem:[#allocation2 + $0x78] sm:$0xff] %v1031
      $region100: #{local_local_transformer3d.1} parent=95 // pred_fallthru
        _
      %v1048 = vld [vmem:[#allocation2] sm:$0xff]
      %v1049 = vld [vmem:[#allocation2 + $0x8] sm:$0xff]
      %v1050 = vld [vmem:[#allocation2 + $0x10] sm:$0xff]
      %v1051 = vld [vmem:[#allocation2 + $0x18] sm:$0xff]
      %v1052 = vld [vmem:[#allocation2 + $0x20] sm:$0xff]
      %v1053 = vld [vmem:[#allocation2 + $0x28] sm:$0xff]
      %v1054 = vld [vmem:[#allocation2 + $0x30] sm:$0xff]
      %v1055 = vld [vmem:[#allocation2 + $0x38] sm:$0xff]
      %v1056 = vld [vmem:[#allocation2 + $0x40] sm:$0xff]
      %v1057 = vld [vmem:[#allocation2 + $0x48] sm:$0xff]
      %v1058 = vld [vmem:[#allocation2 + $0x50] sm:$0xff]
      %v1059 = vld [vmem:[#allocation2 + $0x58] sm:$0xff]
      %v1060 = vld [vmem:[#allocation2 + $0x60] sm:$0xff]
      %v1061 = vld [vmem:[#allocation2 + $0x68] sm:$0xff]
      %v1062 = vld [vmem:[#allocation2 + $0x70] sm:$0xff]
      %v1063 = vld [vmem:[#allocation2 + $0x78] sm:$0xff]
      %v1064 = vld [vmem:[%s757] sm:$0x1]
      %v1065 = vld [vmem:[%s760] sm:$0x1]
      %1066 = vadd.xlane.f32.xlu0 %v1048
      %v1067 = vpop.xlane.xlu0 %1066
      %1068 = vadd.xlane.f32.xlu0 %v1049
      %v1069 = vpop.xlane.xlu0 %1068
      %1070 = vadd.xlane.f32.xlu0 %v1050
      %v1071 = vpop.xlane.xlu0 %1070
      %1072 = vadd.xlane.f32.xlu0 %v1051
      %v1073 = vpop.xlane.xlu0 %1072
      %1074 = vadd.xlane.f32.xlu0 %v1052
      %v1075 = vpop.xlane.xlu0 %1074
      %1076 = vadd.xlane.f32.xlu0 %v1053
      %v1077 = vpop.xlane.xlu0 %1076
      %1078 = vadd.xlane.f32.xlu0 %v1054
      %v1079 = vpop.xlane.xlu0 %1078
      %1080 = vadd.xlane.f32.xlu0 %v1055
      %v1081 = vpop.xlane.xlu0 %1080
      %1082 = vadd.xlane.f32.xlu0 %v1056
      %v1083 = vpop.xlane.xlu0 %1082
      %1084 = vadd.xlane.f32.xlu0 %v1057
      %v1085 = vpop.xlane.xlu0 %1084
      %1086 = vadd.xlane.f32.xlu0 %v1058
      %v1087 = vpop.xlane.xlu0 %1086
      %1088 = vadd.xlane.f32.xlu0 %v1059
      %v1089 = vpop.xlane.xlu0 %1088
      %1090 = vadd.xlane.f32.xlu0 %v1060
      %v1091 = vpop.xlane.xlu0 %1090
      %1092 = vadd.xlane.f32.xlu0 %v1061
      %v1093 = vpop.xlane.xlu0 %1092
      %1094 = vadd.xlane.f32.xlu0 %v1062
      %v1095 = vpop.xlane.xlu0 %1094
      %1096 = vadd.xlane.f32.xlu0 %v1063
      %v1097 = vpop.xlane.xlu0 %1096
      %v1098 = vrcp.pop 128.0
      %v1099 = vmul.f32 %v1067, %v1098
      %v1100 = vmul.f32 %v1069, %v1098
      %v1101 = vmul.f32 %v1071, %v1098
      %v1102 = vmul.f32 %v1073, %v1098
      %v1103 = vmul.f32 %v1075, %v1098
      %v1104 = vmul.f32 %v1077, %v1098
      %v1105 = vmul.f32 %v1079, %v1098
      %v1106 = vmul.f32 %v1081, %v1098
      %v1107 = vmul.f32 %v1083, %v1098
      %v1108 = vmul.f32 %v1085, %v1098
      %v1109 = vmul.f32 %v1087, %v1098
      %v1110 = vmul.f32 %v1089, %v1098
      %v1111 = vmul.f32 %v1091, %v1098
      %v1112 = vmul.f32 %v1093, %v1098
      %v1113 = vmul.f32 %v1095, %v1098
      %v1114 = vmul.f32 %v1097, %v1098
      %v1115 = vsub.f32 %v1048, %v1099
      %v1116 = vsub.f32 %v1049, %v1100
      %v1117 = vsub.f32 %v1050, %v1101
      %v1118 = vsub.f32 %v1051, %v1102
      %v1119 = vsub.f32 %v1052, %v1103
      %v1120 = vsub.f32 %v1053, %v1104
      %v1121 = vsub.f32 %v1054, %v1105
      %v1122 = vsub.f32 %v1055, %v1106
      %v1123 = vsub.f32 %v1056, %v1107
      %v1124 = vsub.f32 %v1057, %v1108
      %v1125 = vsub.f32 %v1058, %v1109
      %v1126 = vsub.f32 %v1059, %v1110
      %v1127 = vsub.f32 %v1060, %v1111
      %v1128 = vsub.f32 %v1061, %v1112
      %v1129 = vsub.f32 %v1062, %v1113
      %v1130 = vsub.f32 %v1063, %v1114
      %v1131 = vmul.f32 %v1115, %v1115
      %v1132 = vmul.f32 %v1116, %v1116
      %v1133 = vmul.f32 %v1117, %v1117
      %v1134 = vmul.f32 %v1118, %v1118
      %v1135 = vmul.f32 %v1119, %v1119
      %v1136 = vmul.f32 %v1120, %v1120
      %v1137 = vmul.f32 %v1121, %v1121
      %v1138 = vmul.f32 %v1122, %v1122
      %v1139 = vmul.f32 %v1123, %v1123
      %v1140 = vmul.f32 %v1124, %v1124
      %v1141 = vmul.f32 %v1125, %v1125
      %v1142 = vmul.f32 %v1126, %v1126
      %v1143 = vmul.f32 %v1127, %v1127
      %v1144 = vmul.f32 %v1128, %v1128
      %v1145 = vmul.f32 %v1129, %v1129
      %v1146 = vmul.f32 %v1130, %v1130
      %1147 = vadd.xlane.f32.xlu0 %v1131
      %v1148 = vpop.xlane.xlu0 %1147
      %1149 = vadd.xlane.f32.xlu0 %v1132
      %v1150 = vpop.xlane.xlu0 %1149
      %1151 = vadd.xlane.f32.xlu0 %v1133
      %v1152 = vpop.xlane.xlu0 %1151
      %1153 = vadd.xlane.f32.xlu0 %v1134
      %v1154 = vpop.xlane.xlu0 %1153
      %1155 = vadd.xlane.f32.xlu0 %v1135
      %v1156 = vpop.xlane.xlu0 %1155
      %1157 = vadd.xlane.f32.xlu0 %v1136
      %v1158 = vpop.xlane.xlu0 %1157
      %1159 = vadd.xlane.f32.xlu0 %v1137
      %v1160 = vpop.xlane.xlu0 %1159
      %1161 = vadd.xlane.f32.xlu0 %v1138
      %v1162 = vpop.xlane.xlu0 %1161
      %1163 = vadd.xlane.f32.xlu0 %v1139
      %v1164 = vpop.xlane.xlu0 %1163
      %1165 = vadd.xlane.f32.xlu0 %v1140
      %v1166 = vpop.xlane.xlu0 %1165
      %1167 = vadd.xlane.f32.xlu0 %v1141
      %v1168 = vpop.xlane.xlu0 %1167
      %1169 = vadd.xlane.f32.xlu0 %v1142
      %v1170 = vpop.xlane.xlu0 %1169
      %1171 = vadd.xlane.f32.xlu0 %v1143
      %v1172 = vpop.xlane.xlu0 %1171
      %1173 = vadd.xlane.f32.xlu0 %v1144
      %v1174 = vpop.xlane.xlu0 %1173
      %1175 = vadd.xlane.f32.xlu0 %v1145
      %v1176 = vpop.xlane.xlu0 %1175
      %1177 = vadd.xlane.f32.xlu0 %v1146
      %v1178 = vpop.xlane.xlu0 %1177
      %v1179 = vmul.f32 %v1148, %v1098
      %v1180 = vmul.f32 %v1150, %v1098
      %v1181 = vmul.f32 %v1152, %v1098
      %v1182 = vmul.f32 %v1154, %v1098
      %v1183 = vmul.f32 %v1156, %v1098
      %v1184 = vmul.f32 %v1158, %v1098
      %v1185 = vmul.f32 %v1160, %v1098
      %v1186 = vmul.f32 %v1162, %v1098
      %v1187 = vmul.f32 %v1164, %v1098
      %v1188 = vmul.f32 %v1166, %v1098
      %v1189 = vmul.f32 %v1168, %v1098
      %v1190 = vmul.f32 %v1170, %v1098
      %v1191 = vmul.f32 %v1172, %v1098
      %v1192 = vmul.f32 %v1174, %v1098
      %v1193 = vmul.f32 %v1176, %v1098
      %v1194 = vmul.f32 %v1178, %v1098
      %v1195 = vadd.f32 %v1179, 1e-05
      %v1196 = vadd.f32 %v1180, 1e-05
      %v1197 = vadd.f32 %v1181, 1e-05
      %v1198 = vadd.f32 %v1182, 1e-05
      %v1199 = vadd.f32 %v1183, 1e-05
      %v1200 = vadd.f32 %v1184, 1e-05
      %v1201 = vadd.f32 %v1185, 1e-05
      %v1202 = vadd.f32 %v1186, 1e-05
      %v1203 = vadd.f32 %v1187, 1e-05
      %v1204 = vadd.f32 %v1188, 1e-05
      %v1205 = vadd.f32 %v1189, 1e-05
      %v1206 = vadd.f32 %v1190, 1e-05
      %v1207 = vadd.f32 %v1191, 1e-05
      %v1208 = vadd.f32 %v1192, 1e-05
      %v1209 = vadd.f32 %v1193, 1e-05
      %v1210 = vadd.f32 %v1194, 1e-05
      %v1211 = vrsqrt.pop %v1195
      %v1212 = vrsqrt.pop %v1196
      %v1213 = vrsqrt.pop %v1197
      %v1214 = vrsqrt.pop %v1198
      %v1215 = vrsqrt.pop %v1199
      %v1216 = vrsqrt.pop %v1200
      %v1217 = vrsqrt.pop %v1201
      %v1218 = vrsqrt.pop %v1202
      %v1219 = vrsqrt.pop %v1203
      %v1220 = vrsqrt.pop %v1204
      %v1221 = vrsqrt.pop %v1205
      %v1222 = vrsqrt.pop %v1206
      %v1223 = vrsqrt.pop %v1207
      %v1224 = vrsqrt.pop %v1208
      %v1225 = vrsqrt.pop %v1209
      %v1226 = vrsqrt.pop %v1210
      %v1227 = vmul.f32 %v1115, %v1211
      %v1228 = vmul.f32 %v1116, %v1212
      %v1229 = vmul.f32 %v1117, %v1213
      %v1230 = vmul.f32 %v1118, %v1214
      %v1231 = vmul.f32 %v1119, %v1215
      %v1232 = vmul.f32 %v1120, %v1216
      %v1233 = vmul.f32 %v1121, %v1217
      %v1234 = vmul.f32 %v1122, %v1218
      %v1235 = vmul.f32 %v1123, %v1219
      %v1236 = vmul.f32 %v1124, %v1220
      %v1237 = vmul.f32 %v1125, %v1221
      %v1238 = vmul.f32 %v1126, %v1222
      %v1239 = vmul.f32 %v1127, %v1223
      %v1240 = vmul.f32 %v1128, %v1224
      %v1241 = vmul.f32 %v1129, %v1225
      %v1242 = vmul.f32 %v1130, %v1226
      %v1244 = vlaneseq
      %v1245 = vshrl.u32 %v1244, 7
      %v1246 = vsub.s32 0, %v1245
      %v1247 = vrot.slane %v1064, %v1246
      %v1249 = vmul.f32 %v1227, %v1247
      %v1250 = vmul.f32 %v1228, %v1247
      %v1251 = vmul.f32 %v1229, %v1247
      %v1252 = vmul.f32 %v1230, %v1247
      %v1253 = vmul.f32 %v1231, %v1247
      %v1254 = vmul.f32 %v1232, %v1247
      %v1255 = vmul.f32 %v1233, %v1247
      %v1256 = vmul.f32 %v1234, %v1247
      %v1257 = vmul.f32 %v1235, %v1247
      %v1258 = vmul.f32 %v1236, %v1247
      %v1259 = vmul.f32 %v1237, %v1247
      %v1260 = vmul.f32 %v1238, %v1247
      %v1261 = vmul.f32 %v1239, %v1247
      %v1262 = vmul.f32 %v1240, %v1247
      %v1263 = vmul.f32 %v1241, %v1247
      %v1264 = vmul.f32 %v1242, %v1247
      %v1266 = vlaneseq
      %v1267 = vshrl.u32 %v1266, 7
      %v1268 = vsub.s32 0, %v1267
      %v1269 = vrot.slane %v1065, %v1268
      %v1271 = vadd.f32 %v1249, %v1269
      %v1272 = vadd.f32 %v1250, %v1269
      %v1273 = vadd.f32 %v1251, %v1269
      %v1274 = vadd.f32 %v1252, %v1269
      %v1275 = vadd.f32 %v1253, %v1269
      %v1276 = vadd.f32 %v1254, %v1269
      %v1277 = vadd.f32 %v1255, %v1269
      %v1278 = vadd.f32 %v1256, %v1269
      %v1279 = vadd.f32 %v1257, %v1269
      %v1280 = vadd.f32 %v1258, %v1269
      %v1281 = vadd.f32 %v1259, %v1269
      %v1282 = vadd.f32 %v1260, %v1269
      %v1283 = vadd.f32 %v1261, %v1269
      %v1284 = vadd.f32 %v1262, %v1269
      %v1285 = vadd.f32 %v1263, %v1269
      %v1286 = vadd.f32 %v1264, %v1269
      %v1287 = vld [vmem:[%s765] sm:$0xf]
      %v1288 = vld [vmem:[%s765 + $0x4] sm:$0xf]
      %v1289 = vld [vmem:[%s765 + $0x8] sm:$0xf]
      %v1290 = vld [vmem:[%s765 + $0xc] sm:$0xf]
      %v1291 = vld [vmem:[%s765 + $0x10] sm:$0xf]
      %v1292 = vld [vmem:[%s765 + $0x14] sm:$0xf]
      %v1293 = vld [vmem:[%s765 + $0x18] sm:$0xf]
      %v1294 = vld [vmem:[%s765 + $0x1c] sm:$0xf]
      %v1295 = vld [vmem:[%s765 + $0x20] sm:$0xf]
      %v1296 = vld [vmem:[%s765 + $0x24] sm:$0xf]
      %v1297 = vld [vmem:[%s765 + $0x28] sm:$0xf]
      %v1298 = vld [vmem:[%s765 + $0x2c] sm:$0xf]
      %v1299 = vld [vmem:[%s765 + $0x30] sm:$0xf]
      %v1300 = vld [vmem:[%s765 + $0x34] sm:$0xf]
      %v1301 = vld [vmem:[%s765 + $0x38] sm:$0xf]
      %v1302 = vld [vmem:[%s765 + $0x3c] sm:$0xf]
      %v1303 = vld [vmem:[%s765 + $0x40] sm:$0xf]
      %v1304 = vld [vmem:[%s765 + $0x44] sm:$0xf]
      %v1305 = vld [vmem:[%s765 + $0x48] sm:$0xf]
      %v1306 = vld [vmem:[%s765 + $0x4c] sm:$0xf]
      %v1307 = vld [vmem:[%s765 + $0x50] sm:$0xf]
      %v1308 = vld [vmem:[%s765 + $0x54] sm:$0xf]
      %v1309 = vld [vmem:[%s765 + $0x58] sm:$0xf]
      %v1310 = vld [vmem:[%s765 + $0x5c] sm:$0xf]
      %v1311 = vld [vmem:[%s765 + $0x60] sm:$0xf]
      %v1312 = vld [vmem:[%s765 + $0x64] sm:$0xf]
      %v1313 = vld [vmem:[%s765 + $0x68] sm:$0xf]
      %v1314 = vld [vmem:[%s765 + $0x6c] sm:$0xf]
      %v1315 = vld [vmem:[%s765 + $0x70] sm:$0xf]
      %v1316 = vld [vmem:[%s765 + $0x74] sm:$0xf]
      %v1317 = vld [vmem:[%s765 + $0x78] sm:$0xf]
      %v1318 = vld [vmem:[%s765 + $0x7c] sm:$0xf]
      %v1319 = vld [vmem:[%s765 + $0x80] sm:$0xf]
      %v1320 = vld [vmem:[%s765 + $0x84] sm:$0xf]
      %v1321 = vld [vmem:[%s765 + $0x88] sm:$0xf]
      %v1322 = vld [vmem:[%s765 + $0x8c] sm:$0xf]
      %v1323 = vld [vmem:[%s765 + $0x90] sm:$0xf]
      %v1324 = vld [vmem:[%s765 + $0x94] sm:$0xf]
      %v1325 = vld [vmem:[%s765 + $0x98] sm:$0xf]
      %v1326 = vld [vmem:[%s765 + $0x9c] sm:$0xf]
      %v1327 = vld [vmem:[%s765 + $0xa0] sm:$0xf]
      %v1328 = vld [vmem:[%s765 + $0xa4] sm:$0xf]
      %v1329 = vld [vmem:[%s765 + $0xa8] sm:$0xf]
      %v1330 = vld [vmem:[%s765 + $0xac] sm:$0xf]
      %v1331 = vld [vmem:[%s765 + $0xb0] sm:$0xf]
      %v1332 = vld [vmem:[%s765 + $0xb4] sm:$0xf]
      %v1333 = vld [vmem:[%s765 + $0xb8] sm:$0xf]
      %v1334 = vld [vmem:[%s765 + $0xbc] sm:$0xf]
      %v1335 = vld [vmem:[%s770] sm:$0xf]
      %v1336 = vld [vmem:[%s770 + $0x4] sm:$0xf]
      %v1337 = vld [vmem:[%s770 + $0x8] sm:$0xf]
      %v1338 = vld [vmem:[%s770 + $0xc] sm:$0xf]
      %v1339 = vld [vmem:[%s770 + $0x10] sm:$0xf]
      %v1340 = vld [vmem:[%s770 + $0x14] sm:$0xf]
      %v1341 = vld [vmem:[%s770 + $0x18] sm:$0xf]
      %v1342 = vld [vmem:[%s770 + $0x1c] sm:$0xf]
      %v1343 = vld [vmem:[%s770 + $0x20] sm:$0xf]
      %v1344 = vld [vmem:[%s770 + $0x24] sm:$0xf]
      %v1345 = vld [vmem:[%s770 + $0x28] sm:$0xf]
      %v1346 = vld [vmem:[%s770 + $0x2c] sm:$0xf]
      %v1347 = vld [vmem:[%s770 + $0x30] sm:$0xf]
      %v1348 = vld [vmem:[%s770 + $0x34] sm:$0xf]
      %v1349 = vld [vmem:[%s770 + $0x38] sm:$0xf]
      %v1350 = vld [vmem:[%s770 + $0x3c] sm:$0xf]
      %v1351 = vpack.c.bf16 %v1272, %v1271
      %v1352 = vpack.c.bf16 %v1274, %v1273
      %v1353 = vpack.c.bf16 %v1276, %v1275
      %v1354 = vpack.c.bf16 %v1278, %v1277
      %v1403 = vunpack.c.l.b16 %v1287
      %v1404 = vunpack.c.l.b16 %v1288
      %v1405 = vunpack.c.l.b16 %v1289
      %v1406 = vunpack.c.l.b16 %v1290
      %v1407 = vunpack.c.l.b16 %v1291
      %v1408 = vunpack.c.l.b16 %v1292
      %v1409 = vunpack.c.l.b16 %v1293
      %v1410 = vunpack.c.l.b16 %v1294
      %v1411 = vunpack.c.l.b16 %v1295
      %v1412 = vunpack.c.l.b16 %v1296
      %v1413 = vunpack.c.l.b16 %v1297
      %v1414 = vunpack.c.l.b16 %v1298
      %v1415 = vunpack.c.l.b16 %v1299
      %v1416 = vunpack.c.l.b16 %v1300
      %v1417 = vunpack.c.l.b16 %v1301
      %v1418 = vunpack.c.l.b16 %v1302
      %v1419 = vunpack.c.l.b16 %v1303
      %v1420 = vunpack.c.l.b16 %v1304
      %v1421 = vunpack.c.l.b16 %v1305
      %v1422 = vunpack.c.l.b16 %v1306
      %v1423 = vunpack.c.l.b16 %v1307
      %v1424 = vunpack.c.l.b16 %v1308
      %v1425 = vunpack.c.l.b16 %v1309
      %v1426 = vunpack.c.l.b16 %v1310
      %v1427 = vunpack.c.l.b16 %v1311
      %v1428 = vunpack.c.l.b16 %v1312
      %v1429 = vunpack.c.l.b16 %v1313
      %v1430 = vunpack.c.l.b16 %v1314
      %v1431 = vunpack.c.l.b16 %v1315
      %v1432 = vunpack.c.l.b16 %v1316
      %v1433 = vunpack.c.l.b16 %v1317
      %v1434 = vunpack.c.l.b16 %v1318
      %v1435 = vunpack.c.l.b16 %v1319
      %v1436 = vunpack.c.l.b16 %v1320
      %v1437 = vunpack.c.l.b16 %v1321
      %v1438 = vunpack.c.l.b16 %v1322
      %v1439 = vunpack.c.l.b16 %v1323
      %v1440 = vunpack.c.l.b16 %v1324
      %v1441 = vunpack.c.l.b16 %v1325
      %v1442 = vunpack.c.l.b16 %v1326
      %v1443 = vunpack.c.l.b16 %v1327
      %v1444 = vunpack.c.l.b16 %v1328
      %v1445 = vunpack.c.l.b16 %v1329
      %v1446 = vunpack.c.l.b16 %v1330
      %v1447 = vunpack.c.l.b16 %v1331
      %v1448 = vunpack.c.l.b16 %v1332
      %v1449 = vunpack.c.l.b16 %v1333
      %v1450 = vunpack.c.l.b16 %v1334
      %v1451 = vpack.c.b16 %v1404, %v1403
      %v1452 = vpack.c.b16 %v1406, %v1405
      %v1453 = vpack.c.b16 %v1408, %v1407
      %v1454 = vpack.c.b16 %v1410, %v1409
      %v1455 = vpack.c.b16 %v1412, %v1411
      %v1456 = vpack.c.b16 %v1414, %v1413
      %v1457 = vpack.c.b16 %v1416, %v1415
      %v1458 = vpack.c.b16 %v1418, %v1417
      %v1459 = vpack.c.b16 %v1420, %v1419
      %v1460 = vpack.c.b16 %v1422, %v1421
      %v1461 = vpack.c.b16 %v1424, %v1423
      %v1462 = vpack.c.b16 %v1426, %v1425
      %v1463 = vpack.c.b16 %v1428, %v1427
      %v1464 = vpack.c.b16 %v1430, %v1429
      %v1465 = vpack.c.b16 %v1432, %v1431
      %v1466 = vpack.c.b16 %v1434, %v1433
      %v1467 = vpack.c.b16 %v1436, %v1435
      %v1468 = vpack.c.b16 %v1438, %v1437
      %v1469 = vpack.c.b16 %v1440, %v1439
      %v1470 = vpack.c.b16 %v1442, %v1441
      %v1471 = vpack.c.b16 %v1444, %v1443
      %v1472 = vpack.c.b16 %v1446, %v1445
      %v1473 = vpack.c.b16 %v1448, %v1447
      %v1474 = vpack.c.b16 %v1450, %v1449
      %1499 = vmatprep.subr.bf16.mxu0 0
      %1500 = vmatpush1.bf16.xpose.msra.mxu0 %v1351
      %1501 = vmatprep.subr.bf16.mxu0 0
      %1502 = vmatpush1.bf16.xpose.msra.mxu0 %v1352
      %1503 = vmatprep.subr.bf16.mxu0 0
      %1504 = vmatpush1.bf16.xpose.msra.mxu0 %v1353
      %1505 = vmatprep.subr.bf16.mxu0 0
      %1506 = vmatpush1.bf16.xpose.msra.mxu0 %v1354
      %1507 = vmatprep.subr.bf16.mxu0 0
      %1508 = vmatpush1.bf16.xpose.msra.mxu0 0
      %1509 = vmatprep.subr.bf16.mxu0 0
      %1510 = vmatpush1.bf16.xpose.msra.mxu0 0
      %1511 = vmatprep.subr.bf16.mxu0 0
      %1512 = vmatpush1.bf16.xpose.msra.mxu0 0
      %1513 = vmatprep.subr.bf16.mxu0 0
      %1514 = vmatpush1.bf16.xpose.msra.mxu0 0
      %1515 = vmatprep.subr.bf16.mxu0 0
      %1516 = vmatpush1.bf16.xpose.msra.mxu0 0
      %1517 = vmatprep.subr.bf16.mxu0 0
      %1518 = vmatpush1.bf16.xpose.msra.mxu0 0
      %1519 = vmatprep.subr.bf16.mxu0 0
      %1520 = vmatpush1.bf16.xpose.msra.mxu0 0
      %1521 = vmatprep.subr.bf16.mxu0 0
      %1522 = vmatpush1.bf16.xpose.msra.mxu0 0
      %1523 = vmatprep.subr.bf16.mxu0 0
      %1524 = vmatpush1.bf16.xpose.msra.mxu0 0
      %1525 = vmatprep.subr.bf16.mxu0 0
      %1526 = vmatpush1.bf16.xpose.msra.mxu0 0
      %1527 = vmatprep.subr.bf16.mxu0 0
      %1528 = vmatpush1.bf16.xpose.msra.mxu0 0
      %1529 = vmatprep.subr.bf16.mxu0 0
      %1530 = vmatpush1.bf16.xpose.msra.mxu0 0
      %1531 = vmatprep.mubr.bf16.mxu0 0
      %1532 = vmatmul.mubr.bf16.gmra.mrb[0].mxu0 %v1451
      %v1533 = vpop.f32.mrb[0].mxu0
      %v1534 = vadd.f32 0.0, %v1533
      %v1535 = vpop.f32.mrb[0].mxu0
      %v1536 = vpop.f32.mrb[0].mxu0
      %v1537 = vadd.f32 0.0, %v1536
      %v1538 = vpop.f32.mrb[0].mxu0
      %1539 = vmatprep.mubr.bf16.mxu0 0
      %1540 = vmatmul.mubr.bf16.gmra.mrb[0].mxu0 %v1452
      %v1541 = vpop.f32.mrb[0].mxu0
      %v1542 = vadd.f32 0.0, %v1541
      %v1543 = vpop.f32.mrb[0].mxu0
      %v1544 = vpop.f32.mrb[0].mxu0
      %v1545 = vadd.f32 0.0, %v1544
      %v1546 = vpop.f32.mrb[0].mxu0
      %1547 = vmatprep.mubr.bf16.mxu0 0
      %1548 = vmatmul.mubr.bf16.gmra.mrb[0].mxu0 %v1453
      %v1549 = vpop.f32.mrb[0].mxu0
      %v1550 = vadd.f32 0.0, %v1549
      %v1551 = vpop.f32.mrb[0].mxu0
      %v1552 = vpop.f32.mrb[0].mxu0
      %v1553 = vadd.f32 0.0, %v1552
      %v1554 = vpop.f32.mrb[0].mxu0
      %1555 = vmatprep.mubr.bf16.mxu0 0
      %1556 = vmatmul.mubr.bf16.gmra.mrb[0].mxu0 %v1454
      %v1557 = vpop.f32.mrb[0].mxu0
      %v1558 = vadd.f32 0.0, %v1557
      %v1559 = vpop.f32.mrb[0].mxu0
      %v1560 = vpop.f32.mrb[0].mxu0
      %v1561 = vadd.f32 0.0, %v1560
      %v1562 = vpop.f32.mrb[0].mxu0
      %1563 = vmatprep.mubr.bf16.mxu0 0
      %1564 = vmatmul.mubr.bf16.gmra.mrb[0].mxu0 %v1455
      %v1565 = vpop.f32.mrb[0].mxu0
      %v1566 = vadd.f32 0.0, %v1565
      %v1567 = vpop.f32.mrb[0].mxu0
      %v1568 = vpop.f32.mrb[0].mxu0
      %v1569 = vadd.f32 0.0, %v1568
      %v1570 = vpop.f32.mrb[0].mxu0
      %1571 = vmatprep.mubr.bf16.mxu0 0
      %1572 = vmatmul.mubr.bf16.gmra.mrb[0].mxu0 %v1456
      %v1573 = vpop.f32.mrb[0].mxu0
      %v1574 = vadd.f32 0.0, %v1573
      %v1575 = vpop.f32.mrb[0].mxu0
      %v1576 = vpop.f32.mrb[0].mxu0
      %v1577 = vadd.f32 0.0, %v1576
      %v1578 = vpop.f32.mrb[0].mxu0
      %1579 = vmatprep.mubr.bf16.mxu0 0
      %1580 = vmatmul.mubr.bf16.gmra.mrb[0].mxu0 %v1457
      %v1581 = vpop.f32.mrb[0].mxu0
      %v1582 = vadd.f32 0.0, %v1581
      %v1583 = vpop.f32.mrb[0].mxu0
      %v1584 = vpop.f32.mrb[0].mxu0
      %v1585 = vadd.f32 0.0, %v1584
      %v1586 = vpop.f32.mrb[0].mxu0
      %1587 = vmatprep.mubr.bf16.mxu0 0
      %1588 = vmatmul.mubr.bf16.gmra.mrb[0].mxu0 %v1458
      %v1589 = vpop.f32.mrb[0].mxu0
      %v1590 = vadd.f32 0.0, %v1589
      %v1591 = vpop.f32.mrb[0].mxu0
      %v1592 = vpop.f32.mrb[0].mxu0
      %v1593 = vadd.f32 0.0, %v1592
      %v1594 = vpop.f32.mrb[0].mxu0
      %1595 = vmatprep.mubr.bf16.mxu0 0
      %1596 = vmatmul.mubr.bf16.gmra.mrb[0].mxu0 %v1459
      %v1597 = vpop.f32.mrb[0].mxu0
      %v1598 = vadd.f32 0.0, %v1597
      %v1599 = vpop.f32.mrb[0].mxu0
      %v1600 = vpop.f32.mrb[0].mxu0
      %v1601 = vadd.f32 0.0, %v1600
      %v1602 = vpop.f32.mrb[0].mxu0
      %1603 = vmatprep.mubr.bf16.mxu0 0
      %1604 = vmatmul.mubr.bf16.gmra.mrb[0].mxu0 %v1460
      %v1605 = vpop.f32.mrb[0].mxu0
      %v1606 = vadd.f32 0.0, %v1605
      %v1607 = vpop.f32.mrb[0].mxu0
      %v1608 = vpop.f32.mrb[0].mxu0
      %v1609 = vadd.f32 0.0, %v1608
      %v1610 = vpop.f32.mrb[0].mxu0
      %1611 = vmatprep.mubr.bf16.mxu0 0
      %1612 = vmatmul.mubr.bf16.gmra.mrb[0].mxu0 %v1461
      %v1613 = vpop.f32.mrb[0].mxu0
      %v1614 = vadd.f32 0.0, %v1613
      %v1615 = vpop.f32.mrb[0].mxu0
      %v1616 = vpop.f32.mrb[0].mxu0
      %v1617 = vadd.f32 0.0, %v1616
      %v1618 = vpop.f32.mrb[0].mxu0
      %1619 = vmatprep.mubr.bf16.mxu0 0
      %1620 = vmatmul.mubr.bf16.gmra.mrb[0].mxu0 %v1462
      %v1621 = vpop.f32.mrb[0].mxu0
      %v1622 = vadd.f32 0.0, %v1621
      %v1623 = vpop.f32.mrb[0].mxu0
      %v1624 = vpop.f32.mrb[0].mxu0
      %v1625 = vadd.f32 0.0, %v1624
      %v1626 = vpop.f32.mrb[0].mxu0
      %1627 = vmatprep.mubr.bf16.mxu0 0
      %1628 = vmatmul.mubr.bf16.gmra.mrb[0].mxu0 %v1463
      %v1629 = vpop.f32.mrb[0].mxu0
      %v1630 = vadd.f32 0.0, %v1629
      %v1631 = vpop.f32.mrb[0].mxu0
      %v1632 = vpop.f32.mrb[0].mxu0
      %v1633 = vadd.f32 0.0, %v1632
      %v1634 = vpop.f32.mrb[0].mxu0
      %1635 = vmatprep.mubr.bf16.mxu0 0
      %1636 = vmatmul.mubr.bf16.gmra.mrb[0].mxu0 %v1464
      %v1637 = vpop.f32.mrb[0].mxu0
      %v1638 = vadd.f32 0.0, %v1637
      %v1639 = vpop.f32.mrb[0].mxu0
      %v1640 = vpop.f32.mrb[0].mxu0
      %v1641 = vadd.f32 0.0, %v1640
      %v1642 = vpop.f32.mrb[0].mxu0
      %1643 = vmatprep.mubr.bf16.mxu0 0
      %1644 = vmatmul.mubr.bf16.gmra.mrb[0].mxu0 %v1465
      %v1645 = vpop.f32.mrb[0].mxu0
      %v1646 = vadd.f32 0.0, %v1645
      %v1647 = vpop.f32.mrb[0].mxu0
      %v1648 = vpop.f32.mrb[0].mxu0
      %v1649 = vadd.f32 0.0, %v1648
      %v1650 = vpop.f32.mrb[0].mxu0
      %1651 = vmatprep.mubr.bf16.mxu0 0
      %1652 = vmatmul.mubr.bf16.gmra.mrb[0].mxu0 %v1466
      %v1653 = vpop.f32.mrb[0].mxu0
      %v1654 = vadd.f32 0.0, %v1653
      %v1655 = vpop.f32.mrb[0].mxu0
      %v1656 = vpop.f32.mrb[0].mxu0
      %v1657 = vadd.f32 0.0, %v1656
      %v1658 = vpop.f32.mrb[0].mxu0
      %1659 = vmatprep.mubr.bf16.mxu0 0
      %1660 = vmatmul.mubr.bf16.gmra.mrb[0].mxu0 %v1467
      %v1661 = vpop.f32.mrb[0].mxu0
      %v1662 = vadd.f32 0.0, %v1661
      %v1663 = vpop.f32.mrb[0].mxu0
      %v1664 = vpop.f32.mrb[0].mxu0
      %v1665 = vadd.f32 0.0, %v1664
      %v1666 = vpop.f32.mrb[0].mxu0
      %1667 = vmatprep.mubr.bf16.mxu0 0
      %1668 = vmatmul.mubr.bf16.gmra.mrb[0].mxu0 %v1468
      %v1669 = vpop.f32.mrb[0].mxu0
      %v1670 = vadd.f32 0.0, %v1669
      %v1671 = vpop.f32.mrb[0].mxu0
      %v1672 = vpop.f32.mrb[0].mxu0
      %v1673 = vadd.f32 0.0, %v1672
      %v1674 = vpop.f32.mrb[0].mxu0
      %1675 = vmatprep.mubr.bf16.mxu0 0
      %1676 = vmatmul.mubr.bf16.gmra.mrb[0].mxu0 %v1469
      %v1677 = vpop.f32.mrb[0].mxu0
      %v1678 = vadd.f32 0.0, %v1677
      %v1679 = vpop.f32.mrb[0].mxu0
      %v1680 = vpop.f32.mrb[0].mxu0
      %v1681 = vadd.f32 0.0, %v1680
      %v1682 = vpop.f32.mrb[0].mxu0
      %1683 = vmatprep.mubr.bf16.mxu0 0
      %1684 = vmatmul.mubr.bf16.gmra.mrb[0].mxu0 %v1470
      %v1685 = vpop.f32.mrb[0].mxu0
      %v1686 = vadd.f32 0.0, %v1685
      %v1687 = vpop.f32.mrb[0].mxu0
      %v1688 = vpop.f32.mrb[0].mxu0
      %v1689 = vadd.f32 0.0, %v1688
      %v1690 = vpop.f32.mrb[0].mxu0
      %1691 = vmatprep.mubr.bf16.mxu0 0
      %1692 = vmatmul.mubr.bf16.gmra.mrb[0].mxu0 %v1471
      %v1693 = vpop.f32.mrb[0].mxu0
      %v1694 = vadd.f32 0.0, %v1693
      %v1695 = vpop.f32.mrb[0].mxu0
      %v1696 = vpop.f32.mrb[0].mxu0
      %v1697 = vadd.f32 0.0, %v1696
      %v1698 = vpop.f32.mrb[0].mxu0
      %1699 = vmatprep.mubr.bf16.mxu0 0
      %1700 = vmatmul.mubr.bf16.gmra.mrb[0].mxu0 %v1472
      %v1701 = vpop.f32.mrb[0].mxu0
      %v1702 = vadd.f32 0.0, %v1701
      %v1703 = vpop.f32.mrb[0].mxu0
      %v1704 = vpop.f32.mrb[0].mxu0
      %v1705 = vadd.f32 0.0, %v1704
      %v1706 = vpop.f32.mrb[0].mxu0
      %1707 = vmatprep.mubr.bf16.mxu0 0
      %1708 = vmatmul.mubr.bf16.gmra.mrb[0].mxu0 %v1473
      %v1709 = vpop.f32.mrb[0].mxu0
      %v1710 = vadd.f32 0.0, %v1709
      %v1711 = vpop.f32.mrb[0].mxu0
      %v1712 = vpop.f32.mrb[0].mxu0
      %v1713 = vadd.f32 0.0, %v1712
      %v1714 = vpop.f32.mrb[0].mxu0
      %1715 = vmatprep.mubr.bf16.mxu0 0
      %1716 = vmatmul.mubr.bf16.gmra.mrb[0].mxu0 %v1474
      %v1717 = vpop.f32.mrb[0].mxu0
      %v1718 = vadd.f32 0.0, %v1717
      %v1719 = vpop.f32.mrb[0].mxu0
      %v1720 = vpop.f32.mrb[0].mxu0
      %v1721 = vadd.f32 0.0, %v1720
      %v1722 = vpop.f32.mrb[0].mxu0
      %1723 = vdwg.mxu0
      %v1724 = vpack.c.bf16 %v1601, %v1598
      %v1725 = vpack.c.bf16 %v1609, %v1606
      %v1726 = vpack.c.bf16 %v1617, %v1614
      %v1727 = vpack.c.bf16 %v1625, %v1622
      %v1728 = vpack.c.bf16 %v1633, %v1630
      %v1729 = vpack.c.bf16 %v1641, %v1638
      %v1730 = vpack.c.bf16 %v1649, %v1646
      %v1731 = vpack.c.bf16 %v1657, %v1654
      %v1732 = vpack.c.bf16 %v1665, %v1662
      %v1733 = vpack.c.bf16 %v1673, %v1670
      %v1734 = vpack.c.bf16 %v1681, %v1678
      %v1735 = vpack.c.bf16 %v1689, %v1686
      %v1736 = vpack.c.bf16 %v1697, %v1694
      %v1737 = vpack.c.bf16 %v1705, %v1702
      %v1738 = vpack.c.bf16 %v1713, %v1710
      %v1739 = vpack.c.bf16 %v1721, %v1718
      %1740 = vxpose.xlu0.b32.start [1/16] %v1534, 128
      %1741 = vxpose.xlu0.b32.cont [2/16] %v1537, 128
      %1742 = vxpose.xlu0.b32.cont [3/16] %v1542, 128
      %1743 = vxpose.xlu0.b32.cont [4/16] %v1545, 128
      %1744 = vxpose.xlu0.b32.cont [5/16] %v1550, 128
      %1745 = vxpose.xlu0.b32.cont [6/16] %v1553, 128
      %1746 = vxpose.xlu0.b32.cont [7/16] %v1558, 128
      %1747 = vxpose.xlu0.b32.cont [8/16] %v1561, 128
      %1748 = vxpose.xlu0.b32.cont [9/16] 0.0, 128
      %1749 = vxpose.xlu0.b32.cont [10/16] 0.0, 128
      %1750 = vxpose.xlu0.b32.cont [11/16] 0.0, 128
      %1751 = vxpose.xlu0.b32.cont [12/16] 0.0, 128
      %1752 = vxpose.xlu0.b32.cont [13/16] 0.0, 128
      %1753 = vxpose.xlu0.b32.cont [14/16] 0.0, 128
      %1754 = vxpose.xlu0.b32.cont [15/16] 0.0, 128
      %1755 = vxpose.xlu0.b32.end [16/16] 0.0, 128
      %v1756 = vpop.trf.xlu0
      %v1757 = vpop.trf.xlu0
      %v1758 = vpop.trf.xlu0
      %v1759 = vpop.trf.xlu0
      %v1760 = vpop.trf.xlu0
      %v1761 = vpop.trf.xlu0
      %v1762 = vpop.trf.xlu0
      %v1763 = vpop.trf.xlu0
      %v1764 = vpop.trf.xlu0
      %v1765 = vpop.trf.xlu0
      %v1766 = vpop.trf.xlu0
      %v1767 = vpop.trf.xlu0
      %v1768 = vpop.trf.xlu0
      %v1769 = vpop.trf.xlu0
      %v1770 = vpop.trf.xlu0
      %v1771 = vpop.trf.xlu0
      %1772 = vxpose.xlu0.b32.start [1/16] %v1566, 128
      %1773 = vxpose.xlu0.b32.cont [2/16] %v1569, 128
      %1774 = vxpose.xlu0.b32.cont [3/16] %v1574, 128
      %1775 = vxpose.xlu0.b32.cont [4/16] %v1577, 128
      %1776 = vxpose.xlu0.b32.cont [5/16] %v1582, 128
      %1777 = vxpose.xlu0.b32.cont [6/16] %v1585, 128
      %1778 = vxpose.xlu0.b32.cont [7/16] %v1590, 128
      %1779 = vxpose.xlu0.b32.cont [8/16] %v1593, 128
      %1780 = vxpose.xlu0.b32.cont [9/16] 0.0, 128
      %1781 = vxpose.xlu0.b32.cont [10/16] 0.0, 128
      %1782 = vxpose.xlu0.b32.cont [11/16] 0.0, 128
      %1783 = vxpose.xlu0.b32.cont [12/16] 0.0, 128
      %1784 = vxpose.xlu0.b32.cont [13/16] 0.0, 128
      %1785 = vxpose.xlu0.b32.cont [14/16] 0.0, 128
      %1786 = vxpose.xlu0.b32.cont [15/16] 0.0, 128
      %1787 = vxpose.xlu0.b32.end [16/16] 0.0, 128
      %v1788 = vpop.trf.xlu0
      %v1789 = vpop.trf.xlu0
      %v1790 = vpop.trf.xlu0
      %v1791 = vpop.trf.xlu0
      %v1792 = vpop.trf.xlu0
      %v1793 = vpop.trf.xlu0
      %v1794 = vpop.trf.xlu0
      %v1795 = vpop.trf.xlu0
      %v1796 = vpop.trf.xlu0
      %v1797 = vpop.trf.xlu0
      %v1798 = vpop.trf.xlu0
      %v1799 = vpop.trf.xlu0
      %v1800 = vpop.trf.xlu0
      %v1801 = vpop.trf.xlu0
      %v1802 = vpop.trf.xlu0
      %v1803 = vpop.trf.xlu0
      %v1804 = vpack.c.bf16 %v1757, %v1756
      %v1805 = vpack.c.bf16 %v1759, %v1758
      %v1806 = vpack.c.bf16 %v1761, %v1760
      %v1807 = vpack.c.bf16 %v1763, %v1762
      %v1808 = vpack.c.bf16 %v1789, %v1788
      %v1809 = vpack.c.bf16 %v1791, %v1790
      %v1810 = vpack.c.bf16 %v1793, %v1792
      %v1811 = vpack.c.bf16 %v1795, %v1794
      %vm1812 = vcmask 523264
      %v1814 = vsel %vm1812, %v1804, 0
      %v1817 = vsel %vm1812, %v1805, 0
      %v1820 = vsel %vm1812, %v1806, 0
      %v1823 = vsel %vm1812, %v1807, 0
      %1825 = vmatprep.subr.bf16.mxu0 0
      %1826 = vmatpush1.bf16.msra.mxu0 %v1724
      %1827 = vmatprep.subr.bf16.mxu0 0
      %1828 = vmatpush1.bf16.msra.mxu0 %v1725
      %1829 = vmatprep.subr.bf16.mxu0 0
      %1830 = vmatpush1.bf16.msra.mxu0 %v1726
      %1831 = vmatprep.subr.bf16.mxu0 0
      %1832 = vmatpush1.bf16.msra.mxu0 %v1727
      %1833 = vmatprep.subr.bf16.mxu0 0
      %1834 = vmatpush1.bf16.msra.mxu0 0
      %1835 = vmatprep.subr.bf16.mxu0 0
      %1836 = vmatpush1.bf16.msra.mxu0 0
      %1837 = vmatprep.subr.bf16.mxu0 0
      %1838 = vmatpush1.bf16.msra.mxu0 0
      %1839 = vmatprep.subr.bf16.mxu0 0
      %1840 = vmatpush1.bf16.msra.mxu0 0
      %1841 = vmatprep.subr.bf16.mxu0 0
      %1842 = vmatpush1.bf16.msra.mxu0 0
      %1843 = vmatprep.subr.bf16.mxu0 0
      %1844 = vmatpush1.bf16.msra.mxu0 0
      %1845 = vmatprep.subr.bf16.mxu0 0
      %1846 = vmatpush1.bf16.msra.mxu0 0
      %1847 = vmatprep.subr.bf16.mxu0 0
      %1848 = vmatpush1.bf16.msra.mxu0 0
      %1849 = vmatprep.subr.bf16.mxu0 0
      %1850 = vmatpush1.bf16.msra.mxu0 0
      %1851 = vmatprep.subr.bf16.mxu0 0
      %1852 = vmatpush1.bf16.msra.mxu0 0
      %1853 = vmatprep.subr.bf16.mxu0 0
      %1854 = vmatpush1.bf16.msra.mxu0 0
      %1855 = vmatprep.subr.bf16.mxu0 0
      %1856 = vmatpush1.bf16.msra.mxu0 0
      %1857 = vmatprep.mubr.bf16.mxu0 0
      %1858 = vmatmul.mubr.bf16.gmra.mrb[0].mxu0 %v1814
      %v1859 = vpop.f32.mrb[0].mxu0
      %v1860 = vadd.f32 0.0, %v1859
      %v1861 = vpop.f32.mrb[0].mxu0
      %v1862 = vpop.f32.mrb[0].mxu0
      %v1863 = vadd.f32 0.0, %v1862
      %v1864 = vpop.f32.mrb[0].mxu0
      %1865 = vmatprep.mubr.bf16.mxu0 0
      %1866 = vmatmul.mubr.bf16.gmra.mrb[0].mxu0 %v1817
      %v1867 = vpop.f32.mrb[0].mxu0
      %v1868 = vadd.f32 0.0, %v1867
      %v1869 = vpop.f32.mrb[0].mxu0
      %v1870 = vpop.f32.mrb[0].mxu0
      %v1871 = vadd.f32 0.0, %v1870
      %v1872 = vpop.f32.mrb[0].mxu0
      %1873 = vmatprep.mubr.bf16.mxu0 0
      %1874 = vmatmul.mubr.bf16.gmra.mrb[0].mxu0 %v1820
      %v1875 = vpop.f32.mrb[0].mxu0
      %v1876 = vadd.f32 0.0, %v1875
      %v1877 = vpop.f32.mrb[0].mxu0
      %v1878 = vpop.f32.mrb[0].mxu0
      %v1879 = vadd.f32 0.0, %v1878
      %v1880 = vpop.f32.mrb[0].mxu0
      %1881 = vmatprep.mubr.bf16.mxu0 0
      %1882 = vmatmul.mubr.bf16.gmra.mrb[0].mxu0 %v1823
      %v1883 = vpop.f32.mrb[0].mxu0
      %v1884 = vadd.f32 0.0, %v1883
      %v1885 = vpop.f32.mrb[0].mxu0
      %v1886 = vpop.f32.mrb[0].mxu0
      %v1887 = vadd.f32 0.0, %v1886
      %v1888 = vpop.f32.mrb[0].mxu0
      %1889 = vdwg.mxu0
      %v1891 = vsel %vm1812, %v1808, 0
      %v1894 = vsel %vm1812, %v1809, 0
      %v1897 = vsel %vm1812, %v1810, 0
      %v1900 = vsel %vm1812, %v1811, 0
      %1902 = vmatprep.subr.bf16.mxu0 0
      %1903 = vmatpush1.bf16.msra.mxu0 %v1728
      %1904 = vmatprep.subr.bf16.mxu0 0
      %1905 = vmatpush1.bf16.msra.mxu0 %v1729
      %1906 = vmatprep.subr.bf16.mxu0 0
      %1907 = vmatpush1.bf16.msra.mxu0 %v1730
      %1908 = vmatprep.subr.bf16.mxu0 0
      %1909 = vmatpush1.bf16.msra.mxu0 %v1731
      %1910 = vmatprep.subr.bf16.mxu0 0
      %1911 = vmatpush1.bf16.msra.mxu0 0
      %1912 = vmatprep.subr.bf16.mxu0 0
      %1913 = vmatpush1.bf16.msra.mxu0 0
      %1914 = vmatprep.subr.bf16.mxu0 0
      %1915 = vmatpush1.bf16.msra.mxu0 0
      %1916 = vmatprep.subr.bf16.mxu0 0
      %1917 = vmatpush1.bf16.msra.mxu0 0
      %1918 = vmatprep.subr.bf16.mxu0 0
      %1919 = vmatpush1.bf16.msra.mxu0 0
      %1920 = vmatprep.subr.bf16.mxu0 0
      %1921 = vmatpush1.bf16.msra.mxu0 0
      %1922 = vmatprep.subr.bf16.mxu0 0
      %1923 = vmatpush1.bf16.msra.mxu0 0
      %1924 = vmatprep.subr.bf16.mxu0 0
      %1925 = vmatpush1.bf16.msra.mxu0 0
      %1926 = vmatprep.subr.bf16.mxu0 0
      %1927 = vmatpush1.bf16.msra.mxu0 0
      %1928 = vmatprep.subr.bf16.mxu0 0
      %1929 = vmatpush1.bf16.msra.mxu0 0
      %1930 = vmatprep.subr.bf16.mxu0 0
      %1931 = vmatpush1.bf16.msra.mxu0 0
      %1932 = vmatprep.subr.bf16.mxu0 0
      %1933 = vmatpush1.bf16.msra.mxu0 0
      %1934 = vmatprep.mubr.bf16.mxu0 0
      %1935 = vmatmul.mubr.bf16.gmra.mrb[0].mxu0 %v1891
      %v1936 = vpop.f32.mrb[0].mxu0
      %v1937 = vadd.f32 0.0, %v1936
      %v1938 = vpop.f32.mrb[0].mxu0
      %v1939 = vpop.f32.mrb[0].mxu0
      %v1940 = vadd.f32 0.0, %v1939
      %v1941 = vpop.f32.mrb[0].mxu0
      %1942 = vmatprep.mubr.bf16.mxu0 0
      %1943 = vmatmul.mubr.bf16.gmra.mrb[0].mxu0 %v1894
      %v1944 = vpop.f32.mrb[0].mxu0
      %v1945 = vadd.f32 0.0, %v1944
      %v1946 = vpop.f32.mrb[0].mxu0
      %v1947 = vpop.f32.mrb[0].mxu0
      %v1948 = vadd.f32 0.0, %v1947
      %v1949 = vpop.f32.mrb[0].mxu0
      %1950 = vmatprep.mubr.bf16.mxu0 0
      %1951 = vmatmul.mubr.bf16.gmra.mrb[0].mxu0 %v1897
      %v1952 = vpop.f32.mrb[0].mxu0
      %v1953 = vadd.f32 0.0, %v1952
      %v1954 = vpop.f32.mrb[0].mxu0
      %v1955 = vpop.f32.mrb[0].mxu0
      %v1956 = vadd.f32 0.0, %v1955
      %v1957 = vpop.f32.mrb[0].mxu0
      %1958 = vmatprep.mubr.bf16.mxu0 0
      %1959 = vmatmul.mubr.bf16.gmra.mrb[0].mxu0 %v1900
      %v1960 = vpop.f32.mrb[0].mxu0
      %v1961 = vadd.f32 0.0, %v1960
      %v1962 = vpop.f32.mrb[0].mxu0
      %v1963 = vpop.f32.mrb[0].mxu0
      %v1964 = vadd.f32 0.0, %v1963
      %v1965 = vpop.f32.mrb[0].mxu0
      %1966 = vdwg.mxu0
      %v1967 = vmul.f32 %v1860, 0.125
      %v1968 = vmul.f32 %v1863, 0.125
      %v1969 = vmul.f32 %v1868, 0.125
      %v1970 = vmul.f32 %v1871, 0.125
      %v1971 = vmul.f32 %v1876, 0.125
      %v1972 = vmul.f32 %v1879, 0.125
      %v1973 = vmul.f32 %v1884, 0.125
      %v1974 = vmul.f32 %v1887, 0.125
      %v1975 = vmul.f32 %v1937, 0.125
      %v1976 = vmul.f32 %v1940, 0.125
      %v1977 = vmul.f32 %v1945, 0.125
      %v1978 = vmul.f32 %v1948, 0.125
      %v1979 = vmul.f32 %v1953, 0.125
      %v1980 = vmul.f32 %v1956, 0.125
      %v1981 = vmul.f32 %v1961, 0.125
      %v1982 = vmul.f32 %v1964, 0.125
      %v1983 = vsel %vm1812, %v1967, -inf
      %1984 = vmax.xlane.f32.xlu0 %v1983
      %v1985 = vpop.xlane.xlu0 %1984
      %v1986 = vsel %vm1812, %v1968, -inf
      %1987 = vmax.xlane.f32.xlu0 %v1986
      %v1988 = vpop.xlane.xlu0 %1987
      %v1989 = vsel %vm1812, %v1969, -inf
      %1990 = vmax.xlane.f32.xlu0 %v1989
      %v1991 = vpop.xlane.xlu0 %1990
      %v1992 = vsel %vm1812, %v1970, -inf
      %1993 = vmax.xlane.f32.xlu0 %v1992
      %v1994 = vpop.xlane.xlu0 %1993
      %v1995 = vsel %vm1812, %v1971, -inf
      %1996 = vmax.xlane.f32.xlu0 %v1995
      %v1997 = vpop.xlane.xlu0 %1996
      %v1998 = vsel %vm1812, %v1972, -inf
      %1999 = vmax.xlane.f32.xlu0 %v1998
      %v2000 = vpop.xlane.xlu0 %1999
      %v2001 = vsel %vm1812, %v1973, -inf
      %2002 = vmax.xlane.f32.xlu0 %v2001
      %v2003 = vpop.xlane.xlu0 %2002
      %v2004 = vsel %vm1812, %v1974, -inf
      %2005 = vmax.xlane.f32.xlu0 %v2004
      %v2006 = vpop.xlane.xlu0 %2005
      %v2007 = vsel %vm1812, %v1975, -inf
      %2008 = vmax.xlane.f32.xlu0 %v2007
      %v2009 = vpop.xlane.xlu0 %2008
      %v2010 = vsel %vm1812, %v1976, -inf
      %2011 = vmax.xlane.f32.xlu0 %v2010
      %v2012 = vpop.xlane.xlu0 %2011
      %v2013 = vsel %vm1812, %v1977, -inf
      %2014 = vmax.xlane.f32.xlu0 %v2013
      %v2015 = vpop.xlane.xlu0 %2014
      %v2016 = vsel %vm1812, %v1978, -inf
      %2017 = vmax.xlane.f32.xlu0 %v2016
      %v2018 = vpop.xlane.xlu0 %2017
      %v2019 = vsel %vm1812, %v1979, -inf
      %2020 = vmax.xlane.f32.xlu0 %v2019
      %v2021 = vpop.xlane.xlu0 %2020
      %v2022 = vsel %vm1812, %v1980, -inf
      %2023 = vmax.xlane.f32.xlu0 %v2022
      %v2024 = vpop.xlane.xlu0 %2023
      %v2025 = vsel %vm1812, %v1981, -inf
      %2026 = vmax.xlane.f32.xlu0 %v2025
      %v2027 = vpop.xlane.xlu0 %2026
      %v2028 = vsel %vm1812, %v1982, -inf
      %2029 = vmax.xlane.f32.xlu0 %v2028
      %v2030 = vpop.xlane.xlu0 %2029
      %v2031 = vsub.f32 %v1967, %v1985
      %v2032 = vsub.f32 %v1968, %v1988
      %v2033 = vsub.f32 %v1969, %v1991
      %v2034 = vsub.f32 %v1970, %v1994
      %v2035 = vsub.f32 %v1971, %v1997
      %v2036 = vsub.f32 %v1972, %v2000
      %v2037 = vsub.f32 %v1973, %v2003
      %v2038 = vsub.f32 %v1974, %v2006
      %v2039 = vsub.f32 %v1975, %v2009
      %v2040 = vsub.f32 %v1976, %v2012
      %v2041 = vsub.f32 %v1977, %v2015
      %v2042 = vsub.f32 %v1978, %v2018
      %v2043 = vsub.f32 %v1979, %v2021
      %v2044 = vsub.f32 %v1980, %v2024
      %v2045 = vsub.f32 %v1981, %v2027
      %v2046 = vsub.f32 %v1982, %v2030
      %v2047 = vmul.f32 %v2031, 1.442695
      %v2048 = vpow.pop %v2047
      %v2049 = vmul.f32 %v2032, 1.442695
      %v2050 = vpow.pop %v2049
      %v2051 = vmul.f32 %v2033, 1.442695
      %v2052 = vpow.pop %v2051
      %v2053 = vmul.f32 %v2034, 1.442695
      %v2054 = vpow.pop %v2053
      %v2055 = vmul.f32 %v2035, 1.442695
      %v2056 = vpow.pop %v2055
      %v2057 = vmul.f32 %v2036, 1.442695
      %v2058 = vpow.pop %v2057
      %v2059 = vmul.f32 %v2037, 1.442695
      %v2060 = vpow.pop %v2059
      %v2061 = vmul.f32 %v2038, 1.442695
      %v2062 = vpow.pop %v2061
      %v2063 = vmul.f32 %v2039, 1.442695
      %v2064 = vpow.pop %v2063
      %v2065 = vmul.f32 %v2040, 1.442695
      %v2066 = vpow.pop %v2065
      %v2067 = vmul.f32 %v2041, 1.442695
      %v2068 = vpow.pop %v2067
      %v2069 = vmul.f32 %v2042, 1.442695
      %v2070 = vpow.pop %v2069
      %v2071 = vmul.f32 %v2043, 1.442695
      %v2072 = vpow.pop %v2071
      %v2073 = vmul.f32 %v2044, 1.442695
      %v2074 = vpow.pop %v2073
      %v2075 = vmul.f32 %v2045, 1.442695
      %v2076 = vpow.pop %v2075
      %v2077 = vmul.f32 %v2046, 1.442695
      %v2078 = vpow.pop %v2077
      %v2079 = vsel %vm1812, %v2048, 0.0
      %2080 = vadd.xlane.f32.xlu0 %v2079
      %v2081 = vpop.xlane.xlu0 %2080
      %v2082 = vsel %vm1812, %v2050, 0.0
      %2083 = vadd.xlane.f32.xlu0 %v2082
      %v2084 = vpop.xlane.xlu0 %2083
      %v2085 = vsel %vm1812, %v2052, 0.0
      %2086 = vadd.xlane.f32.xlu0 %v2085
      %v2087 = vpop.xlane.xlu0 %2086
      %v2088 = vsel %vm1812, %v2054, 0.0
      %2089 = vadd.xlane.f32.xlu0 %v2088
      %v2090 = vpop.xlane.xlu0 %2089
      %v2091 = vsel %vm1812, %v2056, 0.0
      %2092 = vadd.xlane.f32.xlu0 %v2091
      %v2093 = vpop.xlane.xlu0 %2092
      %v2094 = vsel %vm1812, %v2058, 0.0
      %2095 = vadd.xlane.f32.xlu0 %v2094
      %v2096 = vpop.xlane.xlu0 %2095
      %v2097 = vsel %vm1812, %v2060, 0.0
      %2098 = vadd.xlane.f32.xlu0 %v2097
      %v2099 = vpop.xlane.xlu0 %2098
      %v2100 = vsel %vm1812, %v2062, 0.0
      %2101 = vadd.xlane.f32.xlu0 %v2100
      %v2102 = vpop.xlane.xlu0 %2101
      %v2103 = vsel %vm1812, %v2064, 0.0
      %2104 = vadd.xlane.f32.xlu0 %v2103
      %v2105 = vpop.xlane.xlu0 %2104
      %v2106 = vsel %vm1812, %v2066, 0.0
      %2107 = vadd.xlane.f32.xlu0 %v2106
      %v2108 = vpop.xlane.xlu0 %2107
      %v2109 = vsel %vm1812, %v2068, 0.0
      %2110 = vadd.xlane.f32.xlu0 %v2109
      %v2111 = vpop.xlane.xlu0 %2110
      %v2112 = vsel %vm1812, %v2070, 0.0
      %2113 = vadd.xlane.f32.xlu0 %v2112
      %v2114 = vpop.xlane.xlu0 %2113
      %v2115 = vsel %vm1812, %v2072, 0.0
      %2116 = vadd.xlane.f32.xlu0 %v2115
      %v2117 = vpop.xlane.xlu0 %2116
      %v2118 = vsel %vm1812, %v2074, 0.0
      %2119 = vadd.xlane.f32.xlu0 %v2118
      %v2120 = vpop.xlane.xlu0 %2119
      %v2121 = vsel %vm1812, %v2076, 0.0
      %2122 = vadd.xlane.f32.xlu0 %v2121
      %v2123 = vpop.xlane.xlu0 %2122
      %v2124 = vsel %vm1812, %v2078, 0.0
      %2125 = vadd.xlane.f32.xlu0 %v2124
      %v2126 = vpop.xlane.xlu0 %2125
      %v2127 = vrcp.pop %v2081
      %v2128 = vrcp.pop %v2084
      %v2129 = vrcp.pop %v2087
      %v2130 = vrcp.pop %v2090
      %v2131 = vrcp.pop %v2093
      %v2132 = vrcp.pop %v2096
      %v2133 = vrcp.pop %v2099
      %v2134 = vrcp.pop %v2102
      %v2135 = vrcp.pop %v2105
      %v2136 = vrcp.pop %v2108
      %v2137 = vrcp.pop %v2111
      %v2138 = vrcp.pop %v2114
      %v2139 = vrcp.pop %v2117
      %v2140 = vrcp.pop %v2120
      %v2141 = vrcp.pop %v2123
      %v2142 = vrcp.pop %v2126
      %v2143 = vmul.f32 %v2048, %v2127
      %v2144 = vmul.f32 %v2050, %v2128
      %v2145 = vmul.f32 %v2052, %v2129
      %v2146 = vmul.f32 %v2054, %v2130
      %v2147 = vmul.f32 %v2056, %v2131
      %v2148 = vmul.f32 %v2058, %v2132
      %v2149 = vmul.f32 %v2060, %v2133
      %v2150 = vmul.f32 %v2062, %v2134
      %v2151 = vmul.f32 %v2064, %v2135
      %v2152 = vmul.f32 %v2066, %v2136
      %v2153 = vmul.f32 %v2068, %v2137
      %v2154 = vmul.f32 %v2070, %v2138
      %v2155 = vmul.f32 %v2072, %v2139
      %v2156 = vmul.f32 %v2074, %v2140
      %v2157 = vmul.f32 %v2076, %v2141
      %v2158 = vmul.f32 %v2078, %v2142
      %v2159 = vpack.c.bf16 %v2144, %v2143
      %v2160 = vpack.c.bf16 %v2146, %v2145
      %v2161 = vpack.c.bf16 %v2148, %v2147
      %v2162 = vpack.c.bf16 %v2150, %v2149
      %v2163 = vpack.c.bf16 %v2152, %v2151
      %v2164 = vpack.c.bf16 %v2154, %v2153
      %v2165 = vpack.c.bf16 %v2156, %v2155
      %v2166 = vpack.c.bf16 %v2158, %v2157
      %v2168 = vsel %vm1812, %v2159, 0
      %v2171 = vsel %vm1812, %v2160, 0
      %v2174 = vsel %vm1812, %v2161, 0
      %v2177 = vsel %vm1812, %v2162, 0
      %v2180 = vsel %vm1812, %v1732, 0
      %v2183 = vsel %vm1812, %v1733, 0
      %v2186 = vsel %vm1812, %v1734, 0
      %v2189 = vsel %vm1812, %v1735, 0
      %2191 = vmatprep.subr.bf16.mxu0 0
      %2192 = vmatpush1.bf16.xpose.msra.mxu0 %v2180
      %2193 = vmatprep.subr.bf16.mxu0 0
      %2194 = vmatpush1.bf16.xpose.msra.mxu0 %v2183
      %2195 = vmatprep.subr.bf16.mxu0 0
      %2196 = vmatpush1.bf16.xpose.msra.mxu0 %v2186
      %2197 = vmatprep.subr.bf16.mxu0 0
      %2198 = vmatpush1.bf16.xpose.msra.mxu0 %v2189
      %2199 = vmatprep.subr.bf16.mxu0 0
      %2200 = vmatpush1.bf16.xpose.msra.mxu0 0
      %2201 = vmatprep.subr.bf16.mxu0 0
      %2202 = vmatpush1.bf16.xpose.msra.mxu0 0
      %2203 = vmatprep.subr.bf16.mxu0 0
      %2204 = vmatpush1.bf16.xpose.msra.mxu0 0
      %2205 = vmatprep.subr.bf16.mxu0 0
      %2206 = vmatpush1.bf16.xpose.msra.mxu0 0
      %2207 = vmatprep.subr.bf16.mxu0 0
      %2208 = vmatpush1.bf16.xpose.msra.mxu0 0
      %2209 = vmatprep.subr.bf16.mxu0 0
      %2210 = vmatpush1.bf16.xpose.msra.mxu0 0
      %2211 = vmatprep.subr.bf16.mxu0 0
      %2212 = vmatpush1.bf16.xpose.msra.mxu0 0
      %2213 = vmatprep.subr.bf16.mxu0 0
      %2214 = vmatpush1.bf16.xpose.msra.mxu0 0
      %2215 = vmatprep.subr.bf16.mxu0 0
      %2216 = vmatpush1.bf16.xpose.msra.mxu0 0
      %2217 = vmatprep.subr.bf16.mxu0 0
      %2218 = vmatpush1.bf16.xpose.msra.mxu0 0
      %2219 = vmatprep.subr.bf16.mxu0 0
      %2220 = vmatpush1.bf16.xpose.msra.mxu0 0
      %2221 = vmatprep.subr.bf16.mxu0 0
      %2222 = vmatpush1.bf16.xpose.msra.mxu0 0
      %2223 = vmatprep.mubr.bf16.mxu0 0
      %2224 = vmatmul.mubr.bf16.gmra.mrb[0].mxu0 %v2168
      %v2225 = vpop.f32.mrb[0].mxu0
      %v2226 = vadd.f32 0.0, %v2225
      %v2227 = vpop.f32.mrb[0].mxu0
      %v2228 = vpop.f32.mrb[0].mxu0
      %v2229 = vadd.f32 0.0, %v2228
      %v2230 = vpop.f32.mrb[0].mxu0
      %2231 = vmatprep.mubr.bf16.mxu0 0
      %2232 = vmatmul.mubr.bf16.gmra.mrb[0].mxu0 %v2171
      %v2233 = vpop.f32.mrb[0].mxu0
      %v2234 = vadd.f32 0.0, %v2233
      %v2235 = vpop.f32.mrb[0].mxu0
      %v2236 = vpop.f32.mrb[0].mxu0
      %v2237 = vadd.f32 0.0, %v2236
      %v2238 = vpop.f32.mrb[0].mxu0
      %2239 = vmatprep.mubr.bf16.mxu0 0
      %2240 = vmatmul.mubr.bf16.gmra.mrb[0].mxu0 %v2174
      %v2241 = vpop.f32.mrb[0].mxu0
      %v2242 = vadd.f32 0.0, %v2241
      %v2243 = vpop.f32.mrb[0].mxu0
      %v2244 = vpop.f32.mrb[0].mxu0
      %v2245 = vadd.f32 0.0, %v2244
      %v2246 = vpop.f32.mrb[0].mxu0
      %2247 = vmatprep.mubr.bf16.mxu0 0
      %2248 = vmatmul.mubr.bf16.gmra.mrb[0].mxu0 %v2177
      %v2249 = vpop.f32.mrb[0].mxu0
      %v2250 = vadd.f32 0.0, %v2249
      %v2251 = vpop.f32.mrb[0].mxu0
      %v2252 = vpop.f32.mrb[0].mxu0
      %v2253 = vadd.f32 0.0, %v2252
      %v2254 = vpop.f32.mrb[0].mxu0
      %2255 = vdwg.mxu0
      %v2257 = vsel %vm1812, %v2163, 0
      %v2260 = vsel %vm1812, %v2164, 0
      %v2263 = vsel %vm1812, %v2165, 0
      %v2266 = vsel %vm1812, %v2166, 0
      %v2269 = vsel %vm1812, %v1736, 0
      %v2272 = vsel %vm1812, %v1737, 0
      %v2275 = vsel %vm1812, %v1738, 0
      %v2278 = vsel %vm1812, %v1739, 0
      %2280 = vmatprep.subr.bf16.mxu0 0
      %2281 = vmatpush1.bf16.xpose.msra.mxu0 %v2269
      %2282 = vmatprep.subr.bf16.mxu0 0
      %2283 = vmatpush1.bf16.xpose.msra.mxu0 %v2272
      %2284 = vmatprep.subr.bf16.mxu0 0
      %2285 = vmatpush1.bf16.xpose.msra.mxu0 %v2275
      %2286 = vmatprep.subr.bf16.mxu0 0
      %2287 = vmatpush1.bf16.xpose.msra.mxu0 %v2278
      %2288 = vmatprep.subr.bf16.mxu0 0
      %2289 = vmatpush1.bf16.xpose.msra.mxu0 0
      %2290 = vmatprep.subr.bf16.mxu0 0
      %2291 = vmatpush1.bf16.xpose.msra.mxu0 0
      %2292 = vmatprep.subr.bf16.mxu0 0
      %2293 = vmatpush1.bf16.xpose.msra.mxu0 0
      %2294 = vmatprep.subr.bf16.mxu0 0
      %2295 = vmatpush1.bf16.xpose.msra.mxu0 0
      %2296 = vmatprep.subr.bf16.mxu0 0
      %2297 = vmatpush1.bf16.xpose.msra.mxu0 0
      %2298 = vmatprep.subr.bf16.mxu0 0
      %2299 = vmatpush1.bf16.xpose.msra.mxu0 0
      %2300 = vmatprep.subr.bf16.mxu0 0
      %2301 = vmatpush1.bf16.xpose.msra.mxu0 0
      %2302 = vmatprep.subr.bf16.mxu0 0
      %2303 = vmatpush1.bf16.xpose.msra.mxu0 0
      %2304 = vmatprep.subr.bf16.mxu0 0
      %2305 = vmatpush1.bf16.xpose.msra.mxu0 0
      %2306 = vmatprep.subr.bf16.mxu0 0
      %2307 = vmatpush1.bf16.xpose.msra.mxu0 0
      %2308 = vmatprep.subr.bf16.mxu0 0
      %2309 = vmatpush1.bf16.xpose.msra.mxu0 0
      %2310 = vmatprep.subr.bf16.mxu0 0
      %2311 = vmatpush1.bf16.xpose.msra.mxu0 0
      %2312 = vmatprep.mubr.bf16.mxu0 0
      %2313 = vmatmul.mubr.bf16.gmra.mrb[0].mxu0 %v2257
      %v2314 = vpop.f32.mrb[0].mxu0
      %v2315 = vadd.f32 0.0, %v2314
      %v2316 = vpop.f32.mrb[0].mxu0
      %v2317 = vpop.f32.mrb[0].mxu0
      %v2318 = vadd.f32 0.0, %v2317
      %v2319 = vpop.f32.mrb[0].mxu0
      %2320 = vmatprep.mubr.bf16.mxu0 0
      %2321 = vmatmul.mubr.bf16.gmra.mrb[0].mxu0 %v2260
      %v2322 = vpop.f32.mrb[0].mxu0
      %v2323 = vadd.f32 0.0, %v2322
      %v2324 = vpop.f32.mrb[0].mxu0
      %v2325 = vpop.f32.mrb[0].mxu0
      %v2326 = vadd.f32 0.0, %v2325
      %v2327 = vpop.f32.mrb[0].mxu0
      %2328 = vmatprep.mubr.bf16.mxu0 0
      %2329 = vmatmul.mubr.bf16.gmra.mrb[0].mxu0 %v2263
      %v2330 = vpop.f32.mrb[0].mxu0
      %v2331 = vadd.f32 0.0, %v2330
      %v2332 = vpop.f32.mrb[0].mxu0
      %v2333 = vpop.f32.mrb[0].mxu0
      %v2334 = vadd.f32 0.0, %v2333
      %v2335 = vpop.f32.mrb[0].mxu0
      %2336 = vmatprep.mubr.bf16.mxu0 0
      %2337 = vmatmul.mubr.bf16.gmra.mrb[0].mxu0 %v2266
      %v2338 = vpop.f32.mrb[0].mxu0
      %v2339 = vadd.f32 0.0, %v2338
      %v2340 = vpop.f32.mrb[0].mxu0
      %v2341 = vpop.f32.mrb[0].mxu0
      %v2342 = vadd.f32 0.0, %v2341
      %v2343 = vpop.f32.mrb[0].mxu0
      %2344 = vdwg.mxu0
      %v2345 = vpack.c.bf16 %v2229, %v2226
      %v2346 = vpack.c.bf16 %v2237, %v2234
      %v2347 = vpack.c.bf16 %v2245, %v2242
      %v2348 = vpack.c.bf16 %v2253, %v2250
      %v2349 = vpack.c.bf16 %v2318, %v2315
      %v2350 = vpack.c.bf16 %v2326, %v2323
      %v2351 = vpack.c.bf16 %v2334, %v2331
      %v2352 = vpack.c.bf16 %v2342, %v2339
      %v2361 = vunpack.c.l.b16 %v1335
      %v2362 = vunpack.c.l.b16 %v1336
      %v2363 = vunpack.c.l.b16 %v1337
      %v2364 = vunpack.c.l.b16 %v1338
      %v2365 = vunpack.c.l.b16 %v1339
      %v2366 = vunpack.c.l.b16 %v1340
      %v2367 = vunpack.c.l.b16 %v1341
      %v2368 = vunpack.c.l.b16 %v1342
      %v2369 = vpack.c.b16 %v2362, %v2361
      %v2370 = vpack.c.b16 %v2364, %v2363
      %v2371 = vpack.c.b16 %v2366, %v2365
      %v2372 = vpack.c.b16 %v2368, %v2367
      %v2378 = vsel %vm1812, %v2345, 0
      %v2381 = vsel %vm1812, %v2346, 0
      %v2384 = vsel %vm1812, %v2347, 0
      %v2387 = vsel %vm1812, %v2348, 0
      %2389 = vmatprep.subr.bf16.mxu0 0
      %2390 = vmatpush1.bf16.msra.mxu0 %v2369
      %2391 = vmatprep.subr.bf16.mxu0 0
      %2392 = vmatpush1.bf16.msra.mxu0 %v2370
      %2393 = vmatprep.subr.bf16.mxu0 0
      %2394 = vmatpush1.bf16.msra.mxu0 %v2371
      %2395 = vmatprep.subr.bf16.mxu0 0
      %2396 = vmatpush1.bf16.msra.mxu0 %v2372
      %2397 = vmatprep.subr.bf16.mxu0 0
      %2398 = vmatpush1.bf16.msra.mxu0 0
      %2399 = vmatprep.subr.bf16.mxu0 0
      %2400 = vmatpush1.bf16.msra.mxu0 0
      %2401 = vmatprep.subr.bf16.mxu0 0
      %2402 = vmatpush1.bf16.msra.mxu0 0
      %2403 = vmatprep.subr.bf16.mxu0 0
      %2404 = vmatpush1.bf16.msra.mxu0 0
      %2405 = vmatprep.subr.bf16.mxu0 0
      %2406 = vmatpush1.bf16.msra.mxu0 0
      %2407 = vmatprep.subr.bf16.mxu0 0
      %2408 = vmatpush1.bf16.msra.mxu0 0
      %2409 = vmatprep.subr.bf16.mxu0 0
      %2410 = vmatpush1.bf16.msra.mxu0 0
      %2411 = vmatprep.subr.bf16.mxu0 0
      %2412 = vmatpush1.bf16.msra.mxu0 0
      %2413 = vmatprep.subr.bf16.mxu0 0
      %2414 = vmatpush1.bf16.msra.mxu0 0
      %2415 = vmatprep.subr.bf16.mxu0 0
      %2416 = vmatpush1.bf16.msra.mxu0 0
      %2417 = vmatprep.subr.bf16.mxu0 0
      %2418 = vmatpush1.bf16.msra.mxu0 0
      %2419 = vmatprep.subr.bf16.mxu0 0
      %2420 = vmatpush1.bf16.msra.mxu0 0
      %2421 = vmatprep.mubr.bf16.mxu0 0
      %2422 = vmatmul.mubr.bf16.gmra.mrb[0].mxu0 %v2378
      %v2423 = vpop.f32.mrb[0].mxu0
      %v2424 = vadd.f32 0.0, %v2423
      %v2425 = vpop.f32.mrb[0].mxu0
      %v2426 = vpop.f32.mrb[0].mxu0
      %v2427 = vadd.f32 0.0, %v2426
      %v2428 = vpop.f32.mrb[0].mxu0
      %2429 = vmatprep.mubr.bf16.mxu0 0
      %2430 = vmatmul.mubr.bf16.gmra.mrb[0].mxu0 %v2381
      %v2431 = vpop.f32.mrb[0].mxu0
      %v2432 = vadd.f32 0.0, %v2431
      %v2433 = vpop.f32.mrb[0].mxu0
      %v2434 = vpop.f32.mrb[0].mxu0
      %v2435 = vadd.f32 0.0, %v2434
      %v2436 = vpop.f32.mrb[0].mxu0
      %2437 = vmatprep.mubr.bf16.mxu0 0
      %2438 = vmatmul.mubr.bf16.gmra.mrb[0].mxu0 %v2384
      %v2439 = vpop.f32.mrb[0].mxu0
      %v2440 = vadd.f32 0.0, %v2439
      %v2441 = vpop.f32.mrb[0].mxu0
      %v2442 = vpop.f32.mrb[0].mxu0
      %v2443 = vadd.f32 0.0, %v2442
      %v2444 = vpop.f32.mrb[0].mxu0
      %2445 = vmatprep.mubr.bf16.mxu0 0
      %2446 = vmatmul.mubr.bf16.gmra.mrb[0].mxu0 %v2387
      %v2447 = vpop.f32.mrb[0].mxu0
      %v2448 = vadd.f32 0.0, %v2447
      %v2449 = vpop.f32.mrb[0].mxu0
      %v2450 = vpop.f32.mrb[0].mxu0
      %v2451 = vadd.f32 0.0, %v2450
      %v2452 = vpop.f32.mrb[0].mxu0
      %2453 = vdwg.mxu0
      %v2462 = vunpack.c.l.b16 %v1343
      %v2463 = vunpack.c.l.b16 %v1344
      %v2464 = vunpack.c.l.b16 %v1345
      %v2465 = vunpack.c.l.b16 %v1346
      %v2466 = vunpack.c.l.b16 %v1347
      %v2467 = vunpack.c.l.b16 %v1348
      %v2468 = vunpack.c.l.b16 %v1349
      %v2469 = vunpack.c.l.b16 %v1350
      %v2470 = vpack.c.b16 %v2463, %v2462
      %v2471 = vpack.c.b16 %v2465, %v2464
      %v2472 = vpack.c.b16 %v2467, %v2466
      %v2473 = vpack.c.b16 %v2469, %v2468
      %v2479 = vsel %vm1812, %v2349, 0
      %v2482 = vsel %vm1812, %v2350, 0
      %v2485 = vsel %vm1812, %v2351, 0
      %v2488 = vsel %vm1812, %v2352, 0
      %2490 = vmatprep.subr.bf16.mxu0 0
      %2491 = vmatpush1.bf16.msra.mxu0 %v2470
      %2492 = vmatprep.subr.bf16.mxu0 0
      %2493 = vmatpush1.bf16.msra.mxu0 %v2471
      %2494 = vmatprep.subr.bf16.mxu0 0
      %2495 = vmatpush1.bf16.msra.mxu0 %v2472
      %2496 = vmatprep.subr.bf16.mxu0 0
      %2497 = vmatpush1.bf16.msra.mxu0 %v2473
      %2498 = vmatprep.subr.bf16.mxu0 0
      %2499 = vmatpush1.bf16.msra.mxu0 0
      %2500 = vmatprep.subr.bf16.mxu0 0
      %2501 = vmatpush1.bf16.msra.mxu0 0
      %2502 = vmatprep.subr.bf16.mxu0 0
      %2503 = vmatpush1.bf16.msra.mxu0 0
      %2504 = vmatprep.subr.bf16.mxu0 0
      %2505 = vmatpush1.bf16.msra.mxu0 0
      %2506 = vmatprep.subr.bf16.mxu0 0
      %2507 = vmatpush1.bf16.msra.mxu0 0
      %2508 = vmatprep.subr.bf16.mxu0 0
      %2509 = vmatpush1.bf16.msra.mxu0 0
      %2510 = vmatprep.subr.bf16.mxu0 0
      %2511 = vmatpush1.bf16.msra.mxu0 0
      %2512 = vmatprep.subr.bf16.mxu0 0
      %2513 = vmatpush1.bf16.msra.mxu0 0
      %2514 = vmatprep.subr.bf16.mxu0 0
      %2515 = vmatpush1.bf16.msra.mxu0 0
      %2516 = vmatprep.subr.bf16.mxu0 0
      %2517 = vmatpush1.bf16.msra.mxu0 0
      %2518 = vmatprep.subr.bf16.mxu0 0
      %2519 = vmatpush1.bf16.msra.mxu0 0
      %2520 = vmatprep.subr.bf16.mxu0 0
      %2521 = vmatpush1.bf16.msra.mxu0 0
      %2522 = vmatprep.mubr.bf16.mxu0 0
      %2523 = vmatmul.mubr.bf16.gmra.mrb[0].mxu0 %v2479
      %v2524 = vpop.f32.mrb[0].mxu0
      %v2525 = vadd.f32 0.0, %v2524
      %v2526 = vpop.f32.mrb[0].mxu0
      %v2527 = vpop.f32.mrb[0].mxu0
      %v2528 = vadd.f32 0.0, %v2527
      %v2529 = vpop.f32.mrb[0].mxu0
      %2530 = vmatprep.mubr.bf16.mxu0 0
      %2531 = vmatmul.mubr.bf16.gmra.mrb[0].mxu0 %v2482
      %v2532 = vpop.f32.mrb[0].mxu0
      %v2533 = vadd.f32 0.0, %v2532
      %v2534 = vpop.f32.mrb[0].mxu0
      %v2535 = vpop.f32.mrb[0].mxu0
      %v2536 = vadd.f32 0.0, %v2535
      %v2537 = vpop.f32.mrb[0].mxu0
      %2538 = vmatprep.mubr.bf16.mxu0 0
      %2539 = vmatmul.mubr.bf16.gmra.mrb[0].mxu0 %v2485
      %v2540 = vpop.f32.mrb[0].mxu0
      %v2541 = vadd.f32 0.0, %v2540
      %v2542 = vpop.f32.mrb[0].mxu0
      %v2543 = vpop.f32.mrb[0].mxu0
      %v2544 = vadd.f32 0.0, %v2543
      %v2545 = vpop.f32.mrb[0].mxu0
      %2546 = vmatprep.mubr.bf16.mxu0 0
      %2547 = vmatmul.mubr.bf16.gmra.mrb[0].mxu0 %v2488
      %v2548 = vpop.f32.mrb[0].mxu0
      %v2549 = vadd.f32 0.0, %v2548
      %v2550 = vpop.f32.mrb[0].mxu0
      %v2551 = vpop.f32.mrb[0].mxu0
      %v2552 = vadd.f32 0.0, %v2551
      %v2553 = vpop.f32.mrb[0].mxu0
      %2554 = vdwg.mxu0
      %v2555 = vadd.f32 %v2424, %v2525
      %v2556 = vadd.f32 %v2427, %v2528
      %v2557 = vadd.f32 %v2432, %v2533
      %v2558 = vadd.f32 %v2435, %v2536
      %v2559 = vadd.f32 %v2440, %v2541
      %v2560 = vadd.f32 %v2443, %v2544
      %v2561 = vadd.f32 %v2448, %v2549
      %v2562 = vadd.f32 %v2451, %v2552
      %v2563 = vpack.c.bf16 %v1280, %v1279
      %v2564 = vpack.c.bf16 %v1282, %v1281
      %v2565 = vpack.c.bf16 %v1284, %v1283
      %v2566 = vpack.c.bf16 %v1286, %v1285
      %2567 = vmatprep.subr.bf16.mxu0 0
      %2568 = vmatpush1.bf16.xpose.msra.mxu0 %v2563
      %2569 = vmatprep.subr.bf16.mxu0 0
      %2570 = vmatpush1.bf16.xpose.msra.mxu0 %v2564
      %2571 = vmatprep.subr.bf16.mxu0 0
      %2572 = vmatpush1.bf16.xpose.msra.mxu0 %v2565
      %2573 = vmatprep.subr.bf16.mxu0 0
      %2574 = vmatpush1.bf16.xpose.msra.mxu0 %v2566
      %2575 = vmatprep.subr.bf16.mxu0 0
      %2576 = vmatpush1.bf16.xpose.msra.mxu0 0
      %2577 = vmatprep.subr.bf16.mxu0 0
      %2578 = vmatpush1.bf16.xpose.msra.mxu0 0
      %2579 = vmatprep.subr.bf16.mxu0 0
      %2580 = vmatpush1.bf16.xpose.msra.mxu0 0
      %2581 = vmatprep.subr.bf16.mxu0 0
      %2582 = vmatpush1.bf16.xpose.msra.mxu0 0
      %2583 = vmatprep.subr.bf16.mxu0 0
      %2584 = vmatpush1.bf16.xpose.msra.mxu0 0
      %2585 = vmatprep.subr.bf16.mxu0 0
      %2586 = vmatpush1.bf16.xpose.msra.mxu0 0
      %2587 = vmatprep.subr.bf16.mxu0 0
      %2588 = vmatpush1.bf16.xpose.msra.mxu0 0
      %2589 = vmatprep.subr.bf16.mxu0 0
      %2590 = vmatpush1.bf16.xpose.msra.mxu0 0
      %2591 = vmatprep.subr.bf16.mxu0 0
      %2592 = vmatpush1.bf16.xpose.msra.mxu0 0
      %2593 = vmatprep.subr.bf16.mxu0 0
      %2594 = vmatpush1.bf16.xpose.msra.mxu0 0
      %2595 = vmatprep.subr.bf16.mxu0 0
      %2596 = vmatpush1.bf16.xpose.msra.mxu0 0
      %2597 = vmatprep.subr.bf16.mxu0 0
      %2598 = vmatpush1.bf16.xpose.msra.mxu0 0
      %2599 = vmatprep.mubr.bf16.mxu0 0
      %2600 = vmatmul.mubr.bf16.gmra.mrb[0].mxu0 %v1451
      %v2601 = vpop.f32.mrb[0].mxu0
      %v2602 = vadd.f32 0.0, %v2601
      %v2603 = vpop.f32.mrb[0].mxu0
      %v2604 = vpop.f32.mrb[0].mxu0
      %v2605 = vadd.f32 0.0, %v2604
      %v2606 = vpop.f32.mrb[0].mxu0
      %2607 = vmatprep.mubr.bf16.mxu0 0
      %2608 = vmatmul.mubr.bf16.gmra.mrb[0].mxu0 %v1452
      %v2609 = vpop.f32.mrb[0].mxu0
      %v2610 = vadd.f32 0.0, %v2609
      %v2611 = vpop.f32.mrb[0].mxu0
      %v2612 = vpop.f32.mrb[0].mxu0
      %v2613 = vadd.f32 0.0, %v2612
      %v2614 = vpop.f32.mrb[0].mxu0
      %2615 = vmatprep.mubr.bf16.mxu0 0
      %2616 = vmatmul.mubr.bf16.gmra.mrb[0].mxu0 %v1453
      %v2617 = vpop.f32.mrb[0].mxu0
      %v2618 = vadd.f32 0.0, %v2617
      %v2619 = vpop.f32.mrb[0].mxu0
      %v2620 = vpop.f32.mrb[0].mxu0
      %v2621 = vadd.f32 0.0, %v2620
      %v2622 = vpop.f32.mrb[0].mxu0
      %2623 = vmatprep.mubr.bf16.mxu0 0
      %2624 = vmatmul.mubr.bf16.gmra.mrb[0].mxu0 %v1454
      %v2625 = vpop.f32.mrb[0].mxu0
      %v2626 = vadd.f32 0.0, %v2625
      %v2627 = vpop.f32.mrb[0].mxu0
      %v2628 = vpop.f32.mrb[0].mxu0
      %v2629 = vadd.f32 0.0, %v2628
      %v2630 = vpop.f32.mrb[0].mxu0
      %2631 = vmatprep.mubr.bf16.mxu0 0
      %2632 = vmatmul.mubr.bf16.gmra.mrb[0].mxu0 %v1455
      %v2633 = vpop.f32.mrb[0].mxu0
      %v2634 = vadd.f32 0.0, %v2633
      %v2635 = vpop.f32.mrb[0].mxu0
      %v2636 = vpop.f32.mrb[0].mxu0
      %v2637 = vadd.f32 0.0, %v2636
      %v2638 = vpop.f32.mrb[0].mxu0
      %2639 = vmatprep.mubr.bf16.mxu0 0
      %2640 = vmatmul.mubr.bf16.gmra.mrb[0].mxu0 %v1456
      %v2641 = vpop.f32.mrb[0].mxu0
      %v2642 = vadd.f32 0.0, %v2641
      %v2643 = vpop.f32.mrb[0].mxu0
      %v2644 = vpop.f32.mrb[0].mxu0
      %v2645 = vadd.f32 0.0, %v2644
      %v2646 = vpop.f32.mrb[0].mxu0
      %2647 = vmatprep.mubr.bf16.mxu0 0
      %2648 = vmatmul.mubr.bf16.gmra.mrb[0].mxu0 %v1457
      %v2649 = vpop.f32.mrb[0].mxu0
      %v2650 = vadd.f32 0.0, %v2649
      %v2651 = vpop.f32.mrb[0].mxu0
      %v2652 = vpop.f32.mrb[0].mxu0
      %v2653 = vadd.f32 0.0, %v2652
      %v2654 = vpop.f32.mrb[0].mxu0
      %2655 = vmatprep.mubr.bf16.mxu0 0
      %2656 = vmatmul.mubr.bf16.gmra.mrb[0].mxu0 %v1458
      %v2657 = vpop.f32.mrb[0].mxu0
      %v2658 = vadd.f32 0.0, %v2657
      %v2659 = vpop.f32.mrb[0].mxu0
      %v2660 = vpop.f32.mrb[0].mxu0
      %v2661 = vadd.f32 0.0, %v2660
      %v2662 = vpop.f32.mrb[0].mxu0
      %2663 = vmatprep.mubr.bf16.mxu0 0
      %2664 = vmatmul.mubr.bf16.gmra.mrb[0].mxu0 %v1459
      %v2665 = vpop.f32.mrb[0].mxu0
      %v2666 = vadd.f32 0.0, %v2665
      %v2667 = vpop.f32.mrb[0].mxu0
      %v2668 = vpop.f32.mrb[0].mxu0
      %v2669 = vadd.f32 0.0, %v2668
      %v2670 = vpop.f32.mrb[0].mxu0
      %2671 = vmatprep.mubr.bf16.mxu0 0
      %2672 = vmatmul.mubr.bf16.gmra.mrb[0].mxu0 %v1460
      %v2673 = vpop.f32.mrb[0].mxu0
      %v2674 = vadd.f32 0.0, %v2673
      %v2675 = vpop.f32.mrb[0].mxu0
      %v2676 = vpop.f32.mrb[0].mxu0
      %v2677 = vadd.f32 0.0, %v2676
      %v2678 = vpop.f32.mrb[0].mxu0
      %2679 = vmatprep.mubr.bf16.mxu0 0
      %2680 = vmatmul.mubr.bf16.gmra.mrb[0].mxu0 %v1461
      %v2681 = vpop.f32.mrb[0].mxu0
      %v2682 = vadd.f32 0.0, %v2681
      %v2683 = vpop.f32.mrb[0].mxu0
      %v2684 = vpop.f32.mrb[0].mxu0
      %v2685 = vadd.f32 0.0, %v2684
      %v2686 = vpop.f32.mrb[0].mxu0
      %2687 = vmatprep.mubr.bf16.mxu0 0
      %2688 = vmatmul.mubr.bf16.gmra.mrb[0].mxu0 %v1462
      %v2689 = vpop.f32.mrb[0].mxu0
      %v2690 = vadd.f32 0.0, %v2689
      %v2691 = vpop.f32.mrb[0].mxu0
      %v2692 = vpop.f32.mrb[0].mxu0
      %v2693 = vadd.f32 0.0, %v2692
      %v2694 = vpop.f32.mrb[0].mxu0
      %2695 = vmatprep.mubr.bf16.mxu0 0
      %2696 = vmatmul.mubr.bf16.gmra.mrb[0].mxu0 %v1463
      %v2697 = vpop.f32.mrb[0].mxu0
      %v2698 = vadd.f32 0.0, %v2697
      %v2699 = vpop.f32.mrb[0].mxu0
      %v2700 = vpop.f32.mrb[0].mxu0
      %v2701 = vadd.f32 0.0, %v2700
      %v2702 = vpop.f32.mrb[0].mxu0
      %2703 = vmatprep.mubr.bf16.mxu0 0
      %2704 = vmatmul.mubr.bf16.gmra.mrb[0].mxu0 %v1464
      %v2705 = vpop.f32.mrb[0].mxu0
      %v2706 = vadd.f32 0.0, %v2705
      %v2707 = vpop.f32.mrb[0].mxu0
      %v2708 = vpop.f32.mrb[0].mxu0
      %v2709 = vadd.f32 0.0, %v2708
      %v2710 = vpop.f32.mrb[0].mxu0
      %2711 = vmatprep.mubr.bf16.mxu0 0
      %2712 = vmatmul.mubr.bf16.gmra.mrb[0].mxu0 %v1465
      %v2713 = vpop.f32.mrb[0].mxu0
      %v2714 = vadd.f32 0.0, %v2713
      %v2715 = vpop.f32.mrb[0].mxu0
      %v2716 = vpop.f32.mrb[0].mxu0
      %v2717 = vadd.f32 0.0, %v2716
      %v2718 = vpop.f32.mrb[0].mxu0
      %2719 = vmatprep.mubr.bf16.mxu0 0
      %2720 = vmatmul.mubr.bf16.gmra.mrb[0].mxu0 %v1466
      %v2721 = vpop.f32.mrb[0].mxu0
      %v2722 = vadd.f32 0.0, %v2721
      %v2723 = vpop.f32.mrb[0].mxu0
      %v2724 = vpop.f32.mrb[0].mxu0
      %v2725 = vadd.f32 0.0, %v2724
      %v2726 = vpop.f32.mrb[0].mxu0
      %2727 = vmatprep.mubr.bf16.mxu0 0
      %2728 = vmatmul.mubr.bf16.gmra.mrb[0].mxu0 %v1467
      %v2729 = vpop.f32.mrb[0].mxu0
      %v2730 = vadd.f32 0.0, %v2729
      %v2731 = vpop.f32.mrb[0].mxu0
      %v2732 = vpop.f32.mrb[0].mxu0
      %v2733 = vadd.f32 0.0, %v2732
      %v2734 = vpop.f32.mrb[0].mxu0
      %2735 = vmatprep.mubr.bf16.mxu0 0
      %2736 = vmatmul.mubr.bf16.gmra.mrb[0].mxu0 %v1468
      %v2737 = vpop.f32.mrb[0].mxu0
      %v2738 = vadd.f32 0.0, %v2737
      %v2739 = vpop.f32.mrb[0].mxu0
      %v2740 = vpop.f32.mrb[0].mxu0
      %v2741 = vadd.f32 0.0, %v2740
      %v2742 = vpop.f32.mrb[0].mxu0
      %2743 = vmatprep.mubr.bf16.mxu0 0
      %2744 = vmatmul.mubr.bf16.gmra.mrb[0].mxu0 %v1469
      %v2745 = vpop.f32.mrb[0].mxu0
      %v2746 = vadd.f32 0.0, %v2745
      %v2747 = vpop.f32.mrb[0].mxu0
      %v2748 = vpop.f32.mrb[0].mxu0
      %v2749 = vadd.f32 0.0, %v2748
      %v2750 = vpop.f32.mrb[0].mxu0
      %2751 = vmatprep.mubr.bf16.mxu0 0
      %2752 = vmatmul.mubr.bf16.gmra.mrb[0].mxu0 %v1470
      %v2753 = vpop.f32.mrb[0].mxu0
      %v2754 = vadd.f32 0.0, %v2753
      %v2755 = vpop.f32.mrb[0].mxu0
      %v2756 = vpop.f32.mrb[0].mxu0
      %v2757 = vadd.f32 0.0, %v2756
      %v2758 = vpop.f32.mrb[0].mxu0
      %2759 = vmatprep.mubr.bf16.mxu0 0
      %2760 = vmatmul.mubr.bf16.gmra.mrb[0].mxu0 %v1471
      %v2761 = vpop.f32.mrb[0].mxu0
      %v2762 = vadd.f32 0.0, %v2761
      %v2763 = vpop.f32.mrb[0].mxu0
      %v2764 = vpop.f32.mrb[0].mxu0
      %v2765 = vadd.f32 0.0, %v2764
      %v2766 = vpop.f32.mrb[0].mxu0
      %2767 = vmatprep.mubr.bf16.mxu0 0
      %2768 = vmatmul.mubr.bf16.gmra.mrb[0].mxu0 %v1472
      %v2769 = vpop.f32.mrb[0].mxu0
      %v2770 = vadd.f32 0.0, %v2769
      %v2771 = vpop.f32.mrb[0].mxu0
      %v2772 = vpop.f32.mrb[0].mxu0
      %v2773 = vadd.f32 0.0, %v2772
      %v2774 = vpop.f32.mrb[0].mxu0
      %2775 = vmatprep.mubr.bf16.mxu0 0
      %2776 = vmatmul.mubr.bf16.gmra.mrb[0].mxu0 %v1473
      %v2777 = vpop.f32.mrb[0].mxu0
      %v2778 = vadd.f32 0.0, %v2777
      %v2779 = vpop.f32.mrb[0].mxu0
      %v2780 = vpop.f32.mrb[0].mxu0
      %v2781 = vadd.f32 0.0, %v2780
      %v2782 = vpop.f32.mrb[0].mxu0
      %2783 = vmatprep.mubr.bf16.mxu0 0
      %2784 = vmatmul.mubr.bf16.gmra.mrb[0].mxu0 %v1474
      %v2785 = vpop.f32.mrb[0].mxu0
      %v2786 = vadd.f32 0.0, %v2785
      %v2787 = vpop.f32.mrb[0].mxu0
      %v2788 = vpop.f32.mrb[0].mxu0
      %v2789 = vadd.f32 0.0, %v2788
      %v2790 = vpop.f32.mrb[0].mxu0
      %2791 = vdwg.mxu0
      %v2792 = vpack.c.bf16 %v2669, %v2666
      %v2793 = vpack.c.bf16 %v2677, %v2674
      %v2794 = vpack.c.bf16 %v2685, %v2682
      %v2795 = vpack.c.bf16 %v2693, %v2690
      %v2796 = vpack.c.bf16 %v2701, %v2698
      %v2797 = vpack.c.bf16 %v2709, %v2706
      %v2798 = vpack.c.bf16 %v2717, %v2714
      %v2799 = vpack.c.bf16 %v2725, %v2722
      %v2800 = vpack.c.bf16 %v2733, %v2730
      %v2801 = vpack.c.bf16 %v2741, %v2738
      %v2802 = vpack.c.bf16 %v2749, %v2746
      %v2803 = vpack.c.bf16 %v2757, %v2754
      %v2804 = vpack.c.bf16 %v2765, %v2762
      %v2805 = vpack.c.bf16 %v2773, %v2770
      %v2806 = vpack.c.bf16 %v2781, %v2778
      %v2807 = vpack.c.bf16 %v2789, %v2786
      %2808 = vxpose.xlu0.b32.start [1/16] %v2602, 128
      %2809 = vxpose.xlu0.b32.cont [2/16] %v2605, 128
      %2810 = vxpose.xlu0.b32.cont [3/16] %v2610, 128
      %2811 = vxpose.xlu0.b32.cont [4/16] %v2613, 128
      %2812 = vxpose.xlu0.b32.cont [5/16] %v2618, 128
      %2813 = vxpose.xlu0.b32.cont [6/16] %v2621, 128
      %2814 = vxpose.xlu0.b32.cont [7/16] %v2626, 128
      %2815 = vxpose.xlu0.b32.cont [8/16] %v2629, 128
      %2816 = vxpose.xlu0.b32.cont [9/16] 0.0, 128
      %2817 = vxpose.xlu0.b32.cont [10/16] 0.0, 128
      %2818 = vxpose.xlu0.b32.cont [11/16] 0.0, 128
      %2819 = vxpose.xlu0.b32.cont [12/16] 0.0, 128
      %2820 = vxpose.xlu0.b32.cont [13/16] 0.0, 128
      %2821 = vxpose.xlu0.b32.cont [14/16] 0.0, 128
      %2822 = vxpose.xlu0.b32.cont [15/16] 0.0, 128
      %2823 = vxpose.xlu0.b32.end [16/16] 0.0, 128
      %v2824 = vpop.trf.xlu0
      %v2825 = vpop.trf.xlu0
      %v2826 = vpop.trf.xlu0
      %v2827 = vpop.trf.xlu0
      %v2828 = vpop.trf.xlu0
      %v2829 = vpop.trf.xlu0
      %v2830 = vpop.trf.xlu0
      %v2831 = vpop.trf.xlu0
      %v2832 = vpop.trf.xlu0
      %v2833 = vpop.trf.xlu0
      %v2834 = vpop.trf.xlu0
      %v2835 = vpop.trf.xlu0
      %v2836 = vpop.trf.xlu0
      %v2837 = vpop.trf.xlu0
      %v2838 = vpop.trf.xlu0
      %v2839 = vpop.trf.xlu0
      %2840 = vxpose.xlu0.b32.start [1/16] %v2634, 128
      %2841 = vxpose.xlu0.b32.cont [2/16] %v2637, 128
      %2842 = vxpose.xlu0.b32.cont [3/16] %v2642, 128
      %2843 = vxpose.xlu0.b32.cont [4/16] %v2645, 128
      %2844 = vxpose.xlu0.b32.cont [5/16] %v2650, 128
      %2845 = vxpose.xlu0.b32.cont [6/16] %v2653, 128
      %2846 = vxpose.xlu0.b32.cont [7/16] %v2658, 128
      %2847 = vxpose.xlu0.b32.cont [8/16] %v2661, 128
      %2848 = vxpose.xlu0.b32.cont [9/16] 0.0, 128
      %2849 = vxpose.xlu0.b32.cont [10/16] 0.0, 128
      %2850 = vxpose.xlu0.b32.cont [11/16] 0.0, 128
      %2851 = vxpose.xlu0.b32.cont [12/16] 0.0, 128
      %2852 = vxpose.xlu0.b32.cont [13/16] 0.0, 128
      %2853 = vxpose.xlu0.b32.cont [14/16] 0.0, 128
      %2854 = vxpose.xlu0.b32.cont [15/16] 0.0, 128
      %2855 = vxpose.xlu0.b32.end [16/16] 0.0, 128
      %v2856 = vpop.trf.xlu0
      %v2857 = vpop.trf.xlu0
      %v2858 = vpop.trf.xlu0
      %v2859 = vpop.trf.xlu0
      %v2860 = vpop.trf.xlu0
      %v2861 = vpop.trf.xlu0
      %v2862 = vpop.trf.xlu0
      %v2863 = vpop.trf.xlu0
      %v2864 = vpop.trf.xlu0
      %v2865 = vpop.trf.xlu0
      %v2866 = vpop.trf.xlu0
      %v2867 = vpop.trf.xlu0
      %v2868 = vpop.trf.xlu0
      %v2869 = vpop.trf.xlu0
      %v2870 = vpop.trf.xlu0
      %v2871 = vpop.trf.xlu0
      %v2872 = vpack.c.bf16 %v2825, %v2824
      %v2873 = vpack.c.bf16 %v2827, %v2826
      %v2874 = vpack.c.bf16 %v2829, %v2828
      %v2875 = vpack.c.bf16 %v2831, %v2830
      %v2876 = vpack.c.bf16 %v2857, %v2856
      %v2877 = vpack.c.bf16 %v2859, %v2858
      %v2878 = vpack.c.bf16 %v2861, %v2860
      %v2879 = vpack.c.bf16 %v2863, %v2862
      %v2881 = vsel %vm1812, %v2872, 0
      %v2884 = vsel %vm1812, %v2873, 0
      %v2887 = vsel %vm1812, %v2874, 0
      %v2890 = vsel %vm1812, %v2875, 0
      %2892 = vmatprep.subr.bf16.mxu0 0
      %2893 = vmatpush1.bf16.msra.mxu0 %v2792
      %2894 = vmatprep.subr.bf16.mxu0 0
      %2895 = vmatpush1.bf16.msra.mxu0 %v2793
      %2896 = vmatprep.subr.bf16.mxu0 0
      %2897 = vmatpush1.bf16.msra.mxu0 %v2794
      %2898 = vmatprep.subr.bf16.mxu0 0
      %2899 = vmatpush1.bf16.msra.mxu0 %v2795
      %2900 = vmatprep.subr.bf16.mxu0 0
      %2901 = vmatpush1.bf16.msra.mxu0 0
      %2902 = vmatprep.subr.bf16.mxu0 0
      %2903 = vmatpush1.bf16.msra.mxu0 0
      %2904 = vmatprep.subr.bf16.mxu0 0
      %2905 = vmatpush1.bf16.msra.mxu0 0
      %2906 = vmatprep.subr.bf16.mxu0 0
      %2907 = vmatpush1.bf16.msra.mxu0 0
      %2908 = vmatprep.subr.bf16.mxu0 0
      %2909 = vmatpush1.bf16.msra.mxu0 0
      %2910 = vmatprep.subr.bf16.mxu0 0
      %2911 = vmatpush1.bf16.msra.mxu0 0
      %2912 = vmatprep.subr.bf16.mxu0 0
      %2913 = vmatpush1.bf16.msra.mxu0 0
      %2914 = vmatprep.subr.bf16.mxu0 0
      %2915 = vmatpush1.bf16.msra.mxu0 0
      %2916 = vmatprep.subr.bf16.mxu0 0
      %2917 = vmatpush1.bf16.msra.mxu0 0
      %2918 = vmatprep.subr.bf16.mxu0 0
      %2919 = vmatpush1.bf16.msra.mxu0 0
      %2920 = vmatprep.subr.bf16.mxu0 0
      %2921 = vmatpush1.bf16.msra.mxu0 0
      %2922 = vmatprep.subr.bf16.mxu0 0
      %2923 = vmatpush1.bf16.msra.mxu0 0
      %2924 = vmatprep.mubr.bf16.mxu0 0
      %2925 = vmatmul.mubr.bf16.gmra.mrb[0].mxu0 %v2881
      %v2926 = vpop.f32.mrb[0].mxu0
      %v2927 = vadd.f32 0.0, %v2926
      %v2928 = vpop.f32.mrb[0].mxu0
      %v2929 = vpop.f32.mrb[0].mxu0
      %v2930 = vadd.f32 0.0, %v2929
      %v2931 = vpop.f32.mrb[0].mxu0
      %2932 = vmatprep.mubr.bf16.mxu0 0
      %2933 = vmatmul.mubr.bf16.gmra.mrb[0].mxu0 %v2884
      %v2934 = vpop.f32.mrb[0].mxu0
      %v2935 = vadd.f32 0.0, %v2934
      %v2936 = vpop.f32.mrb[0].mxu0
      %v2937 = vpop.f32.mrb[0].mxu0
      %v2938 = vadd.f32 0.0, %v2937
      %v2939 = vpop.f32.mrb[0].mxu0
      %2940 = vmatprep.mubr.bf16.mxu0 0
      %2941 = vmatmul.mubr.bf16.gmra.mrb[0].mxu0 %v2887
      %v2942 = vpop.f32.mrb[0].mxu0
      %v2943 = vadd.f32 0.0, %v2942
      %v2944 = vpop.f32.mrb[0].mxu0
      %v2945 = vpop.f32.mrb[0].mxu0
      %v2946 = vadd.f32 0.0, %v2945
      %v2947 = vpop.f32.mrb[0].mxu0
      %2948 = vmatprep.mubr.bf16.mxu0 0
      %2949 = vmatmul.mubr.bf16.gmra.mrb[0].mxu0 %v2890
      %v2950 = vpop.f32.mrb[0].mxu0
      %v2951 = vadd.f32 0.0, %v2950
      %v2952 = vpop.f32.mrb[0].mxu0
      %v2953 = vpop.f32.mrb[0].mxu0
      %v2954 = vadd.f32 0.0, %v2953
      %v2955 = vpop.f32.mrb[0].mxu0
      %2956 = vdwg.mxu0
      %v2958 = vsel %vm1812, %v2876, 0
      %v2961 = vsel %vm1812, %v2877, 0
      %v2964 = vsel %vm1812, %v2878, 0
      %v2967 = vsel %vm1812, %v2879, 0
      %2969 = vmatprep.subr.bf16.mxu0 0
      %2970 = vmatpush1.bf16.msra.mxu0 %v2796
      %2971 = vmatprep.subr.bf16.mxu0 0
      %2972 = vmatpush1.bf16.msra.mxu0 %v2797
      %2973 = vmatprep.subr.bf16.mxu0 0
      %2974 = vmatpush1.bf16.msra.mxu0 %v2798
      %2975 = vmatprep.subr.bf16.mxu0 0
      %2976 = vmatpush1.bf16.msra.mxu0 %v2799
      %2977 = vmatprep.subr.bf16.mxu0 0
      %2978 = vmatpush1.bf16.msra.mxu0 0
      %2979 = vmatprep.subr.bf16.mxu0 0
      %2980 = vmatpush1.bf16.msra.mxu0 0
      %2981 = vmatprep.subr.bf16.mxu0 0
      %2982 = vmatpush1.bf16.msra.mxu0 0
      %2983 = vmatprep.subr.bf16.mxu0 0
      %2984 = vmatpush1.bf16.msra.mxu0 0
      %2985 = vmatprep.subr.bf16.mxu0 0
      %2986 = vmatpush1.bf16.msra.mxu0 0
      %2987 = vmatprep.subr.bf16.mxu0 0
      %2988 = vmatpush1.bf16.msra.mxu0 0
      %2989 = vmatprep.subr.bf16.mxu0 0
      %2990 = vmatpush1.bf16.msra.mxu0 0
      %2991 = vmatprep.subr.bf16.mxu0 0
      %2992 = vmatpush1.bf16.msra.mxu0 0
      %2993 = vmatprep.subr.bf16.mxu0 0
      %2994 = vmatpush1.bf16.msra.mxu0 0
      %2995 = vmatprep.subr.bf16.mxu0 0
      %2996 = vmatpush1.bf16.msra.mxu0 0
      %2997 = vmatprep.subr.bf16.mxu0 0
      %2998 = vmatpush1.bf16.msra.mxu0 0
      %2999 = vmatprep.subr.bf16.mxu0 0
      %3000 = vmatpush1.bf16.msra.mxu0 0
      %3001 = vmatprep.mubr.bf16.mxu0 0
      %3002 = vmatmul.mubr.bf16.gmra.mrb[0].mxu0 %v2958
      %v3003 = vpop.f32.mrb[0].mxu0
      %v3004 = vadd.f32 0.0, %v3003
      %v3005 = vpop.f32.mrb[0].mxu0
      %v3006 = vpop.f32.mrb[0].mxu0
      %v3007 = vadd.f32 0.0, %v3006
      %v3008 = vpop.f32.mrb[0].mxu0
      %3009 = vmatprep.mubr.bf16.mxu0 0
      %3010 = vmatmul.mubr.bf16.gmra.mrb[0].mxu0 %v2961
      %v3011 = vpop.f32.mrb[0].mxu0
      %v3012 = vadd.f32 0.0, %v3011
      %v3013 = vpop.f32.mrb[0].mxu0
      %v3014 = vpop.f32.mrb[0].mxu0
      %v3015 = vadd.f32 0.0, %v3014
      %v3016 = vpop.f32.mrb[0].mxu0
      %3017 = vmatprep.mubr.bf16.mxu0 0
      %3018 = vmatmul.mubr.bf16.gmra.mrb[0].mxu0 %v2964
      %v3019 = vpop.f32.mrb[0].mxu0
      %v3020 = vadd.f32 0.0, %v3019
      %v3021 = vpop.f32.mrb[0].mxu0
      %v3022 = vpop.f32.mrb[0].mxu0
      %v3023 = vadd.f32 0.0, %v3022
      %v3024 = vpop.f32.mrb[0].mxu0
      %3025 = vmatprep.mubr.bf16.mxu0 0
      %3026 = vmatmul.mubr.bf16.gmra.mrb[0].mxu0 %v2967
      %v3027 = vpop.f32.mrb[0].mxu0
      %v3028 = vadd.f32 0.0, %v3027
      %v3029 = vpop.f32.mrb[0].mxu0
      %v3030 = vpop.f32.mrb[0].mxu0
      %v3031 = vadd.f32 0.0, %v3030
      %v3032 = vpop.f32.mrb[0].mxu0
      %3033 = vdwg.mxu0
      %v3034 = vmul.f32 %v2927, 0.125
      %v3035 = vmul.f32 %v2930, 0.125
      %v3036 = vmul.f32 %v2935, 0.125
      %v3037 = vmul.f32 %v2938, 0.125
      %v3038 = vmul.f32 %v2943, 0.125
      %v3039 = vmul.f32 %v2946, 0.125
      %v3040 = vmul.f32 %v2951, 0.125
      %v3041 = vmul.f32 %v2954, 0.125
      %v3042 = vmul.f32 %v3004, 0.125
      %v3043 = vmul.f32 %v3007, 0.125
      %v3044 = vmul.f32 %v3012, 0.125
      %v3045 = vmul.f32 %v3015, 0.125
      %v3046 = vmul.f32 %v3020, 0.125
      %v3047 = vmul.f32 %v3023, 0.125
      %v3048 = vmul.f32 %v3028, 0.125
      %v3049 = vmul.f32 %v3031, 0.125
      %v3050 = vsel %vm1812, %v3034, -inf
      %3051 = vmax.xlane.f32.xlu0 %v3050
      %v3052 = vpop.xlane.xlu0 %3051
      %v3053 = vsel %vm1812, %v3035, -inf
      %3054 = vmax.xlane.f32.xlu0 %v3053
      %v3055 = vpop.xlane.xlu0 %3054
      %v3056 = vsel %vm1812, %v3036, -inf
      %3057 = vmax.xlane.f32.xlu0 %v3056
      %v3058 = vpop.xlane.xlu0 %3057
      %v3059 = vsel %vm1812, %v3037, -inf
      %3060 = vmax.xlane.f32.xlu0 %v3059
      %v3061 = vpop.xlane.xlu0 %3060
      %v3062 = vsel %vm1812, %v3038, -inf
      %3063 = vmax.xlane.f32.xlu0 %v3062
      %v3064 = vpop.xlane.xlu0 %3063
      %v3065 = vsel %vm1812, %v3039, -inf
      %3066 = vmax.xlane.f32.xlu0 %v3065
      %v3067 = vpop.xlane.xlu0 %3066
      %v3068 = vsel %vm1812, %v3040, -inf
      %3069 = vmax.xlane.f32.xlu0 %v3068
      %v3070 = vpop.xlane.xlu0 %3069
      %v3071 = vsel %vm1812, %v3041, -inf
      %3072 = vmax.xlane.f32.xlu0 %v3071
      %v3073 = vpop.xlane.xlu0 %3072
      %v3074 = vsel %vm1812, %v3042, -inf
      %3075 = vmax.xlane.f32.xlu0 %v3074
      %v3076 = vpop.xlane.xlu0 %3075
      %v3077 = vsel %vm1812, %v3043, -inf
      %3078 = vmax.xlane.f32.xlu0 %v3077
      %v3079 = vpop.xlane.xlu0 %3078
      %v3080 = vsel %vm1812, %v3044, -inf
      %3081 = vmax.xlane.f32.xlu0 %v3080
      %v3082 = vpop.xlane.xlu0 %3081
      %v3083 = vsel %vm1812, %v3045, -inf
      %3084 = vmax.xlane.f32.xlu0 %v3083
      %v3085 = vpop.xlane.xlu0 %3084
      %v3086 = vsel %vm1812, %v3046, -inf
      %3087 = vmax.xlane.f32.xlu0 %v3086
      %v3088 = vpop.xlane.xlu0 %3087
      %v3089 = vsel %vm1812, %v3047, -inf
      %3090 = vmax.xlane.f32.xlu0 %v3089
      %v3091 = vpop.xlane.xlu0 %3090
      %v3092 = vsel %vm1812, %v3048, -inf
      %3093 = vmax.xlane.f32.xlu0 %v3092
      %v3094 = vpop.xlane.xlu0 %3093
      %v3095 = vsel %vm1812, %v3049, -inf
      %3096 = vmax.xlane.f32.xlu0 %v3095
      %v3097 = vpop.xlane.xlu0 %3096
      %v3098 = vsub.f32 %v3034, %v3052
      %v3099 = vsub.f32 %v3035, %v3055
      %v3100 = vsub.f32 %v3036, %v3058
      %v3101 = vsub.f32 %v3037, %v3061
      %v3102 = vsub.f32 %v3038, %v3064
      %v3103 = vsub.f32 %v3039, %v3067
      %v3104 = vsub.f32 %v3040, %v3070
      %v3105 = vsub.f32 %v3041, %v3073
      %v3106 = vsub.f32 %v3042, %v3076
      %v3107 = vsub.f32 %v3043, %v3079
      %v3108 = vsub.f32 %v3044, %v3082
      %v3109 = vsub.f32 %v3045, %v3085
      %v3110 = vsub.f32 %v3046, %v3088
      %v3111 = vsub.f32 %v3047, %v3091
      %v3112 = vsub.f32 %v3048, %v3094
      %v3113 = vsub.f32 %v3049, %v3097
      %v3114 = vmul.f32 %v3098, 1.442695
      %v3115 = vpow.pop %v3114
      %v3116 = vmul.f32 %v3099, 1.442695
      %v3117 = vpow.pop %v3116
      %v3118 = vmul.f32 %v3100, 1.442695
      %v3119 = vpow.pop %v3118
      %v3120 = vmul.f32 %v3101, 1.442695
      %v3121 = vpow.pop %v3120
      %v3122 = vmul.f32 %v3102, 1.442695
      %v3123 = vpow.pop %v3122
      %v3124 = vmul.f32 %v3103, 1.442695
      %v3125 = vpow.pop %v3124
      %v3126 = vmul.f32 %v3104, 1.442695
      %v3127 = vpow.pop %v3126
      %v3128 = vmul.f32 %v3105, 1.442695
      %v3129 = vpow.pop %v3128
      %v3130 = vmul.f32 %v3106, 1.442695
      %v3131 = vpow.pop %v3130
      %v3132 = vmul.f32 %v3107, 1.442695
      %v3133 = vpow.pop %v3132
      %v3134 = vmul.f32 %v3108, 1.442695
      %v3135 = vpow.pop %v3134
      %v3136 = vmul.f32 %v3109, 1.442695
      %v3137 = vpow.pop %v3136
      %v3138 = vmul.f32 %v3110, 1.442695
      %v3139 = vpow.pop %v3138
      %v3140 = vmul.f32 %v3111, 1.442695
      %v3141 = vpow.pop %v3140
      %v3142 = vmul.f32 %v3112, 1.442695
      %v3143 = vpow.pop %v3142
      %v3144 = vmul.f32 %v3113, 1.442695
      %v3145 = vpow.pop %v3144
      %v3146 = vsel %vm1812, %v3115, 0.0
      %3147 = vadd.xlane.f32.xlu0 %v3146
      %v3148 = vpop.xlane.xlu0 %3147
      %v3149 = vsel %vm1812, %v3117, 0.0
      %3150 = vadd.xlane.f32.xlu0 %v3149
      %v3151 = vpop.xlane.xlu0 %3150
      %v3152 = vsel %vm1812, %v3119, 0.0
      %3153 = vadd.xlane.f32.xlu0 %v3152
      %v3154 = vpop.xlane.xlu0 %3153
      %v3155 = vsel %vm1812, %v3121, 0.0
      %3156 = vadd.xlane.f32.xlu0 %v3155
      %v3157 = vpop.xlane.xlu0 %3156
      %v3158 = vsel %vm1812, %v3123, 0.0
      %3159 = vadd.xlane.f32.xlu0 %v3158
      %v3160 = vpop.xlane.xlu0 %3159
      %v3161 = vsel %vm1812, %v3125, 0.0
      %3162 = vadd.xlane.f32.xlu0 %v3161
      %v3163 = vpop.xlane.xlu0 %3162
      %v3164 = vsel %vm1812, %v3127, 0.0
      %3165 = vadd.xlane.f32.xlu0 %v3164
      %v3166 = vpop.xlane.xlu0 %3165
      %v3167 = vsel %vm1812, %v3129, 0.0
      %3168 = vadd.xlane.f32.xlu0 %v3167
      %v3169 = vpop.xlane.xlu0 %3168
      %v3170 = vsel %vm1812, %v3131, 0.0
      %3171 = vadd.xlane.f32.xlu0 %v3170
      %v3172 = vpop.xlane.xlu0 %3171
      %v3173 = vsel %vm1812, %v3133, 0.0
      %3174 = vadd.xlane.f32.xlu0 %v3173
      %v3175 = vpop.xlane.xlu0 %3174
      %v3176 = vsel %vm1812, %v3135, 0.0
      %3177 = vadd.xlane.f32.xlu0 %v3176
      %v3178 = vpop.xlane.xlu0 %3177
      %v3179 = vsel %vm1812, %v3137, 0.0
      %3180 = vadd.xlane.f32.xlu0 %v3179
      %v3181 = vpop.xlane.xlu0 %3180
      %v3182 = vsel %vm1812, %v3139, 0.0
      %3183 = vadd.xlane.f32.xlu0 %v3182
      %v3184 = vpop.xlane.xlu0 %3183
      %v3185 = vsel %vm1812, %v3141, 0.0
      %3186 = vadd.xlane.f32.xlu0 %v3185
      %v3187 = vpop.xlane.xlu0 %3186
      %v3188 = vsel %vm1812, %v3143, 0.0
      %3189 = vadd.xlane.f32.xlu0 %v3188
      %v3190 = vpop.xlane.xlu0 %3189
      %v3191 = vsel %vm1812, %v3145, 0.0
      %3192 = vadd.xlane.f32.xlu0 %v3191
      %v3193 = vpop.xlane.xlu0 %3192
      %v3194 = vrcp.pop %v3148
      %v3195 = vrcp.pop %v3151
      %v3196 = vrcp.pop %v3154
      %v3197 = vrcp.pop %v3157
      %v3198 = vrcp.pop %v3160
      %v3199 = vrcp.pop %v3163
      %v3200 = vrcp.pop %v3166
      %v3201 = vrcp.pop %v3169
      %v3202 = vrcp.pop %v3172
      %v3203 = vrcp.pop %v3175
      %v3204 = vrcp.pop %v3178
      %v3205 = vrcp.pop %v3181
      %v3206 = vrcp.pop %v3184
      %v3207 = vrcp.pop %v3187
      %v3208 = vrcp.pop %v3190
      %v3209 = vrcp.pop %v3193
      %v3210 = vmul.f32 %v3115, %v3194
      %v3211 = vmul.f32 %v3117, %v3195
      %v3212 = vmul.f32 %v3119, %v3196
      %v3213 = vmul.f32 %v3121, %v3197
      %v3214 = vmul.f32 %v3123, %v3198
      %v3215 = vmul.f32 %v3125, %v3199
      %v3216 = vmul.f32 %v3127, %v3200
      %v3217 = vmul.f32 %v3129, %v3201
      %v3218 = vmul.f32 %v3131, %v3202
      %v3219 = vmul.f32 %v3133, %v3203
      %v3220 = vmul.f32 %v3135, %v3204
      %v3221 = vmul.f32 %v3137, %v3205
      %v3222 = vmul.f32 %v3139, %v3206
      %v3223 = vmul.f32 %v3141, %v3207
      %v3224 = vmul.f32 %v3143, %v3208
      %v3225 = vmul.f32 %v3145, %v3209
      %v3226 = vpack.c.bf16 %v3211, %v3210
      %v3227 = vpack.c.bf16 %v3213, %v3212
      %v3228 = vpack.c.bf16 %v3215, %v3214
      %v3229 = vpack.c.bf16 %v3217, %v3216
      %v3230 = vpack.c.bf16 %v3219, %v3218
      %v3231 = vpack.c.bf16 %v3221, %v3220
      %v3232 = vpack.c.bf16 %v3223, %v3222
      %v3233 = vpack.c.bf16 %v3225, %v3224
      %v3235 = vsel %vm1812, %v3226, 0
      %v3238 = vsel %vm1812, %v3227, 0
      %v3241 = vsel %vm1812, %v3228, 0
      %v3244 = vsel %vm1812, %v3229, 0
      %v3247 = vsel %vm1812, %v2800, 0
      %v3250 = vsel %vm1812, %v2801, 0
      %v3253 = vsel %vm1812, %v2802, 0
      %v3256 = vsel %vm1812, %v2803, 0
      %3258 = vmatprep.subr.bf16.mxu0 0
      %3259 = vmatpush1.bf16.xpose.msra.mxu0 %v3247
      %3260 = vmatprep.subr.bf16.mxu0 0
      %3261 = vmatpush1.bf16.xpose.msra.mxu0 %v3250
      %3262 = vmatprep.subr.bf16.mxu0 0
      %3263 = vmatpush1.bf16.xpose.msra.mxu0 %v3253
      %3264 = vmatprep.subr.bf16.mxu0 0
      %3265 = vmatpush1.bf16.xpose.msra.mxu0 %v3256
      %3266 = vmatprep.subr.bf16.mxu0 0
      %3267 = vmatpush1.bf16.xpose.msra.mxu0 0
      %3268 = vmatprep.subr.bf16.mxu0 0
      %3269 = vmatpush1.bf16.xpose.msra.mxu0 0
      %3270 = vmatprep.subr.bf16.mxu0 0
      %3271 = vmatpush1.bf16.xpose.msra.mxu0 0
      %3272 = vmatprep.subr.bf16.mxu0 0
      %3273 = vmatpush1.bf16.xpose.msra.mxu0 0
      %3274 = vmatprep.subr.bf16.mxu0 0
      %3275 = vmatpush1.bf16.xpose.msra.mxu0 0
      %3276 = vmatprep.subr.bf16.mxu0 0
      %3277 = vmatpush1.bf16.xpose.msra.mxu0 0
      %3278 = vmatprep.subr.bf16.mxu0 0
      %3279 = vmatpush1.bf16.xpose.msra.mxu0 0
      %3280 = vmatprep.subr.bf16.mxu0 0
      %3281 = vmatpush1.bf16.xpose.msra.mxu0 0
      %3282 = vmatprep.subr.bf16.mxu0 0
      %3283 = vmatpush1.bf16.xpose.msra.mxu0 0
      %3284 = vmatprep.subr.bf16.mxu0 0
      %3285 = vmatpush1.bf16.xpose.msra.mxu0 0
      %3286 = vmatprep.subr.bf16.mxu0 0
      %3287 = vmatpush1.bf16.xpose.msra.mxu0 0
      %3288 = vmatprep.subr.bf16.mxu0 0
      %3289 = vmatpush1.bf16.xpose.msra.mxu0 0
      %3290 = vmatprep.mubr.bf16.mxu0 0
      %3291 = vmatmul.mubr.bf16.gmra.mrb[0].mxu0 %v3235
      %v3292 = vpop.f32.mrb[0].mxu0
      %v3293 = vadd.f32 0.0, %v3292
      %v3294 = vpop.f32.mrb[0].mxu0
      %v3295 = vpop.f32.mrb[0].mxu0
      %v3296 = vadd.f32 0.0, %v3295
      %v3297 = vpop.f32.mrb[0].mxu0
      %3298 = vmatprep.mubr.bf16.mxu0 0
      %3299 = vmatmul.mubr.bf16.gmra.mrb[0].mxu0 %v3238
      %v3300 = vpop.f32.mrb[0].mxu0
      %v3301 = vadd.f32 0.0, %v3300
      %v3302 = vpop.f32.mrb[0].mxu0
      %v3303 = vpop.f32.mrb[0].mxu0
      %v3304 = vadd.f32 0.0, %v3303
      %v3305 = vpop.f32.mrb[0].mxu0
      %3306 = vmatprep.mubr.bf16.mxu0 0
      %3307 = vmatmul.mubr.bf16.gmra.mrb[0].mxu0 %v3241
      %v3308 = vpop.f32.mrb[0].mxu0
      %v3309 = vadd.f32 0.0, %v3308
      %v3310 = vpop.f32.mrb[0].mxu0
      %v3311 = vpop.f32.mrb[0].mxu0
      %v3312 = vadd.f32 0.0, %v3311
      %v3313 = vpop.f32.mrb[0].mxu0
      %3314 = vmatprep.mubr.bf16.mxu0 0
      %3315 = vmatmul.mubr.bf16.gmra.mrb[0].mxu0 %v3244
      %v3316 = vpop.f32.mrb[0].mxu0
      %v3317 = vadd.f32 0.0, %v3316
      %v3318 = vpop.f32.mrb[0].mxu0
      %v3319 = vpop.f32.mrb[0].mxu0
      %v3320 = vadd.f32 0.0, %v3319
      %v3321 = vpop.f32.mrb[0].mxu0
      %3322 = vdwg.mxu0
      %v3324 = vsel %vm1812, %v3230, 0
      %v3327 = vsel %vm1812, %v3231, 0
      %v3330 = vsel %vm1812, %v3232, 0
      %v3333 = vsel %vm1812, %v3233, 0
      %v3336 = vsel %vm1812, %v2804, 0
      %v3339 = vsel %vm1812, %v2805, 0
      %v3342 = vsel %vm1812, %v2806, 0
      %v3345 = vsel %vm1812, %v2807, 0
      %3347 = vmatprep.subr.bf16.mxu0 0
      %3348 = vmatpush1.bf16.xpose.msra.mxu0 %v3336
      %3349 = vmatprep.subr.bf16.mxu0 0
      %3350 = vmatpush1.bf16.xpose.msra.mxu0 %v3339
      %3351 = vmatprep.subr.bf16.mxu0 0
      %3352 = vmatpush1.bf16.xpose.msra.mxu0 %v3342
      %3353 = vmatprep.subr.bf16.mxu0 0
      %3354 = vmatpush1.bf16.xpose.msra.mxu0 %v3345
      %3355 = vmatprep.subr.bf16.mxu0 0
      %3356 = vmatpush1.bf16.xpose.msra.mxu0 0
      %3357 = vmatprep.subr.bf16.mxu0 0
      %3358 = vmatpush1.bf16.xpose.msra.mxu0 0
      %3359 = vmatprep.subr.bf16.mxu0 0
      %3360 = vmatpush1.bf16.xpose.msra.mxu0 0
      %3361 = vmatprep.subr.bf16.mxu0 0
      %3362 = vmatpush1.bf16.xpose.msra.mxu0 0
      %3363 = vmatprep.subr.bf16.mxu0 0
      %3364 = vmatpush1.bf16.xpose.msra.mxu0 0
      %3365 = vmatprep.subr.bf16.mxu0 0
      %3366 = vmatpush1.bf16.xpose.msra.mxu0 0
      %3367 = vmatprep.subr.bf16.mxu0 0
      %3368 = vmatpush1.bf16.xpose.msra.mxu0 0
      %3369 = vmatprep.subr.bf16.mxu0 0
      %3370 = vmatpush1.bf16.xpose.msra.mxu0 0
      %3371 = vmatprep.subr.bf16.mxu0 0
      %3372 = vmatpush1.bf16.xpose.msra.mxu0 0
      %3373 = vmatprep.subr.bf16.mxu0 0
      %3374 = vmatpush1.bf16.xpose.msra.mxu0 0
      %3375 = vmatprep.subr.bf16.mxu0 0
      %3376 = vmatpush1.bf16.xpose.msra.mxu0 0
      %3377 = vmatprep.subr.bf16.mxu0 0
      %3378 = vmatpush1.bf16.xpose.msra.mxu0 0
      %3379 = vmatprep.mubr.bf16.mxu0 0
      %3380 = vmatmul.mubr.bf16.gmra.mrb[0].mxu0 %v3324
      %v3381 = vpop.f32.mrb[0].mxu0
      %v3382 = vadd.f32 0.0, %v3381
      %v3383 = vpop.f32.mrb[0].mxu0
      %v3384 = vpop.f32.mrb[0].mxu0
      %v3385 = vadd.f32 0.0, %v3384
      %v3386 = vpop.f32.mrb[0].mxu0
      %3387 = vmatprep.mubr.bf16.mxu0 0
      %3388 = vmatmul.mubr.bf16.gmra.mrb[0].mxu0 %v3327
      %v3389 = vpop.f32.mrb[0].mxu0
      %v3390 = vadd.f32 0.0, %v3389
      %v3391 = vpop.f32.mrb[0].mxu0
      %v3392 = vpop.f32.mrb[0].mxu0
      %v3393 = vadd.f32 0.0, %v3392
      %v3394 = vpop.f32.mrb[0].mxu0
      %3395 = vmatprep.mubr.bf16.mxu0 0
      %3396 = vmatmul.mubr.bf16.gmra.mrb[0].mxu0 %v3330
      %v3397 = vpop.f32.mrb[0].mxu0
      %v3398 = vadd.f32 0.0, %v3397
      %v3399 = vpop.f32.mrb[0].mxu0
      %v3400 = vpop.f32.mrb[0].mxu0
      %v3401 = vadd.f32 0.0, %v3400
      %v3402 = vpop.f32.mrb[0].mxu0
      %3403 = vmatprep.mubr.bf16.mxu0 0
      %3404 = vmatmul.mubr.bf16.gmra.mrb[0].mxu0 %v3333
      %v3405 = vpop.f32.mrb[0].mxu0
      %v3406 = vadd.f32 0.0, %v3405
      %v3407 = vpop.f32.mrb[0].mxu0
      %v3408 = vpop.f32.mrb[0].mxu0
      %v3409 = vadd.f32 0.0, %v3408
      %v3410 = vpop.f32.mrb[0].mxu0
      %3411 = vdwg.mxu0
      %v3412 = vpack.c.bf16 %v3296, %v3293
      %v3413 = vpack.c.bf16 %v3304, %v3301
      %v3414 = vpack.c.bf16 %v3312, %v3309
      %v3415 = vpack.c.bf16 %v3320, %v3317
      %v3416 = vpack.c.bf16 %v3385, %v3382
      %v3417 = vpack.c.bf16 %v3393, %v3390
      %v3418 = vpack.c.bf16 %v3401, %v3398
      %v3419 = vpack.c.bf16 %v3409, %v3406
      %v3421 = vsel %vm1812, %v3412, 0
      %v3424 = vsel %vm1812, %v3413, 0
      %v3427 = vsel %vm1812, %v3414, 0
      %v3430 = vsel %vm1812, %v3415, 0
      %3432 = vmatprep.subr.bf16.mxu0 0
      %3433 = vmatpush1.bf16.msra.mxu0 %v2369
      %3434 = vmatprep.subr.bf16.mxu0 0
      %3435 = vmatpush1.bf16.msra.mxu0 %v2370
      %3436 = vmatprep.subr.bf16.mxu0 0
      %3437 = vmatpush1.bf16.msra.mxu0 %v2371
      %3438 = vmatprep.subr.bf16.mxu0 0
      %3439 = vmatpush1.bf16.msra.mxu0 %v2372
      %3440 = vmatprep.subr.bf16.mxu0 0
      %3441 = vmatpush1.bf16.msra.mxu0 0
      %3442 = vmatprep.subr.bf16.mxu0 0
      %3443 = vmatpush1.bf16.msra.mxu0 0
      %3444 = vmatprep.subr.bf16.mxu0 0
      %3445 = vmatpush1.bf16.msra.mxu0 0
      %3446 = vmatprep.subr.bf16.mxu0 0
      %3447 = vmatpush1.bf16.msra.mxu0 0
      %3448 = vmatprep.subr.bf16.mxu0 0
      %3449 = vmatpush1.bf16.msra.mxu0 0
      %3450 = vmatprep.subr.bf16.mxu0 0
      %3451 = vmatpush1.bf16.msra.mxu0 0
      %3452 = vmatprep.subr.bf16.mxu0 0
      %3453 = vmatpush1.bf16.msra.mxu0 0
      %3454 = vmatprep.subr.bf16.mxu0 0
      %3455 = vmatpush1.bf16.msra.mxu0 0
      %3456 = vmatprep.subr.bf16.mxu0 0
      %3457 = vmatpush1.bf16.msra.mxu0 0
      %3458 = vmatprep.subr.bf16.mxu0 0
      %3459 = vmatpush1.bf16.msra.mxu0 0
      %3460 = vmatprep.subr.bf16.mxu0 0
      %3461 = vmatpush1.bf16.msra.mxu0 0
      %3462 = vmatprep.subr.bf16.mxu0 0
      %3463 = vmatpush1.bf16.msra.mxu0 0
      %3464 = vmatprep.mubr.bf16.mxu0 0
      %3465 = vmatmul.mubr.bf16.gmra.mrb[0].mxu0 %v3421
      %v3466 = vpop.f32.mrb[0].mxu0
      %v3467 = vadd.f32 0.0, %v3466
      %v3468 = vpop.f32.mrb[0].mxu0
      %v3469 = vpop.f32.mrb[0].mxu0
      %v3470 = vadd.f32 0.0, %v3469
      %v3471 = vpop.f32.mrb[0].mxu0
      %3472 = vmatprep.mubr.bf16.mxu0 0
      %3473 = vmatmul.mubr.bf16.gmra.mrb[0].mxu0 %v3424
      %v3474 = vpop.f32.mrb[0].mxu0
      %v3475 = vadd.f32 0.0, %v3474
      %v3476 = vpop.f32.mrb[0].mxu0
      %v3477 = vpop.f32.mrb[0].mxu0
      %v3478 = vadd.f32 0.0, %v3477
      %v3479 = vpop.f32.mrb[0].mxu0
      %3480 = vmatprep.mubr.bf16.mxu0 0
      %3481 = vmatmul.mubr.bf16.gmra.mrb[0].mxu0 %v3427
      %v3482 = vpop.f32.mrb[0].mxu0
      %v3483 = vadd.f32 0.0, %v3482
      %v3484 = vpop.f32.mrb[0].mxu0
      %v3485 = vpop.f32.mrb[0].mxu0
      %v3486 = vadd.f32 0.0, %v3485
      %v3487 = vpop.f32.mrb[0].mxu0
      %3488 = vmatprep.mubr.bf16.mxu0 0
      %3489 = vmatmul.mubr.bf16.gmra.mrb[0].mxu0 %v3430
      %v3490 = vpop.f32.mrb[0].mxu0
      %v3491 = vadd.f32 0.0, %v3490
      %v3492 = vpop.f32.mrb[0].mxu0
      %v3493 = vpop.f32.mrb[0].mxu0
      %v3494 = vadd.f32 0.0, %v3493
      %v3495 = vpop.f32.mrb[0].mxu0
      %3496 = vdwg.mxu0
      %v3498 = vsel %vm1812, %v3416, 0
      %v3501 = vsel %vm1812, %v3417, 0
      %v3504 = vsel %vm1812, %v3418, 0
      %v3507 = vsel %vm1812, %v3419, 0
      %3509 = vmatprep.subr.bf16.mxu0 0
      %3510 = vmatpush1.bf16.msra.mxu0 %v2470
      %3511 = vmatprep.subr.bf16.mxu0 0
      %3512 = vmatpush1.bf16.msra.mxu0 %v2471
      %3513 = vmatprep.subr.bf16.mxu0 0
      %3514 = vmatpush1.bf16.msra.mxu0 %v2472
      %3515 = vmatprep.subr.bf16.mxu0 0
      %3516 = vmatpush1.bf16.msra.mxu0 %v2473
      %3517 = vmatprep.subr.bf16.mxu0 0
      %3518 = vmatpush1.bf16.msra.mxu0 0
      %3519 = vmatprep.subr.bf16.mxu0 0
      %3520 = vmatpush1.bf16.msra.mxu0 0
      %3521 = vmatprep.subr.bf16.mxu0 0
      %3522 = vmatpush1.bf16.msra.mxu0 0
      %3523 = vmatprep.subr.bf16.mxu0 0
      %3524 = vmatpush1.bf16.msra.mxu0 0
      %3525 = vmatprep.subr.bf16.mxu0 0
      %3526 = vmatpush1.bf16.msra.mxu0 0
      %3527 = vmatprep.subr.bf16.mxu0 0
      %3528 = vmatpush1.bf16.msra.mxu0 0
      %3529 = vmatprep.subr.bf16.mxu0 0
      %3530 = vmatpush1.bf16.msra.mxu0 0
      %3531 = vmatprep.subr.bf16.mxu0 0
      %3532 = vmatpush1.bf16.msra.mxu0 0
      %3533 = vmatprep.subr.bf16.mxu0 0
      %3534 = vmatpush1.bf16.msra.mxu0 0
      %3535 = vmatprep.subr.bf16.mxu0 0
      %3536 = vmatpush1.bf16.msra.mxu0 0
      %3537 = vmatprep.subr.bf16.mxu0 0
      %3538 = vmatpush1.bf16.msra.mxu0 0
      %3539 = vmatprep.subr.bf16.mxu0 0
      %3540 = vmatpush1.bf16.msra.mxu0 0
      %3541 = vmatprep.mubr.bf16.mxu0 0
      %3542 = vmatmul.mubr.bf16.gmra.mrb[0].mxu0 %v3498
      %v3543 = vpop.f32.mrb[0].mxu0
      %v3544 = vadd.f32 0.0, %v3543
      %v3545 = vpop.f32.mrb[0].mxu0
      %v3546 = vpop.f32.mrb[0].mxu0
      %v3547 = vadd.f32 0.0, %v3546
      %v3548 = vpop.f32.mrb[0].mxu0
      %3549 = vmatprep.mubr.bf16.mxu0 0
      %3550 = vmatmul.mubr.bf16.gmra.mrb[0].mxu0 %v3501
      %v3551 = vpop.f32.mrb[0].mxu0
      %v3552 = vadd.f32 0.0, %v3551
      %v3553 = vpop.f32.mrb[0].mxu0
      %v3554 = vpop.f32.mrb[0].mxu0
      %v3555 = vadd.f32 0.0, %v3554
      %v3556 = vpop.f32.mrb[0].mxu0
      %3557 = vmatprep.mubr.bf16.mxu0 0
      %3558 = vmatmul.mubr.bf16.gmra.mrb[0].mxu0 %v3504
      %v3559 = vpop.f32.mrb[0].mxu0
      %v3560 = vadd.f32 0.0, %v3559
      %v3561 = vpop.f32.mrb[0].mxu0
      %v3562 = vpop.f32.mrb[0].mxu0
      %v3563 = vadd.f32 0.0, %v3562
      %v3564 = vpop.f32.mrb[0].mxu0
      %3565 = vmatprep.mubr.bf16.mxu0 0
      %3566 = vmatmul.mubr.bf16.gmra.mrb[0].mxu0 %v3507
      %v3567 = vpop.f32.mrb[0].mxu0
      %v3568 = vadd.f32 0.0, %v3567
      %v3569 = vpop.f32.mrb[0].mxu0
      %v3570 = vpop.f32.mrb[0].mxu0
      %v3571 = vadd.f32 0.0, %v3570
      %v3572 = vpop.f32.mrb[0].mxu0
      %3573 = vdwg.mxu0
      %v3574 = vadd.f32 %v3467, %v3544
      %v3575 = vadd.f32 %v3470, %v3547
      %v3576 = vadd.f32 %v3475, %v3552
      %v3577 = vadd.f32 %v3478, %v3555
      %v3578 = vadd.f32 %v3483, %v3560
      %v3579 = vadd.f32 %v3486, %v3563
      %v3580 = vadd.f32 %v3491, %v3568
      %v3581 = vadd.f32 %v3494, %v3571
      %v3582 = vld [vmem:[%s773] sm:$0x1]
      %v3584 = vlaneseq
      %v3585 = vshrl.u32 %v3584, 7
      %v3586 = vsub.s32 0, %v3585
      %v3587 = vrot.slane %v3582, %v3586
      %v3589 = vadd.f32 %v2555, %v3587
      %v3590 = vadd.f32 %v2556, %v3587
      %v3591 = vadd.f32 %v2557, %v3587
      %v3592 = vadd.f32 %v2558, %v3587
      %v3593 = vadd.f32 %v2559, %v3587
      %v3594 = vadd.f32 %v2560, %v3587
      %v3595 = vadd.f32 %v2561, %v3587
      %v3596 = vadd.f32 %v2562, %v3587
      %v3597 = vadd.f32 %v3574, %v3587
      %v3598 = vadd.f32 %v3575, %v3587
      %v3599 = vadd.f32 %v3576, %v3587
      %v3600 = vadd.f32 %v3577, %v3587
      %v3601 = vadd.f32 %v3578, %v3587
      %v3602 = vadd.f32 %v3579, %v3587
      %v3603 = vadd.f32 %v3580, %v3587
      %v3604 = vadd.f32 %v3581, %v3587
      %v3605 = vadd.f32 %v1048, %v3589
      %v3606 = vadd.f32 %v1049, %v3590
      %v3607 = vadd.f32 %v1050, %v3591
      %v3608 = vadd.f32 %v1051, %v3592
      %v3609 = vadd.f32 %v1052, %v3593
      %v3610 = vadd.f32 %v1053, %v3594
      %v3611 = vadd.f32 %v1054, %v3595
      %v3612 = vadd.f32 %v1055, %v3596
      %v3613 = vadd.f32 %v1056, %v3597
      %v3614 = vadd.f32 %v1057, %v3598
      %v3615 = vadd.f32 %v1058, %v3599
      %v3616 = vadd.f32 %v1059, %v3600
      %v3617 = vadd.f32 %v1060, %v3601
      %v3618 = vadd.f32 %v1061, %v3602
      %v3619 = vadd.f32 %v1062, %v3603
      %v3620 = vadd.f32 %v1063, %v3604
      %v3621 = vld [vmem:[%s776] sm:$0x1]
      %v3622 = vld [vmem:[%s779] sm:$0x1]
      %3623 = vadd.xlane.f32.xlu0 %v3605
      %v3624 = vpop.xlane.xlu0 %3623
      %3625 = vadd.xlane.f32.xlu0 %v3606
      %v3626 = vpop.xlane.xlu0 %3625
      %3627 = vadd.xlane.f32.xlu0 %v3607
      %v3628 = vpop.xlane.xlu0 %3627
      %3629 = vadd.xlane.f32.xlu0 %v3608
      %v3630 = vpop.xlane.xlu0 %3629
      %3631 = vadd.xlane.f32.xlu0 %v3609
      %v3632 = vpop.xlane.xlu0 %3631
      %3633 = vadd.xlane.f32.xlu0 %v3610
      %v3634 = vpop.xlane.xlu0 %3633
      %3635 = vadd.xlane.f32.xlu0 %v3611
      %v3636 = vpop.xlane.xlu0 %3635
      %3637 = vadd.xlane.f32.xlu0 %v3612
      %v3638 = vpop.xlane.xlu0 %3637
      %3639 = vadd.xlane.f32.xlu0 %v3613
      %v3640 = vpop.xlane.xlu0 %3639
      %3641 = vadd.xlane.f32.xlu0 %v3614
      %v3642 = vpop.xlane.xlu0 %3641
      %3643 = vadd.xlane.f32.xlu0 %v3615
      %v3644 = vpop.xlane.xlu0 %3643
      %3645 = vadd.xlane.f32.xlu0 %v3616
      %v3646 = vpop.xlane.xlu0 %3645
      %3647 = vadd.xlane.f32.xlu0 %v3617
      %v3648 = vpop.xlane.xlu0 %3647
      %3649 = vadd.xlane.f32.xlu0 %v3618
      %v3650 = vpop.xlane.xlu0 %3649
      %3651 = vadd.xlane.f32.xlu0 %v3619
      %v3652 = vpop.xlane.xlu0 %3651
      %3653 = vadd.xlane.f32.xlu0 %v3620
      %v3654 = vpop.xlane.xlu0 %3653
      %v3655 = vmul.f32 %v3624, %v1098
      %v3656 = vmul.f32 %v3626, %v1098
      %v3657 = vmul.f32 %v3628, %v1098
      %v3658 = vmul.f32 %v3630, %v1098
      %v3659 = vmul.f32 %v3632, %v1098
      %v3660 = vmul.f32 %v3634, %v1098
      %v3661 = vmul.f32 %v3636, %v1098
      %v3662 = vmul.f32 %v3638, %v1098
      %v3663 = vmul.f32 %v3640, %v1098
      %v3664 = vmul.f32 %v3642, %v1098
      %v3665 = vmul.f32 %v3644, %v1098
      %v3666 = vmul.f32 %v3646, %v1098
      %v3667 = vmul.f32 %v3648, %v1098
      %v3668 = vmul.f32 %v3650, %v1098
      %v3669 = vmul.f32 %v3652, %v1098
      %v3670 = vmul.f32 %v3654, %v1098
      %v3671 = vsub.f32 %v3605, %v3655
      %v3672 = vsub.f32 %v3606, %v3656
      %v3673 = vsub.f32 %v3607, %v3657
      %v3674 = vsub.f32 %v3608, %v3658
      %v3675 = vsub.f32 %v3609, %v3659
      %v3676 = vsub.f32 %v3610, %v3660
      %v3677 = vsub.f32 %v3611, %v3661
      %v3678 = vsub.f32 %v3612, %v3662
      %v3679 = vsub.f32 %v3613, %v3663
      %v3680 = vsub.f32 %v3614, %v3664
      %v3681 = vsub.f32 %v3615, %v3665
      %v3682 = vsub.f32 %v3616, %v3666
      %v3683 = vsub.f32 %v3617, %v3667
      %v3684 = vsub.f32 %v3618, %v3668
      %v3685 = vsub.f32 %v3619, %v3669
      %v3686 = vsub.f32 %v3620, %v3670
      %v3687 = vmul.f32 %v3671, %v3671
      %v3688 = vmul.f32 %v3672, %v3672
      %v3689 = vmul.f32 %v3673, %v3673
      %v3690 = vmul.f32 %v3674, %v3674
      %v3691 = vmul.f32 %v3675, %v3675
      %v3692 = vmul.f32 %v3676, %v3676
      %v3693 = vmul.f32 %v3677, %v3677
      %v3694 = vmul.f32 %v3678, %v3678
      %v3695 = vmul.f32 %v3679, %v3679
      %v3696 = vmul.f32 %v3680, %v3680
      %v3697 = vmul.f32 %v3681, %v3681
      %v3698 = vmul.f32 %v3682, %v3682
      %v3699 = vmul.f32 %v3683, %v3683
      %v3700 = vmul.f32 %v3684, %v3684
      %v3701 = vmul.f32 %v3685, %v3685
      %v3702 = vmul.f32 %v3686, %v3686
      %3703 = vadd.xlane.f32.xlu0 %v3687
      %v3704 = vpop.xlane.xlu0 %3703
      %3705 = vadd.xlane.f32.xlu0 %v3688
      %v3706 = vpop.xlane.xlu0 %3705
      %3707 = vadd.xlane.f32.xlu0 %v3689
      %v3708 = vpop.xlane.xlu0 %3707
      %3709 = vadd.xlane.f32.xlu0 %v3690
      %v3710 = vpop.xlane.xlu0 %3709
      %3711 = vadd.xlane.f32.xlu0 %v3691
      %v3712 = vpop.xlane.xlu0 %3711
      %3713 = vadd.xlane.f32.xlu0 %v3692
      %v3714 = vpop.xlane.xlu0 %3713
      %3715 = vadd.xlane.f32.xlu0 %v3693
      %v3716 = vpop.xlane.xlu0 %3715
      %3717 = vadd.xlane.f32.xlu0 %v3694
      %v3718 = vpop.xlane.xlu0 %3717
      %3719 = vadd.xlane.f32.xlu0 %v3695
      %v3720 = vpop.xlane.xlu0 %3719
      %3721 = vadd.xlane.f32.xlu0 %v3696
      %v3722 = vpop.xlane.xlu0 %3721
      %3723 = vadd.xlane.f32.xlu0 %v3697
      %v3724 = vpop.xlane.xlu0 %3723
      %3725 = vadd.xlane.f32.xlu0 %v3698
      %v3726 = vpop.xlane.xlu0 %3725
      %3727 = vadd.xlane.f32.xlu0 %v3699
      %v3728 = vpop.xlane.xlu0 %3727
      %3729 = vadd.xlane.f32.xlu0 %v3700
      %v3730 = vpop.xlane.xlu0 %3729
      %3731 = vadd.xlane.f32.xlu0 %v3701
      %v3732 = vpop.xlane.xlu0 %3731
      %3733 = vadd.xlane.f32.xlu0 %v3702
      %v3734 = vpop.xlane.xlu0 %3733
      %v3735 = vmul.f32 %v3704, %v1098
      %v3736 = vmul.f32 %v3706, %v1098
      %v3737 = vmul.f32 %v3708, %v1098
      %v3738 = vmul.f32 %v3710, %v1098
      %v3739 = vmul.f32 %v3712, %v1098
      %v3740 = vmul.f32 %v3714, %v1098
      %v3741 = vmul.f32 %v3716, %v1098
      %v3742 = vmul.f32 %v3718, %v1098
      %v3743 = vmul.f32 %v3720, %v1098
      %v3744 = vmul.f32 %v3722, %v1098
      %v3745 = vmul.f32 %v3724, %v1098
      %v3746 = vmul.f32 %v3726, %v1098
      %v3747 = vmul.f32 %v3728, %v1098
      %v3748 = vmul.f32 %v3730, %v1098
      %v3749 = vmul.f32 %v3732, %v1098
      %v3750 = vmul.f32 %v3734, %v1098
      %v3751 = vadd.f32 %v3735, 1e-05
      %v3752 = vadd.f32 %v3736, 1e-05
      %v3753 = vadd.f32 %v3737, 1e-05
      %v3754 = vadd.f32 %v3738, 1e-05
      %v3755 = vadd.f32 %v3739, 1e-05
      %v3756 = vadd.f32 %v3740, 1e-05
      %v3757 = vadd.f32 %v3741, 1e-05
      %v3758 = vadd.f32 %v3742, 1e-05
      %v3759 = vadd.f32 %v3743, 1e-05
      %v3760 = vadd.f32 %v3744, 1e-05
      %v3761 = vadd.f32 %v3745, 1e-05
      %v3762 = vadd.f32 %v3746, 1e-05
      %v3763 = vadd.f32 %v3747, 1e-05
      %v3764 = vadd.f32 %v3748, 1e-05
      %v3765 = vadd.f32 %v3749, 1e-05
      %v3766 = vadd.f32 %v3750, 1e-05
      %v3767 = vrsqrt.pop %v3751
      %v3768 = vrsqrt.pop %v3752
      %v3769 = vrsqrt.pop %v3753
      %v3770 = vrsqrt.pop %v3754
      %v3771 = vrsqrt.pop %v3755
      %v3772 = vrsqrt.pop %v3756
      %v3773 = vrsqrt.pop %v3757
      %v3774 = vrsqrt.pop %v3758
      %v3775 = vrsqrt.pop %v3759
      %v3776 = vrsqrt.pop %v3760
      %v3777 = vrsqrt.pop %v3761
      %v3778 = vrsqrt.pop %v3762
      %v3779 = vrsqrt.pop %v3763
      %v3780 = vrsqrt.pop %v3764
      %v3781 = vrsqrt.pop %v3765
      %v3782 = vrsqrt.pop %v3766
      %v3783 = vmul.f32 %v3671, %v3767
      %v3784 = vmul.f32 %v3672, %v3768
      %v3785 = vmul.f32 %v3673, %v3769
      %v3786 = vmul.f32 %v3674, %v3770
      %v3787 = vmul.f32 %v3675, %v3771
      %v3788 = vmul.f32 %v3676, %v3772
      %v3789 = vmul.f32 %v3677, %v3773
      %v3790 = vmul.f32 %v3678, %v3774
      %v3791 = vmul.f32 %v3679, %v3775
      %v3792 = vmul.f32 %v3680, %v3776
      %v3793 = vmul.f32 %v3681, %v3777
      %v3794 = vmul.f32 %v3682, %v3778
      %v3795 = vmul.f32 %v3683, %v3779
      %v3796 = vmul.f32 %v3684, %v3780
      %v3797 = vmul.f32 %v3685, %v3781
      %v3798 = vmul.f32 %v3686, %v3782
      %v3800 = vlaneseq
      %v3801 = vshrl.u32 %v3800, 7
      %v3802 = vsub.s32 0, %v3801
      %v3803 = vrot.slane %v3621, %v3802
      %v3805 = vmul.f32 %v3783, %v3803
      %v3806 = vmul.f32 %v3784, %v3803
      %v3807 = vmul.f32 %v3785, %v3803
      %v3808 = vmul.f32 %v3786, %v3803
      %v3809 = vmul.f32 %v3787, %v3803
      %v3810 = vmul.f32 %v3788, %v3803
      %v3811 = vmul.f32 %v3789, %v3803
      %v3812 = vmul.f32 %v3790, %v3803
      %v3813 = vmul.f32 %v3791, %v3803
      %v3814 = vmul.f32 %v3792, %v3803
      %v3815 = vmul.f32 %v3793, %v3803
      %v3816 = vmul.f32 %v3794, %v3803
      %v3817 = vmul.f32 %v3795, %v3803
      %v3818 = vmul.f32 %v3796, %v3803
      %v3819 = vmul.f32 %v3797, %v3803
      %v3820 = vmul.f32 %v3798, %v3803
      %v3822 = vlaneseq
      %v3823 = vshrl.u32 %v3822, 7
      %v3824 = vsub.s32 0, %v3823
      %v3825 = vrot.slane %v3622, %v3824
      %v3827 = vadd.f32 %v3805, %v3825
      %v3828 = vadd.f32 %v3806, %v3825
      %v3829 = vadd.f32 %v3807, %v3825
      %v3830 = vadd.f32 %v3808, %v3825
      %v3831 = vadd.f32 %v3809, %v3825
      %v3832 = vadd.f32 %v3810, %v3825
      %v3833 = vadd.f32 %v3811, %v3825
      %v3834 = vadd.f32 %v3812, %v3825
      %v3835 = vadd.f32 %v3813, %v3825
      %v3836 = vadd.f32 %v3814, %v3825
      %v3837 = vadd.f32 %v3815, %v3825
      %v3838 = vadd.f32 %v3816, %v3825
      %v3839 = vadd.f32 %v3817, %v3825
      %v3840 = vadd.f32 %v3818, %v3825
      %v3841 = vadd.f32 %v3819, %v3825
      %v3842 = vadd.f32 %v3820, %v3825
      %v3843 = vpack.c.bf16 %v3828, %v3827
      %v3844 = vpack.c.bf16 %v3830, %v3829
      %v3845 = vpack.c.bf16 %v3832, %v3831
      %v3846 = vpack.c.bf16 %v3834, %v3833
      %v3847 = vpack.c.bf16 %v3836, %v3835
      %v3848 = vpack.c.bf16 %v3838, %v3837
      %v3849 = vpack.c.bf16 %v3840, %v3839
      %v3850 = vpack.c.bf16 %v3842, %v3841
      %v3851 = vld [vmem:[%s784] sm:$0xff]
      %v3852 = vld [vmem:[%s784 + $0x8] sm:$0xff]
      %v3853 = vld [vmem:[%s784 + $0x10] sm:$0xff]
      %v3854 = vld [vmem:[%s784 + $0x18] sm:$0xff]
      %v3855 = vld [vmem:[%s784 + $0x20] sm:$0xff]
      %v3856 = vld [vmem:[%s784 + $0x28] sm:$0xff]
      %v3857 = vld [vmem:[%s784 + $0x30] sm:$0xff]
      %v3858 = vld [vmem:[%s784 + $0x38] sm:$0xff]
      %v3859 = vld [vmem:[%s784 + $0x40] sm:$0xff]
      %v3860 = vld [vmem:[%s784 + $0x48] sm:$0xff]
      %v3861 = vld [vmem:[%s784 + $0x50] sm:$0xff]
      %v3862 = vld [vmem:[%s784 + $0x58] sm:$0xff]
      %v3863 = vld [vmem:[%s784 + $0x60] sm:$0xff]
      %v3864 = vld [vmem:[%s784 + $0x68] sm:$0xff]
      %v3865 = vld [vmem:[%s784 + $0x70] sm:$0xff]
      %v3866 = vld [vmem:[%s784 + $0x78] sm:$0xff]
      %v3867 = vld [vmem:[%s788] sm:$0x3]
      %v3869 = vlaneseq
      %v3870 = vshrl.u32 %v3869, 7
      %v3871 = vsub.s32 0, %v3870
      %v3872 = vrot.slane %v3867, %v3871
      %v3873 = vlaneseq
      %v3874 = vshrl.u32 %v3873, 7
      %v3875 = vsub.s32 1, %v3874
      %v3876 = vrot.slane %v3867, %v3875
      %v3895 = vunpack.c.l.b16 %v3851
      %v3896 = vunpack.c.h.b16 %v3851
      %v3897 = vunpack.c.l.b16 %v3852
      %v3898 = vunpack.c.h.b16 %v3852
      %v3899 = vunpack.c.l.b16 %v3853
      %v3900 = vunpack.c.h.b16 %v3853
      %v3901 = vunpack.c.l.b16 %v3854
      %v3902 = vunpack.c.h.b16 %v3854
      %v3903 = vunpack.c.l.b16 %v3855
      %v3904 = vunpack.c.h.b16 %v3855
      %v3905 = vunpack.c.l.b16 %v3856
      %v3906 = vunpack.c.h.b16 %v3856
      %v3907 = vunpack.c.l.b16 %v3857
      %v3908 = vunpack.c.h.b16 %v3857
      %v3909 = vunpack.c.l.b16 %v3858
      %v3910 = vunpack.c.h.b16 %v3858
      %v3911 = vunpack.c.l.b16 %v3859
      %v3912 = vunpack.c.h.b16 %v3859
      %v3913 = vunpack.c.l.b16 %v3860
      %v3914 = vunpack.c.h.b16 %v3860
      %v3915 = vunpack.c.l.b16 %v3861
      %v3916 = vunpack.c.h.b16 %v3861
      %v3917 = vunpack.c.l.b16 %v3862
      %v3918 = vunpack.c.h.b16 %v3862
      %v3919 = vunpack.c.l.b16 %v3863
      %v3920 = vunpack.c.h.b16 %v3863
      %v3921 = vunpack.c.l.b16 %v3864
      %v3922 = vunpack.c.h.b16 %v3864
      %v3923 = vunpack.c.l.b16 %v3865
      %v3924 = vunpack.c.h.b16 %v3865
      %v3925 = vunpack.c.l.b16 %v3866
      %v3926 = vunpack.c.h.b16 %v3866
      %v3927 = vpack.c.b16 %v3897, %v3895
      %v3928 = vpack.c.b16 %v3898, %v3896
      %v3929 = vpack.c.b16 %v3901, %v3899
      %v3930 = vpack.c.b16 %v3902, %v3900
      %v3931 = vpack.c.b16 %v3905, %v3903
      %v3932 = vpack.c.b16 %v3906, %v3904
      %v3933 = vpack.c.b16 %v3909, %v3907
      %v3934 = vpack.c.b16 %v3910, %v3908
      %v3935 = vpack.c.b16 %v3913, %v3911
      %v3936 = vpack.c.b16 %v3914, %v3912
      %v3937 = vpack.c.b16 %v3917, %v3915
      %v3938 = vpack.c.b16 %v3918, %v3916
      %v3939 = vpack.c.b16 %v3921, %v3919
      %v3940 = vpack.c.b16 %v3922, %v3920
      %v3941 = vpack.c.b16 %v3925, %v3923
      %v3942 = vpack.c.b16 %v3926, %v3924
      %3959 = vmatprep.subr.bf16.mxu0 %v3928
      %3960 = vmatpush1.bf16.msra.mxu0 %v3927
      %3961 = vmatprep.subr.bf16.mxu0 %v3930
      %3962 = vmatpush1.bf16.msra.mxu0 %v3929
      %3963 = vmatprep.subr.bf16.mxu0 %v3932
      %3964 = vmatpush1.bf16.msra.mxu0 %v3931
      %3965 = vmatprep.subr.bf16.mxu0 %v3934
      %3966 = vmatpush1.bf16.msra.mxu0 %v3933
      %3967 = vmatprep.subr.bf16.mxu0 %v3936
      %3968 = vmatpush1.bf16.msra.mxu0 %v3935
      %3969 = vmatprep.subr.bf16.mxu0 %v3938
      %3970 = vmatpush1.bf16.msra.mxu0 %v3937
      %3971 = vmatprep.subr.bf16.mxu0 %v3940
      %3972 = vmatpush1.bf16.msra.mxu0 %v3939
      %3973 = vmatprep.subr.bf16.mxu0 %v3942
      %3974 = vmatpush1.bf16.msra.mxu0 %v3941
      %3975 = vmatprep.subr.bf16.mxu0 0
      %3976 = vmatpush1.bf16.msra.mxu0 0
      %3977 = vmatprep.subr.bf16.mxu0 0
      %3978 = vmatpush1.bf16.msra.mxu0 0
      %3979 = vmatprep.subr.bf16.mxu0 0
      %3980 = vmatpush1.bf16.msra.mxu0 0
      %3981 = vmatprep.subr.bf16.mxu0 0
      %3982 = vmatpush1.bf16.msra.mxu0 0
      %3983 = vmatprep.subr.bf16.mxu0 0
      %3984 = vmatpush1.bf16.msra.mxu0 0
      %3985 = vmatprep.subr.bf16.mxu0 0
      %3986 = vmatpush1.bf16.msra.mxu0 0
      %3987 = vmatprep.subr.bf16.mxu0 0
      %3988 = vmatpush1.bf16.msra.mxu0 0
      %3989 = vmatprep.subr.bf16.mxu0 0
      %3990 = vmatpush1.bf16.msra.mxu0 0
      %3991 = vmatprep.mubr.bf16.mxu0 0
      %3992 = vmatmul.mubr.bf16.gmra.mrb[0].mxu0 %v3843
      %v3993 = vpop.f32.mrb[0].mxu0
      %v3994 = vadd.f32 %v3872, %v3993
      %v3995 = vpop.f32.mrb[0].mxu0
      %v3996 = vadd.f32 %v3876, %v3995
      %v3997 = vpop.f32.mrb[0].mxu0
      %v3998 = vadd.f32 %v3872, %v3997
      %v3999 = vpop.f32.mrb[0].mxu0
      %v4000 = vadd.f32 %v3876, %v3999
      %4001 = vmatprep.mubr.bf16.mxu0 0
      %4002 = vmatmul.mubr.bf16.gmra.mrb[0].mxu0 %v3844
      %v4003 = vpop.f32.mrb[0].mxu0
      %v4004 = vadd.f32 %v3872, %v4003
      %v4005 = vpop.f32.mrb[0].mxu0
      %v4006 = vadd.f32 %v3876, %v4005
      %v4007 = vpop.f32.mrb[0].mxu0
      %v4008 = vadd.f32 %v3872, %v4007
      %v4009 = vpop.f32.mrb[0].mxu0
      %v4010 = vadd.f32 %v3876, %v4009
      %4011 = vmatprep.mubr.bf16.mxu0 0
      %4012 = vmatmul.mubr.bf16.gmra.mrb[0].mxu0 %v3845
      %v4013 = vpop.f32.mrb[0].mxu0
      %v4014 = vadd.f32 %v3872, %v4013
      %v4015 = vpop.f32.mrb[0].mxu0
      %v4016 = vadd.f32 %v3876, %v4015
      %v4017 = vpop.f32.mrb[0].mxu0
      %v4018 = vadd.f32 %v3872, %v4017
      %v4019 = vpop.f32.mrb[0].mxu0
      %v4020 = vadd.f32 %v3876, %v4019
      %4021 = vmatprep.mubr.bf16.mxu0 0
      %4022 = vmatmul.mubr.bf16.gmra.mrb[0].mxu0 %v3846
      %v4023 = vpop.f32.mrb[0].mxu0
      %v4024 = vadd.f32 %v3872, %v4023
      %v4025 = vpop.f32.mrb[0].mxu0
      %v4026 = vadd.f32 %v3876, %v4025
      %v4027 = vpop.f32.mrb[0].mxu0
      %v4028 = vadd.f32 %v3872, %v4027
      %v4029 = vpop.f32.mrb[0].mxu0
      %v4030 = vadd.f32 %v3876, %v4029
      %4031 = vmatprep.mubr.bf16.mxu0 0
      %4032 = vmatmul.mubr.bf16.gmra.mrb[0].mxu0 %v3847
      %v4033 = vpop.f32.mrb[0].mxu0
      %v4034 = vadd.f32 %v3872, %v4033
      %v4035 = vpop.f32.mrb[0].mxu0
      %v4036 = vadd.f32 %v3876, %v4035
      %v4037 = vpop.f32.mrb[0].mxu0
      %v4038 = vadd.f32 %v3872, %v4037
      %v4039 = vpop.f32.mrb[0].mxu0
      %v4040 = vadd.f32 %v3876, %v4039
      %4041 = vmatprep.mubr.bf16.mxu0 0
      %4042 = vmatmul.mubr.bf16.gmra.mrb[0].mxu0 %v3848
      %v4043 = vpop.f32.mrb[0].mxu0
      %v4044 = vadd.f32 %v3872, %v4043
      %v4045 = vpop.f32.mrb[0].mxu0
      %v4046 = vadd.f32 %v3876, %v4045
      %v4047 = vpop.f32.mrb[0].mxu0
      %v4048 = vadd.f32 %v3872, %v4047
      %v4049 = vpop.f32.mrb[0].mxu0
      %v4050 = vadd.f32 %v3876, %v4049
      %4051 = vmatprep.mubr.bf16.mxu0 0
      %4052 = vmatmul.mubr.bf16.gmra.mrb[0].mxu0 %v3849
      %v4053 = vpop.f32.mrb[0].mxu0
      %v4054 = vadd.f32 %v3872, %v4053
      %v4055 = vpop.f32.mrb[0].mxu0
      %v4056 = vadd.f32 %v3876, %v4055
      %v4057 = vpop.f32.mrb[0].mxu0
      %v4058 = vadd.f32 %v3872, %v4057
      %v4059 = vpop.f32.mrb[0].mxu0
      %v4060 = vadd.f32 %v3876, %v4059
      %4061 = vmatprep.mubr.bf16.mxu0 0
      %4062 = vmatmul.mubr.bf16.gmra.mrb[0].mxu0 %v3850
      %v4063 = vpop.f32.mrb[0].mxu0
      %v4064 = vadd.f32 %v3872, %v4063
      %v4065 = vpop.f32.mrb[0].mxu0
      %v4066 = vadd.f32 %v3876, %v4065
      %v4067 = vpop.f32.mrb[0].mxu0
      %v4068 = vadd.f32 %v3872, %v4067
      %v4069 = vpop.f32.mrb[0].mxu0
      %v4070 = vadd.f32 %v3876, %v4069
      %4071 = vdwg.mxu0
      %v4072 = vmul.f32 %v3994, 0.5
      %v4073 = vmul.f32 %v3996, 0.5
      %v4074 = vmul.f32 %v3998, 0.5
      %v4075 = vmul.f32 %v4000, 0.5
      %v4076 = vmul.f32 %v4004, 0.5
      %v4077 = vmul.f32 %v4006, 0.5
      %v4078 = vmul.f32 %v4008, 0.5
      %v4079 = vmul.f32 %v4010, 0.5
      %v4080 = vmul.f32 %v4014, 0.5
      %v4081 = vmul.f32 %v4016, 0.5
      %v4082 = vmul.f32 %v4018, 0.5
      %v4083 = vmul.f32 %v4020, 0.5
      %v4084 = vmul.f32 %v4024, 0.5
      %v4085 = vmul.f32 %v4026, 0.5
      %v4086 = vmul.f32 %v4028, 0.5
      %v4087 = vmul.f32 %v4030, 0.5
      %v4088 = vmul.f32 %v4034, 0.5
      %v4089 = vmul.f32 %v4036, 0.5
      %v4090 = vmul.f32 %v4038, 0.5
      %v4091 = vmul.f32 %v4040, 0.5
      %v4092 = vmul.f32 %v4044, 0.5
      %v4093 = vmul.f32 %v4046, 0.5
      %v4094 = vmul.f32 %v4048, 0.5
      %v4095 = vmul.f32 %v4050, 0.5
      %v4096 = vmul.f32 %v4054, 0.5
      %v4097 = vmul.f32 %v4056, 0.5
      %v4098 = vmul.f32 %v4058, 0.5
      %v4099 = vmul.f32 %v4060, 0.5
      %v4100 = vmul.f32 %v4064, 0.5
      %v4101 = vmul.f32 %v4066, 0.5
      %v4102 = vmul.f32 %v4068, 0.5
      %v4103 = vmul.f32 %v4070, 0.5
      %v4104 = vmul.f32 %v3994, 0.70710677
      %v4105 = vmul.f32 %v3996, 0.70710677
      %v4106 = vmul.f32 %v3998, 0.70710677
      %v4107 = vmul.f32 %v4000, 0.70710677
      %v4108 = vmul.f32 %v4004, 0.70710677
      %v4109 = vmul.f32 %v4006, 0.70710677
      %v4110 = vmul.f32 %v4008, 0.70710677
      %v4111 = vmul.f32 %v4010, 0.70710677
      %v4112 = vmul.f32 %v4014, 0.70710677
      %v4113 = vmul.f32 %v4016, 0.70710677
      %v4114 = vmul.f32 %v4018, 0.70710677
      %v4115 = vmul.f32 %v4020, 0.70710677
      %v4116 = vmul.f32 %v4024, 0.70710677
      %v4117 = vmul.f32 %v4026, 0.70710677
      %v4118 = vmul.f32 %v4028, 0.70710677
      %v4119 = vmul.f32 %v4030, 0.70710677
      %v4120 = vmul.f32 %v4034, 0.70710677
      %v4121 = vmul.f32 %v4036, 0.70710677
      %v4122 = vmul.f32 %v4038, 0.70710677
      %v4123 = vmul.f32 %v4040, 0.70710677
      %v4124 = vmul.f32 %v4044, 0.70710677
      %v4125 = vmul.f32 %v4046, 0.70710677
      %v4126 = vmul.f32 %v4048, 0.70710677
      %v4127 = vmul.f32 %v4050, 0.70710677
      %v4128 = vmul.f32 %v4054, 0.70710677
      %v4129 = vmul.f32 %v4056, 0.70710677
      %v4130 = vmul.f32 %v4058, 0.70710677
      %v4131 = vmul.f32 %v4060, 0.70710677
      %v4132 = vmul.f32 %v4064, 0.70710677
      %v4133 = vmul.f32 %v4066, 0.70710677
      %v4134 = vmul.f32 %v4068, 0.70710677
      %v4135 = vmul.f32 %v4070, 0.70710677
      %v4136 = verf.f32.pop %v4104
      %v4137 = verf.f32.pop %v4105
      %v4138 = verf.f32.pop %v4106
      %v4139 = verf.f32.pop %v4107
      %v4140 = verf.f32.pop %v4108
      %v4141 = verf.f32.pop %v4109
      %v4142 = verf.f32.pop %v4110
      %v4143 = verf.f32.pop %v4111
      %v4144 = verf.f32.pop %v4112
      %v4145 = verf.f32.pop %v4113
      %v4146 = verf.f32.pop %v4114
      %v4147 = verf.f32.pop %v4115
      %v4148 = verf.f32.pop %v4116
      %v4149 = verf.f32.pop %v4117
      %v4150 = verf.f32.pop %v4118
      %v4151 = verf.f32.pop %v4119
      %v4152 = verf.f32.pop %v4120
      %v4153 = verf.f32.pop %v4121
      %v4154 = verf.f32.pop %v4122
      %v4155 = verf.f32.pop %v4123
      %v4156 = verf.f32.pop %v4124
      %v4157 = verf.f32.pop %v4125
      %v4158 = verf.f32.pop %v4126
      %v4159 = verf.f32.pop %v4127
      %v4160 = verf.f32.pop %v4128
      %v4161 = verf.f32.pop %v4129
      %v4162 = verf.f32.pop %v4130
      %v4163 = verf.f32.pop %v4131
      %v4164 = verf.f32.pop %v4132
      %v4165 = verf.f32.pop %v4133
      %v4166 = verf.f32.pop %v4134
      %v4167 = verf.f32.pop %v4135
      %v4168 = vadd.f32 %v4136, 1.0
      %v4169 = vadd.f32 %v4137, 1.0
      %v4170 = vadd.f32 %v4138, 1.0
      %v4171 = vadd.f32 %v4139, 1.0
      %v4172 = vadd.f32 %v4140, 1.0
      %v4173 = vadd.f32 %v4141, 1.0
      %v4174 = vadd.f32 %v4142, 1.0
      %v4175 = vadd.f32 %v4143, 1.0
      %v4176 = vadd.f32 %v4144, 1.0
      %v4177 = vadd.f32 %v4145, 1.0
      %v4178 = vadd.f32 %v4146, 1.0
      %v4179 = vadd.f32 %v4147, 1.0
      %v4180 = vadd.f32 %v4148, 1.0
      %v4181 = vadd.f32 %v4149, 1.0
      %v4182 = vadd.f32 %v4150, 1.0
      %v4183 = vadd.f32 %v4151, 1.0
      %v4184 = vadd.f32 %v4152, 1.0
      %v4185 = vadd.f32 %v4153, 1.0
      %v4186 = vadd.f32 %v4154, 1.0
      %v4187 = vadd.f32 %v4155, 1.0
      %v4188 = vadd.f32 %v4156, 1.0
      %v4189 = vadd.f32 %v4157, 1.0
      %v4190 = vadd.f32 %v4158, 1.0
      %v4191 = vadd.f32 %v4159, 1.0
      %v4192 = vadd.f32 %v4160, 1.0
      %v4193 = vadd.f32 %v4161, 1.0
      %v4194 = vadd.f32 %v4162, 1.0
      %v4195 = vadd.f32 %v4163, 1.0
      %v4196 = vadd.f32 %v4164, 1.0
      %v4197 = vadd.f32 %v4165, 1.0
      %v4198 = vadd.f32 %v4166, 1.0
      %v4199 = vadd.f32 %v4167, 1.0
      %v4200 = vmul.f32 %v4072, %v4168
      %v4201 = vmul.f32 %v4073, %v4169
      %v4202 = vmul.f32 %v4074, %v4170
      %v4203 = vmul.f32 %v4075, %v4171
      %v4204 = vmul.f32 %v4076, %v4172
      %v4205 = vmul.f32 %v4077, %v4173
      %v4206 = vmul.f32 %v4078, %v4174
      %v4207 = vmul.f32 %v4079, %v4175
      %v4208 = vmul.f32 %v4080, %v4176
      %v4209 = vmul.f32 %v4081, %v4177
      %v4210 = vmul.f32 %v4082, %v4178
      %v4211 = vmul.f32 %v4083, %v4179
      %v4212 = vmul.f32 %v4084, %v4180
      %v4213 = vmul.f32 %v4085, %v4181
      %v4214 = vmul.f32 %v4086, %v4182
      %v4215 = vmul.f32 %v4087, %v4183
      %v4216 = vmul.f32 %v4088, %v4184
      %v4217 = vmul.f32 %v4089, %v4185
      %v4218 = vmul.f32 %v4090, %v4186
      %v4219 = vmul.f32 %v4091, %v4187
      %v4220 = vmul.f32 %v4092, %v4188
      %v4221 = vmul.f32 %v4093, %v4189
      %v4222 = vmul.f32 %v4094, %v4190
      %v4223 = vmul.f32 %v4095, %v4191
      %v4224 = vmul.f32 %v4096, %v4192
      %v4225 = vmul.f32 %v4097, %v4193
      %v4226 = vmul.f32 %v4098, %v4194
      %v4227 = vmul.f32 %v4099, %v4195
      %v4228 = vmul.f32 %v4100, %v4196
      %v4229 = vmul.f32 %v4101, %v4197
      %v4230 = vmul.f32 %v4102, %v4198
      %v4231 = vmul.f32 %v4103, %v4199
      %v4232 = vpack.c.bf16 %v4202, %v4200
      %v4233 = vpack.c.bf16 %v4203, %v4201
      %v4234 = vpack.c.bf16 %v4206, %v4204
      %v4235 = vpack.c.bf16 %v4207, %v4205
      %v4236 = vpack.c.bf16 %v4210, %v4208
      %v4237 = vpack.c.bf16 %v4211, %v4209
      %v4238 = vpack.c.bf16 %v4214, %v4212
      %v4239 = vpack.c.bf16 %v4215, %v4213
      %v4240 = vpack.c.bf16 %v4218, %v4216
      %v4241 = vpack.c.bf16 %v4219, %v4217
      %v4242 = vpack.c.bf16 %v4222, %v4220
      %v4243 = vpack.c.bf16 %v4223, %v4221
      %v4244 = vpack.c.bf16 %v4226, %v4224
      %v4245 = vpack.c.bf16 %v4227, %v4225
      %v4246 = vpack.c.bf16 %v4230, %v4228
      %v4247 = vpack.c.bf16 %v4231, %v4229
      %v4248 = vld [vmem:[%s793] sm:$0xf]
      %v4249 = vld [vmem:[%s793 + $0x4] sm:$0xf]
      %v4250 = vld [vmem:[%s793 + $0x8] sm:$0xf]
      %v4251 = vld [vmem:[%s793 + $0xc] sm:$0xf]
      %v4252 = vld [vmem:[%s793 + $0x10] sm:$0xf]
      %v4253 = vld [vmem:[%s793 + $0x14] sm:$0xf]
      %v4254 = vld [vmem:[%s793 + $0x18] sm:$0xf]
      %v4255 = vld [vmem:[%s793 + $0x1c] sm:$0xf]
      %v4256 = vld [vmem:[%s793 + $0x20] sm:$0xf]
      %v4257 = vld [vmem:[%s793 + $0x24] sm:$0xf]
      %v4258 = vld [vmem:[%s793 + $0x28] sm:$0xf]
      %v4259 = vld [vmem:[%s793 + $0x2c] sm:$0xf]
      %v4260 = vld [vmem:[%s793 + $0x30] sm:$0xf]
      %v4261 = vld [vmem:[%s793 + $0x34] sm:$0xf]
      %v4262 = vld [vmem:[%s793 + $0x38] sm:$0xf]
      %v4263 = vld [vmem:[%s793 + $0x3c] sm:$0xf]
      %v4264 = vld [vmem:[%s793 + $0x40] sm:$0xf]
      %v4265 = vld [vmem:[%s793 + $0x44] sm:$0xf]
      %v4266 = vld [vmem:[%s793 + $0x48] sm:$0xf]
      %v4267 = vld [vmem:[%s793 + $0x4c] sm:$0xf]
      %v4268 = vld [vmem:[%s793 + $0x50] sm:$0xf]
      %v4269 = vld [vmem:[%s793 + $0x54] sm:$0xf]
      %v4270 = vld [vmem:[%s793 + $0x58] sm:$0xf]
      %v4271 = vld [vmem:[%s793 + $0x5c] sm:$0xf]
      %v4272 = vld [vmem:[%s793 + $0x60] sm:$0xf]
      %v4273 = vld [vmem:[%s793 + $0x64] sm:$0xf]
      %v4274 = vld [vmem:[%s793 + $0x68] sm:$0xf]
      %v4275 = vld [vmem:[%s793 + $0x6c] sm:$0xf]
      %v4276 = vld [vmem:[%s793 + $0x70] sm:$0xf]
      %v4277 = vld [vmem:[%s793 + $0x74] sm:$0xf]
      %v4278 = vld [vmem:[%s793 + $0x78] sm:$0xf]
      %v4279 = vld [vmem:[%s793 + $0x7c] sm:$0xf]
      %v4280 = vld [vmem:[%s796] sm:$0x1]
      %v4282 = vlaneseq
      %v4283 = vshrl.u32 %v4282, 7
      %v4284 = vsub.s32 0, %v4283
      %v4285 = vrot.slane %v4280, %v4284
      %v4319 = vunpack.c.l.b16 %v4248
      %v4320 = vunpack.c.l.b16 %v4249
      %v4321 = vunpack.c.l.b16 %v4250
      %v4322 = vunpack.c.l.b16 %v4251
      %v4323 = vunpack.c.l.b16 %v4252
      %v4324 = vunpack.c.l.b16 %v4253
      %v4325 = vunpack.c.l.b16 %v4254
      %v4326 = vunpack.c.l.b16 %v4255
      %v4327 = vunpack.c.l.b16 %v4256
      %v4328 = vunpack.c.l.b16 %v4257
      %v4329 = vunpack.c.l.b16 %v4258
      %v4330 = vunpack.c.l.b16 %v4259
      %v4331 = vunpack.c.l.b16 %v4260
      %v4332 = vunpack.c.l.b16 %v4261
      %v4333 = vunpack.c.l.b16 %v4262
      %v4334 = vunpack.c.l.b16 %v4263
      %v4335 = vunpack.c.l.b16 %v4264
      %v4336 = vunpack.c.l.b16 %v4265
      %v4337 = vunpack.c.l.b16 %v4266
      %v4338 = vunpack.c.l.b16 %v4267
      %v4339 = vunpack.c.l.b16 %v4268
      %v4340 = vunpack.c.l.b16 %v4269
      %v4341 = vunpack.c.l.b16 %v4270
      %v4342 = vunpack.c.l.b16 %v4271
      %v4343 = vunpack.c.l.b16 %v4272
      %v4344 = vunpack.c.l.b16 %v4273
      %v4345 = vunpack.c.l.b16 %v4274
      %v4346 = vunpack.c.l.b16 %v4275
      %v4347 = vunpack.c.l.b16 %v4276
      %v4348 = vunpack.c.l.b16 %v4277
      %v4349 = vunpack.c.l.b16 %v4278
      %v4350 = vunpack.c.l.b16 %v4279
      %v4351 = vpack.c.b16 %v4320, %v4319
      %v4352 = vpack.c.b16 %v4322, %v4321
      %v4353 = vpack.c.b16 %v4324, %v4323
      %v4354 = vpack.c.b16 %v4326, %v4325
      %v4355 = vpack.c.b16 %v4328, %v4327
      %v4356 = vpack.c.b16 %v4330, %v4329
      %v4357 = vpack.c.b16 %v4332, %v4331
      %v4358 = vpack.c.b16 %v4334, %v4333
      %v4359 = vpack.c.b16 %v4336, %v4335
      %v4360 = vpack.c.b16 %v4338, %v4337
      %v4361 = vpack.c.b16 %v4340, %v4339
      %v4362 = vpack.c.b16 %v4342, %v4341
      %v4363 = vpack.c.b16 %v4344, %v4343
      %v4364 = vpack.c.b16 %v4346, %v4345
      %v4365 = vpack.c.b16 %v4348, %v4347
      %v4366 = vpack.c.b16 %v4350, %v4349
      %4383 = vmatprep.subr.bf16.mxu0 0
      %4384 = vmatpush1.bf16.msra.mxu0 %v4351
      %4385 = vmatprep.subr.bf16.mxu0 0
      %4386 = vmatpush1.bf16.msra.mxu0 %v4352
      %4387 = vmatprep.subr.bf16.mxu0 0
      %4388 = vmatpush1.bf16.msra.mxu0 %v4353
      %4389 = vmatprep.subr.bf16.mxu0 0
      %4390 = vmatpush1.bf16.msra.mxu0 %v4354
      %4391 = vmatprep.subr.bf16.mxu0 0
      %4392 = vmatpush1.bf16.msra.mxu0 %v4355
      %4393 = vmatprep.subr.bf16.mxu0 0
      %4394 = vmatpush1.bf16.msra.mxu0 %v4356
      %4395 = vmatprep.subr.bf16.mxu0 0
      %4396 = vmatpush1.bf16.msra.mxu0 %v4357
      %4397 = vmatprep.subr.bf16.mxu0 0
      %4398 = vmatpush1.bf16.msra.mxu0 %v4358
      %4399 = vmatprep.subr.bf16.mxu0 0
      %4400 = vmatpush1.bf16.msra.mxu0 %v4359
      %4401 = vmatprep.subr.bf16.mxu0 0
      %4402 = vmatpush1.bf16.msra.mxu0 %v4360
      %4403 = vmatprep.subr.bf16.mxu0 0
      %4404 = vmatpush1.bf16.msra.mxu0 %v4361
      %4405 = vmatprep.subr.bf16.mxu0 0
      %4406 = vmatpush1.bf16.msra.mxu0 %v4362
      %4407 = vmatprep.subr.bf16.mxu0 0
      %4408 = vmatpush1.bf16.msra.mxu0 %v4363
      %4409 = vmatprep.subr.bf16.mxu0 0
      %4410 = vmatpush1.bf16.msra.mxu0 %v4364
      %4411 = vmatprep.subr.bf16.mxu0 0
      %4412 = vmatpush1.bf16.msra.mxu0 %v4365
      %4413 = vmatprep.subr.bf16.mxu0 0
      %4414 = vmatpush1.bf16.msra.mxu0 %v4366
      %4415 = vmatprep.mubr.bf16.mxu0 %v4233
      %4416 = vmatmul.mubr.bf16.gmra.mrb[0].mxu0 %v4232
      %v4417 = vpop.f32.mrb[0].mxu0
      %v4418 = vadd.f32 %v4285, %v4417
      %v4419 = vpop.f32.mrb[0].mxu0
      %v4420 = vpop.f32.mrb[0].mxu0
      %v4421 = vadd.f32 %v4285, %v4420
      %v4422 = vpop.f32.mrb[0].mxu0
      %4423 = vmatprep.mubr.bf16.mxu0 %v4235
      %4424 = vmatmul.mubr.bf16.gmra.mrb[0].mxu0 %v4234
      %v4425 = vpop.f32.mrb[0].mxu0
      %v4426 = vadd.f32 %v4285, %v4425
      %v4427 = vpop.f32.mrb[0].mxu0
      %v4428 = vpop.f32.mrb[0].mxu0
      %v4429 = vadd.f32 %v4285, %v4428
      %v4430 = vpop.f32.mrb[0].mxu0
      %4431 = vmatprep.mubr.bf16.mxu0 %v4237
      %4432 = vmatmul.mubr.bf16.gmra.mrb[0].mxu0 %v4236
      %v4433 = vpop.f32.mrb[0].mxu0
      %v4434 = vadd.f32 %v4285, %v4433
      %v4435 = vpop.f32.mrb[0].mxu0
      %v4436 = vpop.f32.mrb[0].mxu0
      %v4437 = vadd.f32 %v4285, %v4436
      %v4438 = vpop.f32.mrb[0].mxu0
      %4439 = vmatprep.mubr.bf16.mxu0 %v4239
      %4440 = vmatmul.mubr.bf16.gmra.mrb[0].mxu0 %v4238
      %v4441 = vpop.f32.mrb[0].mxu0
      %v4442 = vadd.f32 %v4285, %v4441
      %v4443 = vpop.f32.mrb[0].mxu0
      %v4444 = vpop.f32.mrb[0].mxu0
      %v4445 = vadd.f32 %v4285, %v4444
      %v4446 = vpop.f32.mrb[0].mxu0
      %4447 = vmatprep.mubr.bf16.mxu0 %v4241
      %4448 = vmatmul.mubr.bf16.gmra.mrb[0].mxu0 %v4240
      %v4449 = vpop.f32.mrb[0].mxu0
      %v4450 = vadd.f32 %v4285, %v4449
      %v4451 = vpop.f32.mrb[0].mxu0
      %v4452 = vpop.f32.mrb[0].mxu0
      %v4453 = vadd.f32 %v4285, %v4452
      %v4454 = vpop.f32.mrb[0].mxu0
      %4455 = vmatprep.mubr.bf16.mxu0 %v4243
      %4456 = vmatmul.mubr.bf16.gmra.mrb[0].mxu0 %v4242
      %v4457 = vpop.f32.mrb[0].mxu0
      %v4458 = vadd.f32 %v4285, %v4457
      %v4459 = vpop.f32.mrb[0].mxu0
      %v4460 = vpop.f32.mrb[0].mxu0
      %v4461 = vadd.f32 %v4285, %v4460
      %v4462 = vpop.f32.mrb[0].mxu0
      %4463 = vmatprep.mubr.bf16.mxu0 %v4245
      %4464 = vmatmul.mubr.bf16.gmra.mrb[0].mxu0 %v4244
      %v4465 = vpop.f32.mrb[0].mxu0
      %v4466 = vadd.f32 %v4285, %v4465
      %v4467 = vpop.f32.mrb[0].mxu0
      %v4468 = vpop.f32.mrb[0].mxu0
      %v4469 = vadd.f32 %v4285, %v4468
      %v4470 = vpop.f32.mrb[0].mxu0
      %4471 = vmatprep.mubr.bf16.mxu0 %v4247
      %4472 = vmatmul.mubr.bf16.gmra.mrb[0].mxu0 %v4246
      %v4473 = vpop.f32.mrb[0].mxu0
      %v4474 = vadd.f32 %v4285, %v4473
      %v4475 = vpop.f32.mrb[0].mxu0
      %v4476 = vpop.f32.mrb[0].mxu0
      %v4477 = vadd.f32 %v4285, %v4476
      %v4478 = vpop.f32.mrb[0].mxu0
      %4479 = vdwg.mxu0
      %v4480 = vadd.f32 %v3605, %v4418
      %v4481 = vadd.f32 %v3606, %v4421
      %v4482 = vadd.f32 %v3607, %v4426
      %v4483 = vadd.f32 %v3608, %v4429
      %v4484 = vadd.f32 %v3609, %v4434
      %v4485 = vadd.f32 %v3610, %v4437
      %v4486 = vadd.f32 %v3611, %v4442
      %v4487 = vadd.f32 %v3612, %v4445
      %v4488 = vadd.f32 %v3613, %v4450
      %v4489 = vadd.f32 %v3614, %v4453
      %v4490 = vadd.f32 %v3615, %v4458
      %v4491 = vadd.f32 %v3616, %v4461
      %v4492 = vadd.f32 %v3617, %v4466
      %v4493 = vadd.f32 %v3618, %v4469
      %v4494 = vadd.f32 %v3619, %v4474
      %v4495 = vadd.f32 %v3620, %v4477
      %4496 = vst [vmem:[#allocation2] sm:$0xff] %v4480
      %4497 = vst [vmem:[#allocation2 + $0x8] sm:$0xff] %v4481
      %4498 = vst [vmem:[#allocation2 + $0x10] sm:$0xff] %v4482
      %4499 = vst [vmem:[#allocation2 + $0x18] sm:$0xff] %v4483
      %4500 = vst [vmem:[#allocation2 + $0x20] sm:$0xff] %v4484
      %4501 = vst [vmem:[#allocation2 + $0x28] sm:$0xff] %v4485
      %4502 = vst [vmem:[#allocation2 + $0x30] sm:$0xff] %v4486
      %4503 = vst [vmem:[#allocation2 + $0x38] sm:$0xff] %v4487
      %4504 = vst [vmem:[#allocation2 + $0x40] sm:$0xff] %v4488
      %4505 = vst [vmem:[#allocation2 + $0x48] sm:$0xff] %v4489
      %4506 = vst [vmem:[#allocation2 + $0x50] sm:$0xff] %v4490
      %4507 = vst [vmem:[#allocation2 + $0x58] sm:$0xff] %v4491
      %4508 = vst [vmem:[#allocation2 + $0x60] sm:$0xff] %v4492
      %4509 = vst [vmem:[#allocation2 + $0x68] sm:$0xff] %v4493
      %4510 = vst [vmem:[#allocation2 + $0x70] sm:$0xff] %v4494
      %4511 = vst [vmem:[#allocation2 + $0x78] sm:$0xff] %v4495
      %p4512 = scmp.eq.s32.totalorder %s37, 1
      // Predicated region
      $region101: #{local_local_transformer3d.1} parent=95 // pred_check
        %p4513 = pneg %p4512
      $region102: #{local_local_transformer3d.1} parent=95 // pred_check_branch
        %4515 = sbr.rel (%p4513) target = $region104
      $region103: #{local_local_transformer3d.1} parent=95 // pred_region
        %v4516 = vadd.f32 %v4480, %v4481
        %v4517 = vadd.f32 %v4516, %v4482
        %v4518 = vadd.f32 %v4517, %v4483
        %v4519 = vadd.f32 %v4518, %v4484
        %v4520 = vadd.f32 %v4519, %v4485
        %v4521 = vadd.f32 %v4520, %v4486
        %v4522 = vadd.f32 %v4521, %v4487
        %v4523 = vrot.slane %v4522, 4
        %v4524 = vadd.f32 %v4522, %v4523
        %v4525 = vrot.slane %v4524, 2
        %v4526 = vadd.f32 %v4524, %v4525
        %v4527 = vrot.slane %v4526, 1
        %v4528 = vadd.f32 %v4526, %v4527
        %v4529 = vadd.f32 %v4488, %v4489
        %v4530 = vadd.f32 %v4529, %v4490
        %v4531 = vadd.f32 %v4530, %v4491
        %v4532 = vadd.f32 %v4531, %v4492
        %v4533 = vadd.f32 %v4532, %v4493
        %v4534 = vadd.f32 %v4533, %v4494
        %v4535 = vadd.f32 %v4534, %v4495
        %v4536 = vrot.slane %v4535, 4
        %v4537 = vadd.f32 %v4535, %v4536
        %v4538 = vrot.slane %v4537, 2
        %v4539 = vadd.f32 %v4537, %v4538
        %v4540 = vrot.slane %v4539, 1
        %v4541 = vadd.f32 %v4539, %v4540
        %v4542 = vrcp.pop 64.0
        %v4543 = vmul.f32 %v4528, %v4542
        %v4544 = vmul.f32 %v4541, %v4542
        %v4545 = vld [vmem:[%s15] sm:$0x1]
        %v4546 = vld [vmem:[%s16] sm:$0x1]
        %vm4549 = vcmask 1041409
        %v4550 = vsel %vm4549, %v4544, %v4543
        %vm4552 = vcmask 1041408
        %v4553 = vsel %vm4552, %v4550, 0.0
        %4554 = vadd.xlane.f32.xlu0 %v4553
        %v4555 = vpop.xlane.xlu0 %4554
        %v4556 = vmul.f32 %v4555, %v1098
        %v4558 = vrot.slane %v4556, 1
        %v4561 = vsub.f32 %v4543, %v4556
        %v4562 = vsub.f32 %v4544, %v4558
        %v4563 = vmul.f32 %v4561, %v4561
        %v4564 = vmul.f32 %v4562, %v4562
        %v4567 = vrot.slane %v4564, 7
        %v4568 = vsel %vm4549, %v4567, %v4563
        %v4570 = vsel %vm4552, %v4568, 0.0
        %4571 = vadd.xlane.f32.xlu0 %v4570
        %v4572 = vpop.xlane.xlu0 %4571
        %v4573 = vmul.f32 %v4572, %v1098
        %v4574 = vadd.f32 %v4573, 1e-05
        %v4575 = vrsqrt.pop %v4574
        %v4577 = vrot.slane %v4575, 1
        %v4580 = vmul.f32 %v4561, %v4575
        %v4581 = vmul.f32 %v4562, %v4577
        %v4583 = vlaneseq
        %v4584 = vshrl.u32 %v4583, 7
        %v4585 = vsub.s32 0, %v4584
        %v4586 = vrot.slane %v4545, %v4585
        %v4588 = vmul.f32 %v4580, %v4586
        %v4589 = vmul.f32 %v4581, %v4586
        %v4591 = vlaneseq
        %v4592 = vshrl.u32 %v4591, 7
        %v4593 = vsub.s32 0, %v4592
        %v4594 = vrot.slane %v4546, %v4593
        %v4596 = vadd.f32 %v4588, %v4594
        %v4597 = vadd.f32 %v4589, %v4594
        %v4598 = vld [vmem:[%s17] sm:$0xff]
        %v4599 = vld [vmem:[%s17 + $0x8] sm:$0xff]
        %v4600 = vld [vmem:[%s17 + $0x10] sm:$0xff]
        %v4601 = vld [vmem:[%s17 + $0x18] sm:$0xff]
        %v4602 = vld [vmem:[%s17 + $0x20] sm:$0xff]
        %v4603 = vld [vmem:[%s17 + $0x28] sm:$0xff]
        %v4604 = vld [vmem:[%s17 + $0x30] sm:$0xff]
        %v4605 = vld [vmem:[%s17 + $0x38] sm:$0xff]
        %v4606 = vld [vmem:[%s17 + $0x40] sm:$0xff]
        %v4607 = vld [vmem:[%s17 + $0x48] sm:$0xff]
        %v4608 = vld [vmem:[%s17 + $0x50] sm:$0xff]
        %v4609 = vld [vmem:[%s17 + $0x58] sm:$0xff]
        %v4610 = vld [vmem:[%s17 + $0x60] sm:$0xff]
        %v4611 = vld [vmem:[%s17 + $0x68] sm:$0xff]
        %v4612 = vld [vmem:[%s17 + $0x70] sm:$0xff]
        %v4613 = vld [vmem:[%s17 + $0x78] sm:$0xff]
        %v4614 = vld [vmem:[#allocation3] sm:$0x1]
        %v4616 = vlaneseq
        %v4617 = vshrl.u32 %v4616, 7
        %v4618 = vsub.s32 0, %v4617
        %v4619 = vrot.slane %v4614, %v4618
        %v4623 = vrot.slane %v4597, 7
        %v4624 = vsel %vm4549, %v4623, %v4596
        %4626 = vmatprep.subr.mxu0 0.0
        %4627 = vmatpush1.msra.mxu0 %v4598
        %4628 = vmatprep.subr.mxu0 0.0
        %4629 = vmatpush1.msra.mxu0 %v4599
        %4630 = vmatprep.subr.mxu0 0.0
        %4631 = vmatpush1.msra.mxu0 %v4600
        %4632 = vmatprep.subr.mxu0 0.0
        %4633 = vmatpush1.msra.mxu0 %v4601
        %4634 = vmatprep.subr.mxu0 0.0
        %4635 = vmatpush1.msra.mxu0 %v4602
        %4636 = vmatprep.subr.mxu0 0.0
        %4637 = vmatpush1.msra.mxu0 %v4603
        %4638 = vmatprep.subr.mxu0 0.0
        %4639 = vmatpush1.msra.mxu0 %v4604
        %4640 = vmatprep.subr.mxu0 0.0
        %4641 = vmatpush1.msra.mxu0 %v4605
        %4642 = vmatprep.subr.mxu0 0.0
        %4643 = vmatpush1.msra.mxu0 %v4606
        %4644 = vmatprep.subr.mxu0 0.0
        %4645 = vmatpush1.msra.mxu0 %v4607
        %4646 = vmatprep.subr.mxu0 0.0
        %4647 = vmatpush1.msra.mxu0 %v4608
        %4648 = vmatprep.subr.mxu0 0.0
        %4649 = vmatpush1.msra.mxu0 %v4609
        %4650 = vmatprep.subr.mxu0 0.0
        %4651 = vmatpush1.msra.mxu0 %v4610
        %4652 = vmatprep.subr.mxu0 0.0
        %4653 = vmatpush1.msra.mxu0 %v4611
        %4654 = vmatprep.subr.mxu0 0.0
        %4655 = vmatpush1.msra.mxu0 %v4612
        %4656 = vmatprep.subr.mxu0 0.0
        %4657 = vmatpush1.msra.mxu0 %v4613
        %4658 = vmatprep.subr.mxu0 0.0
        %4659 = vmatpush1.msra.mxu0 0.0
        %4660 = vmatprep.subr.mxu0 0.0
        %4661 = vmatpush1.msra.mxu0 0.0
        %4662 = vmatprep.subr.mxu0 0.0
        %4663 = vmatpush1.msra.mxu0 0.0
        %4664 = vmatprep.subr.mxu0 0.0
        %4665 = vmatpush1.msra.mxu0 0.0
        %4666 = vmatprep.subr.mxu0 0.0
        %4667 = vmatpush1.msra.mxu0 0.0
        %4668 = vmatprep.subr.mxu0 0.0
        %4669 = vmatpush1.msra.mxu0 0.0
        %4670 = vmatprep.subr.mxu0 0.0
        %4671 = vmatpush1.msra.mxu0 0.0
        %4672 = vmatprep.subr.mxu0 0.0
        %4673 = vmatpush1.msra.mxu0 0.0
        %4674 = vmatprep.subr.mxu0 0.0
        %4675 = vmatpush1.msra.mxu0 0.0
        %4676 = vmatprep.subr.mxu0 0.0
        %4677 = vmatpush1.msra.mxu0 0.0
        %4678 = vmatprep.subr.mxu0 0.0
        %4679 = vmatpush1.msra.mxu0 0.0
        %4680 = vmatprep.subr.mxu0 0.0
        %4681 = vmatpush1.msra.mxu0 0.0
        %4682 = vmatprep.subr.mxu0 0.0
        %4683 = vmatpush1.msra.mxu0 0.0
        %4684 = vmatprep.subr.mxu0 0.0
        %4685 = vmatpush1.msra.mxu0 0.0
        %4686 = vmatprep.subr.mxu0 0.0
        %4687 = vmatpush1.msra.mxu0 0.0
        %4688 = vmatprep.subr.mxu0 0.0
        %4689 = vmatpush1.msra.mxu0 0.0
        %4690 = vmatprep.mubr.f32.mxu0 0.0
        %4691 = vmatmul.mubr.f32.gmra.mrb[0].mxu0 %v4624
        %v4692 = vpop.f32.mrb[0].mxu0
        %v4693 = vadd.f32 %v4619, %v4692
        %v4694 = vpop.f32.mrb[0].mxu0
        %4695 = vdwg.mxu0
        %v4698 = vunpack.c.l.s4 1966171168
        %v4699 = vunpack.c.0.s8 %v4698
        %v4700 = vlaneseq
        %v4701 = vshrl.u32 %v4700, 7
        %v4702 = vsub.s32 %v4699, %v4701
        %v4703 = vrot.slane %v4693, %v4702
        %v4704 = vcombine.high %v4703, %v4703
        %v4706 = vunpack.c.l.s4 1966171168
        %v4707 = vunpack.c.0.s8 %v4706
        %v4708 = vlaneseq
        %v4709 = vshrl.u32 %v4708, 7
        %v4710 = vsub.s32 %v4707, %v4709
        %v4711 = vrot.slane %v4703, %v4710
        %v4713 = vunpack.c.l.s4 1966171168
        %v4714 = vunpack.c.0.s8 %v4713
        %v4715 = vlaneseq
        %v4716 = vshrl.u32 %v4715, 7
        %v4717 = vsub.s32 %v4714, %v4716
        %v4718 = vrot.slane %v4704, %v4717
        %vm4721 = vcmask 0
        %4722 = vst.msk [vmem:[%s800] sm:$0x1] %vm4721, %v4711
        %4723 = vst.msk [vmem:[%s800 + $0x1] sm:$0x1] %vm4721, %v4718
      $region104: #{local_local_transformer3d.1} parent=95 // pred_fallthru
        _
      %s4724 = smul.u32 2, %s36
      %p4725 = scmp.lt.s32.totalorder %s4724, 3
      %s4726 = scalar_select %p4725, %s4724, 3
      %s4727 = scalar_lea.vmem %s19, %s4726
      // Predicated region
      $region105: #{local_local_transformer3d.1} parent=95 // pred_check
        %p4728 = pneg %p521
      $region106: #{local_local_transformer3d.1} parent=95 // pred_check_branch
        %4730 = sbr.rel (%p4728) target = $region108
      $region107: #{local_local_transformer3d.1} parent=95 // pred_region
        %s4731 = smul.u32 2, %s36
      $region108: #{local_local_transformer3d.1} parent=95 // pred_fallthru
        _
    $region96: #{local_local_transformer3d.1} parent=5 // pred_fallthru
      _
    %p4732 = scmp.le.s32.totalorder 2, %s27
    // Predicated region
    $region109: #{local_local_transformer3d.1} parent=5 // pred_check
      %p4733 = pneg %p4732
    $region110: #{local_local_transformer3d.1} parent=5 // pred_check_branch
      %4735 = sbr.rel (%p4733) target = $region112
    $region111: #{local_local_transformer3d.1} parent=5 // pred_region
      %s4736 = ssub.s32 %s27, 2
      // Predicated region
      $region113: #{local_local_transformer3d.1} parent=111 // pred_check
        %p4737 = pneg %p527
      $region114: #{local_local_transformer3d.1} parent=111 // pred_check_branch
        %4739 = sbr.rel (%p4737) target = $region116
      $region115: #{local_local_transformer3d.1} parent=111 // pred_region
        %s4740 = smul.u32 2, %s38
        %p4741 = scmp.lt.s32.totalorder %s4740, 3
        %s4742 = scalar_select %p4741, %s4740, 3
        %s4743 = scalar_lea.vmem %s19, %s4742
      $region116: #{local_local_transformer3d.1} parent=111 // pred_fallthru
        _
    $region112: #{local_local_transformer3d.1} parent=5 // pred_fallthru
      _
  $region6: #{local_local_transformer3d.1} parent=0 // loop_footer
    %s31 = sadd.s32 1, %s27
  $region7: #{local_local_transformer3d.1} parent=0 // loop_footer_branch
    %26 = sbr.rel target = $region3
  $region8: #{local_local_transformer3d.1} parent=0 // loop_exit
    _

</llo_original>
